<compile_context>
chip_gen: v6e
topology: v6e:2x2x1
jax: 0.10.0
libtpu: 0.0.40
codegen_flags: <defaults>
</compile_context>

<pallas_src>
from collections import namedtuple

import numpy as np
import jax
import jax.numpy as jnp
from jax.experimental import pallas as pl
from jax.experimental.pallas import tpu as pltpu

BERT_DIM = 128      # stand-in for 768 at small scale (must be a multiple of 128)
LEN_CUTOFF = 512
OUT_DIM = 4
P_TILE = 32         # relation pairs per grid step (clamped / auto-shrunk in the wrapper)

Mention = namedtuple("Mention", ["i", "f"])
Entity = namedtuple("Entity", ["mentions"])


# ----------------------------- Pallas kernel --------------------------------

def _verga_kernel(e1_ref, e2_ref, w_ref, mb_ref, out_ref):
    # e1_ref : (PT, L1, D)   bf16
    # e2_ref : (PT, L2, D)   bf16
    # w_ref  : (D, R*D)      bf16   (constant block -> VMEM-resident across the grid)
    # mb_ref : (PT, L1, L2)  bf16   combined additive mask (0 valid / -inf padding)
    # out_ref: (PT, R)       f32
    pt, L1, D = e1_ref.shape
    L2 = e2_ref.shape[1]
    R = w_ref.shape[1] // D

    # Stage 1: one big bf16 MXU matmul covering all PT pairs and all R labels.
    #   tmp[p*L1 + i, r*D + b] = sum_a e1[p, i, a] * W[r, b, a]
    e1_flat = e1_ref[...].reshape(pt * L1, D)                      # free reshape (L1 % 8 == 0)
    tmp = jax.lax.dot_general(
        e1_flat, w_ref[...],
        dimension_numbers=(((1,), (0,)), ((), ())),
        preferred_element_type=jnp.float32)                        # (pt*L1, R*D) f32

    e2 = e2_ref[...]                                               # (pt, L2, D) bf16 (no f32 copy)
    mb = mb_ref[...].astype(jnp.float32)                           # (pt, L1, L2), hoisted out of R loop

    # Stage 2: per relation label (R is tiny -> statically unrolled), batched over the tile.
    lse_cols = []
    for r in range(R):
        # lane-aligned slice of tmp; f32 reshape is layout-trivial, cast slab to bf16 for the MXU.
        tmp_r = tmp[:, r * D:(r + 1) * D].reshape(pt, L1, D).astype(jnp.bfloat16)
        # z[p, i, j] = sum_b tmp_r[p, i, b] * e2[p, j, b]          (bf16 x bf16 -> f32 acc)
        z = jax.lax.dot_general(
            tmp_r, e2,
            dimension_numbers=(((2,), (2,)), ((0,), (0,))),
            preferred_element_type=jnp.float32)                    # (pt, L1, L2) f32
        masked = z + mb

        # f32 masked logsumexp over (i, j), per pair.
        m = jnp.max(jnp.max(masked, axis=2, keepdims=True), axis=1, keepdims=True)
        m_safe = jnp.where(jnp.isfinite(m), m, 0.0)                # fully-masked dummy pairs -> 0
        s = jnp.sum(jnp.sum(jnp.exp(masked - m_safe), axis=2, keepdims=True),
                    axis=1, keepdims=True)                         # (pt, 1, 1)
        lse_cols.append((m_safe + jnp.log(s))[:, :, 0])            # (pt, 1)

    # Single store of the whole (pt, R) output tile.
    out_ref[...] = jnp.concatenate(lse_cols, axis=1)


# ------------------------------ host wrapper ---------------------------------

def verga_scores(e1, e2, W, e1_mask, e2_mask, p_tile=P_TILE):
    """e1: (P,L1,D) f32, e2: (P,L2,D) f32, W: (R,D,D) f32,
    masks: (P,L1)/(P,L2) f32 additive (0 valid, -inf padding). Returns (P,R) f32."""
    P, L1, D = e1.shape
    _, L2, _ = e2.shape
    R = W.shape[0]
    assert D % 128 == 0, "bert_dim must be a multiple of 128 for lane alignment"

    # Contract the smaller entity side first: scores are invariant under
    # (e1, e2, W) -> (e2, e1, W^T) because the logsumexp runs over both piece axes.
    if L2 < L1:
        e1, e2 = e2, e1
        e1_mask, e2_mask = e2_mask, e1_mask
        W = jnp.swapaxes(W, 1, 2)
        L1, L2 = L2, L1

    # Choose the pair tile: as large as the (padded) batch allows, then shrink until the
    # per-step VMEM working set fits comfortably inside v7x's 64 MiB/TC.
    p_tile = max(8, min(int(p_tile), ((P + 7) // 8) * 8))

    def _vmem_est(pt):
        return (2 * pt * L1 * D * 2          # e1 tiles, double-buffered bf16
                + 2 * pt * L2 * D * 2        # e2 tiles
                + 2 * D * R * D * 2          # W slab (worst case: double-buffered)
                + 2 * pt * L1 * L2 * 2       # mask bias tiles (bf16)
                + 2 * pt * R * 4             # output tiles
                + pt * L1 * R * D * (4 + 2)  # stage-1 tmp (f32) + bf16 per-label slabs
                + 3 * pt * L1 * L2 * 4)      # z / masked / exp temporaries

    while p_tile > 8 and _vmem_est(p_tile) > 40 * 1024 * 1024:
        p_tile = max(8, 8 * ((p_tile // 2) // 8))

    # Pad the relation-pair axis with fully-masked dummy pairs (lse = -inf, sliced off).
    P_pad = ((P + p_tile - 1) // p_tile) * p_tile

    e1b = e1.astype(jnp.bfloat16)
    e2b = e2.astype(jnp.bfloat16)
    # Combined additive mask bias, built lane-dense on the host (values are exactly 0 / -inf,
    # so bf16 is lossless). Avoids size-1-lane mask blocks and in-kernel lane->sublane relayouts.
    mb = (e1_mask.astype(jnp.float32)[:, :, None]
          + e2_mask.astype(jnp.float32)[:, None, :]).astype(jnp.bfloat16)   # (P, L1, L2)

    if P_pad != P:
        pad = P_pad - P
        e1b = jnp.concatenate([e1b, jnp.zeros((pad, L1, D), jnp.bfloat16)], axis=0)
        e2b = jnp.concatenate([e2b, jnp.zeros((pad, L2, D), jnp.bfloat16)], axis=0)
        mb = jnp.concatenate([mb, jnp.full((pad, L1, L2), -jnp.inf, jnp.bfloat16)], axis=0)

    # W[r, b, a] -> W2[a, r*D + b]; one bf16 slab with a constant index_map -> fetched once.
    W2 = jnp.transpose(W, (2, 0, 1)).reshape(D, R * D).astype(jnp.bfloat16)

    vmem_limit = int(min(max(2 * _vmem_est(p_tile), 32 * 1024 * 1024), 64 * 1024 * 1024))
    compiler_params = pltpu.CompilerParams(
        dimension_semantics=("parallel",),          # v7x: shard pair tiles over its 2 TCs
        vmem_limit_bytes=vmem_limit)

    grid = (P_pad // p_tile,)
    out_shape = jax.ShapeDtypeStruct((P_pad, R), jnp.float32)

    # Try to single-buffer the constant W slab; fall back gracefully if unsupported.
    w_modes = []
    if hasattr(pl, "Buffered"):
        try:
            w_modes.append(pl.Buffered(1))
        except Exception:
            pass
    w_modes.append(None)

    last_err = None
    for w_mode in w_modes:
        try:
            w_spec_kwargs = {} if w_mode is None else {"pipeline_mode": w_mode}
            in_specs = [
                pl.BlockSpec((p_tile, L1, D), lambda t: (t, 0, 0)),          # e1 tile
                pl.BlockSpec((p_tile, L2, D), lambda t: (t, 0, 0)),          # e2 tile
                pl.BlockSpec((D, R * D), lambda t: (0, 0), **w_spec_kwargs),  # W slab (constant)
                pl.BlockSpec((p_tile, L1, L2), lambda t: (t, 0, 0)),         # combined mask bias
            ]
            out_specs = pl.BlockSpec((p_tile, R), lambda t: (t, 0))
            out = pl.pallas_call(
                _verga_kernel,
                out_shape=out_shape,
                grid=grid,
                in_specs=in_specs,
                out_specs=out_specs,
                compiler_params=compiler_params,
            )(e1b, e2b, W2, mb)
            return out[:P]
        except Exception as e:   # fallback path if pipeline_mode=Buffered(1) is rejected
            last_err = e
    raise last_err


# ------------------------------ glue (host) ---------------------------------

def gather_entity_pairs(inputs, word_embeddings):
    """Replicates the mention gather / concat / autopad of the PyTorch forward."""
    batch_e1, batch_e2 = [], []
    for idx, input_ in enumerate(inputs):
        for entity1, entity2 in input_["relations"]:
            e1_pieces = [word_embeddings[idx][m.i:m.f]
                         for m in entity1.mentions if m.i <= LEN_CUTOFF]
            e2_pieces = [word_embeddings[idx][m.i:m.f]
                         for m in entity2.mentions if m.i <= LEN_CUTOFF]
            if not e1_pieces or not e2_pieces:
                # TODO(synk): the original PyTorch crashes on torch.cat([]) here; skip instead.
                continue
            batch_e1.append(np.concatenate(e1_pieces, axis=0))
            batch_e2.append(np.concatenate(e2_pieces, axis=0))

    def pad(pieces):
        L = max(x.shape[0] for x in pieces)
        L = ((L + 7) // 8) * 8          # round up for (8, 128) sublane tiling
        D = pieces[0].shape[1]
        data = np.zeros((len(pieces), L, D), np.float32)
        mask = np.full((len(pieces), L), -np.inf, np.float32)
        for i, x in enumerate(pieces):
            data[i, : x.shape[0]] = x
            mask[i, : x.shape[0]] = 0.0
        return data, mask

    e1, m1 = pad(batch_e1)
    e2, m2 = pad(batch_e2)
    return e1, e2, m1, m2


def reference_scores(e1, e2, W, m1, m2):
    """Pure-JAX reference with the same bf16 rounding points as the kernel
    (bf16 inputs, f32 accumulation, stage-1 result rounded to bf16)."""
    rd = lambda x: x.astype(jnp.bfloat16).astype(jnp.float32)
    tmp = jnp.einsum("pia,rba->prib", rd(e1), rd(W))     # f32 accumulation
    tmp = rd(tmp)                                        # kernel rounds tmp to bf16
    z = jnp.einsum("prib,pjb->prij", tmp, rd(e2))
    masked = z + m1[:, None, :, None] + m2[:, None, None, :]
    Pn, Rn = masked.shape[0], masked.shape[1]
    return jax.scipy.special.logsumexp(masked.reshape(Pn, Rn, -1), axis=2)


# --------------------------------- main --------------------------------------

if __name__ == "__main__":
    key = jax.random.PRNGKey(0)
    k_w, k_emb = jax.random.split(key)

    B, S, D, R = 2, 16, BERT_DIM, OUT_DIM

    # kaiming_normal_(W, nonlinearity='relu'): std = sqrt(2 / fan_in), fan_in = D*D
    W = jax.random.normal(k_w, (R, D, D), jnp.float32) * (np.sqrt(2.0) / D)

    # precomputed "BERT" word embeddings (the word_embeddings fast-path of forward())
    word_embeddings = np.asarray(
        jax.random.normal(k_emb, (B, S, D), jnp.float32))

    # synthetic relation inputs: one relation pair per abstract
    inputs = [
        {"relations": [(Entity(mentions=[Mention(0, 3), Mention(5, 7)]),
                        Entity(mentions=[Mention(8, 12)]))]},
        {"relations": [(Entity(mentions=[Mention(2, 6)]),
                        Entity(mentions=[Mention(10, 16), Mention(0, 2)]))]},
    ]

    e1_np, e2_np, m1_np, m2_np = gather_entity_pairs(inputs, word_embeddings)
    e1 = jnp.asarray(e1_np)
    e2 = jnp.asarray(e2_np)
    m1 = jnp.asarray(m1_np)
    m2 = jnp.asarray(m2_np)

    scores = jax.block_until_ready(verga_scores(e1, e2, W, m1, m2))

    ref = jax.block_until_ready(reference_scores(e1, e2, W, m1, m2))
    np.testing.assert_allclose(np.asarray(scores), np.asarray(ref),
                               rtol=1e-2, atol=1e-2)
    print("KERNEL_OK")
</pallas_src>

<mosaic_0001>
module attributes {stable_mosaic.version = 11 : i64} {
  func.func @_verga_kernel(%arg0: i32, %arg1: memref<8x8x128xbf16, #tpu.memory_space<vmem>>, %arg2: memref<8x8x128xbf16, #tpu.memory_space<vmem>>, %arg3: memref<128x512xbf16, #tpu.memory_space<vmem>>, %arg4: memref<8x8x8xbf16, #tpu.memory_space<vmem>>, %arg5: memref<8x4xf32, #tpu.memory_space<vmem>>) attributes {dimension_semantics = [#tpu.dimension_semantics<parallel>], iteration_bounds = array<i64: 1>, scalar_prefetch = 0 : i64, scratch_operands = 0 : i64, tpu.core_type = #tpu.core_type<tc>, window_params = [{transform_indices = @transform_0, window_bounds = array<i64: 8, 8, 128>}, {transform_indices = @transform_1, window_bounds = array<i64: 8, 8, 128>}, {pipeline_mode = #tpu.pipeline_mode<synchronous>, transform_indices = @transform_2, window_bounds = array<i64: 128, 512>}, {transform_indices = @transform_3, window_bounds = array<i64: 8, 8, 8>}, {transform_indices = @transform_4, window_bounds = array<i64: 8, 4>}]} {
    %c0 = arith.constant 0 : index
    %c0_0 = arith.constant 0 : index
    %c0_1 = arith.constant 0 : index
    %0 = vector.load %arg1[%c0, %c0_0, %c0_1] : memref<8x8x128xbf16, #tpu.memory_space<vmem>>, vector<8x8x128xbf16>
    %1 = vector.shape_cast %0 : vector<8x8x128xbf16> to vector<64x128xbf16>
    %c0_2 = arith.constant 0 : index
    %c0_3 = arith.constant 0 : index
    %2 = vector.load %arg3[%c0_2, %c0_3] : memref<128x512xbf16, #tpu.memory_space<vmem>>, vector<128x512xbf16>
    %cst = arith.constant dense<0.000000e+00> : vector<64x512xf32>
    %3 = tpu.matmul %1, %2, %cst {dimension_numbers = #tpu.dot_dimension_numbers<[1], [0], [0], [1], [0, 0, 1, 1], [], []>} : vector<64x128xbf16>, vector<128x512xbf16>, vector<64x512xf32> -> vector<64x512xf32>
    %c0_4 = arith.constant 0 : index
    %c0_5 = arith.constant 0 : index
    %c0_6 = arith.constant 0 : index
    %4 = vector.load %arg2[%c0_4, %c0_5, %c0_6] : memref<8x8x128xbf16, #tpu.memory_space<vmem>>, vector<8x8x128xbf16>
    %c0_7 = arith.constant 0 : index
    %c0_8 = arith.constant 0 : index
    %c0_9 = arith.constant 0 : index
    %5 = vector.load %arg4[%c0_7, %c0_8, %c0_9] : memref<8x8x8xbf16, #tpu.memory_space<vmem>>, vector<8x8x8xbf16>
    %6 = arith.extf %5 : vector<8x8x8xbf16> to vector<8x8x8xf32>
    %7 = vector.extract_strided_slice %3 {offsets = [0, 0], sizes = [64, 128], strides = [1, 1]} : vector<64x512xf32> to vector<64x128xf32>
    %8 = vector.shape_cast %7 : vector<64x128xf32> to vector<8x8x128xf32>
    %9 = arith.truncf %8 : vector<8x8x128xf32> to vector<8x8x128xbf16>
    %cst_10 = arith.constant dense<0.000000e+00> : vector<8x8x8xf32>
    %10 = tpu.matmul %9, %4, %cst_10 {dimension_numbers = #tpu.dot_dimension_numbers<[2], [2], [1], [1], [0, 0, 0, 1, 1, 1], [0], [0]>} : vector<8x8x128xbf16>, vector<8x8x128xbf16>, vector<8x8x8xf32> -> vector<8x8x8xf32>
    %11 = arith.addf %10, %6 : vector<8x8x8xf32>
    %cst_11 = arith.constant dense<0xFF800000> : vector<8x8xf32>
    %12 = vector.multi_reduction <maximumf>, %11, %cst_11 [2] : vector<8x8x8xf32> to vector<8x8xf32>
    %13 = vector.shape_cast %12 : vector<8x8xf32> to vector<8x8x1xf32>
    %cst_12 = arith.constant dense<0xFF800000> : vector<8x1xf32>
    %14 = vector.multi_reduction <maximumf>, %13, %cst_12 [1] : vector<8x8x1xf32> to vector<8x1xf32>
    %15 = vector.shape_cast %14 : vector<8x1xf32> to vector<8x1x1xf32>
    %16 = tpu.weird %15 : vector<8x1x1xf32> -> vector<8x1x1xi1>
    %cst_13 = arith.constant dense<true> : vector<8x1x1xi1>
    %17 = arith.xori %16, %cst_13 : vector<8x1x1xi1>
    %cst_14 = arith.constant 0.000000e+00 : f32
    %18 = vector.broadcast %cst_14 : f32 to vector<8x1x1xf32>
    %19 = arith.select %17, %15, %18 : vector<8x1x1xi1>, vector<8x1x1xf32>
    %20 = vector.broadcast %19 : vector<8x1x1xf32> to vector<8x8x8xf32>
    %21 = arith.subf %11, %20 : vector<8x8x8xf32>
    %22 = math.exp %21 : vector<8x8x8xf32>
    %cst_15 = arith.constant dense<0.000000e+00> : vector<8x8xf32>
    %23 = vector.multi_reduction <add>, %22, %cst_15 [2] : vector<8x8x8xf32> to vector<8x8xf32>
    %24 = vector.shape_cast %23 : vector<8x8xf32> to vector<8x8x1xf32>
    %cst_16 = arith.constant dense<0.000000e+00> : vector<8x1xf32>
    %25 = vector.multi_reduction <add>, %24, %cst_16 [1] : vector<8x8x1xf32> to vector<8x1xf32>
    %26 = vector.shape_cast %25 : vector<8x1xf32> to vector<8x1x1xf32>
    %27 = math.log %26 : vector<8x1x1xf32>
    %28 = arith.addf %19, %27 : vector<8x1x1xf32>
    %29 = vector.shape_cast %28 : vector<8x1x1xf32> to vector<8x1xf32>
    %30 = vector.extract_strided_slice %3 {offsets = [0, 128], sizes = [64, 128], strides = [1, 1]} : vector<64x512xf32> to vector<64x128xf32>
    %31 = vector.shape_cast %30 : vector<64x128xf32> to vector<8x8x128xf32>
    %32 = arith.truncf %31 : vector<8x8x128xf32> to vector<8x8x128xbf16>
    %cst_17 = arith.constant dense<0.000000e+00> : vector<8x8x8xf32>
    %33 = tpu.matmul %32, %4, %cst_17 {dimension_numbers = #tpu.dot_dimension_numbers<[2], [2], [1], [1], [0, 0, 0, 1, 1, 1], [0], [0]>} : vector<8x8x128xbf16>, vector<8x8x128xbf16>, vector<8x8x8xf32> -> vector<8x8x8xf32>
    %34 = arith.addf %33, %6 : vector<8x8x8xf32>
    %cst_18 = arith.constant dense<0xFF800000> : vector<8x8xf32>
    %35 = vector.multi_reduction <maximumf>, %34, %cst_18 [2] : vector<8x8x8xf32> to vector<8x8xf32>
    %36 = vector.shape_cast %35 : vector<8x8xf32> to vector<8x8x1xf32>
    %cst_19 = arith.constant dense<0xFF800000> : vector<8x1xf32>
    %37 = vector.multi_reduction <maximumf>, %36, %cst_19 [1] : vector<8x8x1xf32> to vector<8x1xf32>
    %38 = vector.shape_cast %37 : vector<8x1xf32> to vector<8x1x1xf32>
    %39 = tpu.weird %38 : vector<8x1x1xf32> -> vector<8x1x1xi1>
    %cst_20 = arith.constant dense<true> : vector<8x1x1xi1>
    %40 = arith.xori %39, %cst_20 : vector<8x1x1xi1>
    %cst_21 = arith.constant 0.000000e+00 : f32
    %41 = vector.broadcast %cst_21 : f32 to vector<8x1x1xf32>
    %42 = arith.select %40, %38, %41 : vector<8x1x1xi1>, vector<8x1x1xf32>
    %43 = vector.broadcast %42 : vector<8x1x1xf32> to vector<8x8x8xf32>
    %44 = arith.subf %34, %43 : vector<8x8x8xf32>
    %45 = math.exp %44 : vector<8x8x8xf32>
    %cst_22 = arith.constant dense<0.000000e+00> : vector<8x8xf32>
    %46 = vector.multi_reduction <add>, %45, %cst_22 [2] : vector<8x8x8xf32> to vector<8x8xf32>
    %47 = vector.shape_cast %46 : vector<8x8xf32> to vector<8x8x1xf32>
    %cst_23 = arith.constant dense<0.000000e+00> : vector<8x1xf32>
    %48 = vector.multi_reduction <add>, %47, %cst_23 [1] : vector<8x8x1xf32> to vector<8x1xf32>
    %49 = vector.shape_cast %48 : vector<8x1xf32> to vector<8x1x1xf32>
    %50 = math.log %49 : vector<8x1x1xf32>
    %51 = arith.addf %42, %50 : vector<8x1x1xf32>
    %52 = vector.shape_cast %51 : vector<8x1x1xf32> to vector<8x1xf32>
    %53 = vector.extract_strided_slice %3 {offsets = [0, 256], sizes = [64, 128], strides = [1, 1]} : vector<64x512xf32> to vector<64x128xf32>
    %54 = vector.shape_cast %53 : vector<64x128xf32> to vector<8x8x128xf32>
    %55 = arith.truncf %54 : vector<8x8x128xf32> to vector<8x8x128xbf16>
    %cst_24 = arith.constant dense<0.000000e+00> : vector<8x8x8xf32>
    %56 = tpu.matmul %55, %4, %cst_24 {dimension_numbers = #tpu.dot_dimension_numbers<[2], [2], [1], [1], [0, 0, 0, 1, 1, 1], [0], [0]>} : vector<8x8x128xbf16>, vector<8x8x128xbf16>, vector<8x8x8xf32> -> vector<8x8x8xf32>
    %57 = arith.addf %56, %6 : vector<8x8x8xf32>
    %cst_25 = arith.constant dense<0xFF800000> : vector<8x8xf32>
    %58 = vector.multi_reduction <maximumf>, %57, %cst_25 [2] : vector<8x8x8xf32> to vector<8x8xf32>
    %59 = vector.shape_cast %58 : vector<8x8xf32> to vector<8x8x1xf32>
    %cst_26 = arith.constant dense<0xFF800000> : vector<8x1xf32>
    %60 = vector.multi_reduction <maximumf>, %59, %cst_26 [1] : vector<8x8x1xf32> to vector<8x1xf32>
    %61 = vector.shape_cast %60 : vector<8x1xf32> to vector<8x1x1xf32>
    %62 = tpu.weird %61 : vector<8x1x1xf32> -> vector<8x1x1xi1>
    %cst_27 = arith.constant dense<true> : vector<8x1x1xi1>
    %63 = arith.xori %62, %cst_27 : vector<8x1x1xi1>
    %cst_28 = arith.constant 0.000000e+00 : f32
    %64 = vector.broadcast %cst_28 : f32 to vector<8x1x1xf32>
    %65 = arith.select %63, %61, %64 : vector<8x1x1xi1>, vector<8x1x1xf32>
    %66 = vector.broadcast %65 : vector<8x1x1xf32> to vector<8x8x8xf32>
    %67 = arith.subf %57, %66 : vector<8x8x8xf32>
    %68 = math.exp %67 : vector<8x8x8xf32>
    %cst_29 = arith.constant dense<0.000000e+00> : vector<8x8xf32>
    %69 = vector.multi_reduction <add>, %68, %cst_29 [2] : vector<8x8x8xf32> to vector<8x8xf32>
    %70 = vector.shape_cast %69 : vector<8x8xf32> to vector<8x8x1xf32>
    %cst_30 = arith.constant dense<0.000000e+00> : vector<8x1xf32>
    %71 = vector.multi_reduction <add>, %70, %cst_30 [1] : vector<8x8x1xf32> to vector<8x1xf32>
    %72 = vector.shape_cast %71 : vector<8x1xf32> to vector<8x1x1xf32>
    %73 = math.log %72 : vector<8x1x1xf32>
    %74 = arith.addf %65, %73 : vector<8x1x1xf32>
    %75 = vector.shape_cast %74 : vector<8x1x1xf32> to vector<8x1xf32>
    %76 = vector.extract_strided_slice %3 {offsets = [0, 384], sizes = [64, 128], strides = [1, 1]} : vector<64x512xf32> to vector<64x128xf32>
    %77 = vector.shape_cast %76 : vector<64x128xf32> to vector<8x8x128xf32>
    %78 = arith.truncf %77 : vector<8x8x128xf32> to vector<8x8x128xbf16>
    %cst_31 = arith.constant dense<0.000000e+00> : vector<8x8x8xf32>
    %79 = tpu.matmul %78, %4, %cst_31 {dimension_numbers = #tpu.dot_dimension_numbers<[2], [2], [1], [1], [0, 0, 0, 1, 1, 1], [0], [0]>} : vector<8x8x128xbf16>, vector<8x8x128xbf16>, vector<8x8x8xf32> -> vector<8x8x8xf32>
    %80 = arith.addf %79, %6 : vector<8x8x8xf32>
    %cst_32 = arith.constant dense<0xFF800000> : vector<8x8xf32>
    %81 = vector.multi_reduction <maximumf>, %80, %cst_32 [2] : vector<8x8x8xf32> to vector<8x8xf32>
    %82 = vector.shape_cast %81 : vector<8x8xf32> to vector<8x8x1xf32>
    %cst_33 = arith.constant dense<0xFF800000> : vector<8x1xf32>
    %83 = vector.multi_reduction <maximumf>, %82, %cst_33 [1] : vector<8x8x1xf32> to vector<8x1xf32>
    %84 = vector.shape_cast %83 : vector<8x1xf32> to vector<8x1x1xf32>
    %85 = tpu.weird %84 : vector<8x1x1xf32> -> vector<8x1x1xi1>
    %cst_34 = arith.constant dense<true> : vector<8x1x1xi1>
    %86 = arith.xori %85, %cst_34 : vector<8x1x1xi1>
    %cst_35 = arith.constant 0.000000e+00 : f32
    %87 = vector.broadcast %cst_35 : f32 to vector<8x1x1xf32>
    %88 = arith.select %86, %84, %87 : vector<8x1x1xi1>, vector<8x1x1xf32>
    %89 = vector.broadcast %88 : vector<8x1x1xf32> to vector<8x8x8xf32>
    %90 = arith.subf %80, %89 : vector<8x8x8xf32>
    %91 = math.exp %90 : vector<8x8x8xf32>
    %cst_36 = arith.constant dense<0.000000e+00> : vector<8x8xf32>
    %92 = vector.multi_reduction <add>, %91, %cst_36 [2] : vector<8x8x8xf32> to vector<8x8xf32>
    %93 = vector.shape_cast %92 : vector<8x8xf32> to vector<8x8x1xf32>
    %cst_37 = arith.constant dense<0.000000e+00> : vector<8x1xf32>
    %94 = vector.multi_reduction <add>, %93, %cst_37 [1] : vector<8x8x1xf32> to vector<8x1xf32>
    %95 = vector.shape_cast %94 : vector<8x1xf32> to vector<8x1x1xf32>
    %96 = math.log %95 : vector<8x1x1xf32>
    %97 = arith.addf %88, %96 : vector<8x1x1xf32>
    %98 = vector.shape_cast %97 : vector<8x1x1xf32> to vector<8x1xf32>
    %99 = tpu.concatenate %29, %52, %75, %98 in 1 : vector<8x1xf32>, vector<8x1xf32>, vector<8x1xf32>, vector<8x1xf32> -> vector<8x4xf32>
    %c0_38 = arith.constant 0 : index
    %c0_39 = arith.constant 0 : index
    %100 = vector.load %arg5[%c0_38, %c0_39] : memref<8x4xf32, #tpu.memory_space<vmem>>, vector<8x4xf32>
    tpu.vector_store %arg5[%c0_38, %c0_39], %99 {strides = array<i32>} : memref<8x4xf32, #tpu.memory_space<vmem>>, vector<8x4xf32>,
    return
  }
  func.func @transform_0(%arg0: i32) -> (i32, i32, i32) {
    %c0_i32 = arith.constant 0 : i32
    %c0_i32_0 = arith.constant 0 : i32
    %c0_i32_1 = arith.constant 0 : i32
    return %arg0, %c0_i32, %c0_i32_0 : i32, i32, i32
  }
  func.func @transform_1(%arg0: i32) -> (i32, i32, i32) {
    %c0_i32 = arith.constant 0 : i32
    %c0_i32_0 = arith.constant 0 : i32
    %c0_i32_1 = arith.constant 0 : i32
    return %arg0, %c0_i32, %c0_i32_0 : i32, i32, i32
  }
  func.func @transform_2(%arg0: i32) -> (i32, i32) {
    %c0_i32 = arith.constant 0 : i32
    %c0_i32_0 = arith.constant 0 : i32
    %c0_i32_1 = arith.constant 0 : i32
    return %c0_i32, %c0_i32_0 : i32, i32
  }
  func.func @transform_3(%arg0: i32) -> (i32, i32, i32) {
    %c0_i32 = arith.constant 0 : i32
    %c0_i32_0 = arith.constant 0 : i32
    %c0_i32_1 = arith.constant 0 : i32
    return %arg0, %c0_i32, %c0_i32_0 : i32, i32, i32
  }
  func.func @transform_4(%arg0: i32) -> (i32, i32) {
    %c0_i32 = arith.constant 0 : i32
    %c0_i32_0 = arith.constant 0 : i32
    return %arg0, %c0_i32 : i32, i32
  }
}

module attributes {stable_mosaic.version = 11 : i64} {
  func.func @_verga_kernel(%arg0: i32, %arg1: memref<8x8x128xbf16, #tpu.memory_space<vmem>>, %arg2: memref<8x8x128xbf16, #tpu.memory_space<vmem>>, %arg3: memref<128x512xbf16, #tpu.memory_space<vmem>>, %arg4: memref<8x8x8xbf16, #tpu.memory_space<vmem>>, %arg5: memref<8x4xf32, #tpu.memory_space<vmem>>) attributes {dimension_semantics = [#tpu.dimension_semantics<parallel>], iteration_bounds = array<i64: 1>, scalar_prefetch = 0 : i64, scratch_operands = 0 : i64, tpu.core_type = #tpu.core_type<tc>, window_params = [{transform_indices = @transform_0, window_bounds = array<i64: 8, 8, 128>}, {transform_indices = @transform_1, window_bounds = array<i64: 8, 8, 128>}, {pipeline_mode = #tpu.pipeline_mode<synchronous>, transform_indices = @transform_2, window_bounds = array<i64: 128, 512>}, {transform_indices = @transform_3, window_bounds = array<i64: 8, 8, 8>}, {transform_indices = @transform_4, window_bounds = array<i64: 8, 4>}]} {
    %c0 = arith.constant 0 : index
    %c0_0 = arith.constant 0 : index
    %c0_1 = arith.constant 0 : index
    %0 = vector.load %arg1[%c0, %c0_0, %c0_1] : memref<8x8x128xbf16, #tpu.memory_space<vmem>>, vector<8x8x128xbf16>
    %1 = vector.shape_cast %0 : vector<8x8x128xbf16> to vector<64x128xbf16>
    %c0_2 = arith.constant 0 : index
    %c0_3 = arith.constant 0 : index
    %2 = vector.load %arg3[%c0_2, %c0_3] : memref<128x512xbf16, #tpu.memory_space<vmem>>, vector<128x512xbf16>
    %cst = arith.constant dense<0.000000e+00> : vector<64x512xf32>
    %3 = tpu.matmul %1, %2, %cst {dimension_numbers = #tpu.dot_dimension_numbers<[1], [0], [0], [1], [0, 0, 1, 1], [], []>} : vector<64x128xbf16>, vector<128x512xbf16>, vector<64x512xf32> -> vector<64x512xf32>
    %c0_4 = arith.constant 0 : index
    %c0_5 = arith.constant 0 : index
    %c0_6 = arith.constant 0 : index
    %4 = vector.load %arg2[%c0_4, %c0_5, %c0_6] : memref<8x8x128xbf16, #tpu.memory_space<vmem>>, vector<8x8x128xbf16>
    %c0_7 = arith.constant 0 : index
    %c0_8 = arith.constant 0 : index
    %c0_9 = arith.constant 0 : index
    %5 = vector.load %arg4[%c0_7, %c0_8, %c0_9] : memref<8x8x8xbf16, #tpu.memory_space<vmem>>, vector<8x8x8xbf16>
    %6 = arith.extf %5 : vector<8x8x8xbf16> to vector<8x8x8xf32>
    %7 = vector.extract_strided_slice %3 {offsets = [0, 0], sizes = [64, 128], strides = [1, 1]} : vector<64x512xf32> to vector<64x128xf32>
    %8 = vector.shape_cast %7 : vector<64x128xf32> to vector<8x8x128xf32>
    %9 = arith.truncf %8 : vector<8x8x128xf32> to vector<8x8x128xbf16>
    %cst_10 = arith.constant dense<0.000000e+00> : vector<8x8x8xf32>
    %10 = tpu.matmul %9, %4, %cst_10 {dimension_numbers = #tpu.dot_dimension_numbers<[2], [2], [1], [1], [0, 0, 0, 1, 1, 1], [0], [0]>} : vector<8x8x128xbf16>, vector<8x8x128xbf16>, vector<8x8x8xf32> -> vector<8x8x8xf32>
    %11 = arith.addf %10, %6 : vector<8x8x8xf32>
    %cst_11 = arith.constant dense<0xFF800000> : vector<8x8xf32>
    %12 = vector.multi_reduction <maximumf>, %11, %cst_11 [2] : vector<8x8x8xf32> to vector<8x8xf32>
    %13 = vector.shape_cast %12 : vector<8x8xf32> to vector<8x8x1xf32>
    %cst_12 = arith.constant dense<0xFF800000> : vector<8x1xf32>
    %14 = vector.multi_reduction <maximumf>, %13, %cst_12 [1] : vector<8x8x1xf32> to vector<8x1xf32>
    %15 = vector.shape_cast %14 : vector<8x1xf32> to vector<8x1x1xf32>
    %16 = tpu.weird %15 : vector<8x1x1xf32> -> vector<8x1x1xi1>
    %cst_13 = arith.constant dense<true> : vector<8x1x1xi1>
    %17 = arith.xori %16, %cst_13 : vector<8x1x1xi1>
    %cst_14 = arith.constant 0.000000e+00 : f32
    %18 = vector.broadcast %cst_14 : f32 to vector<8x1x1xf32>
    %19 = arith.select %17, %15, %18 : vector<8x1x1xi1>, vector<8x1x1xf32>
    %20 = vector.broadcast %19 : vector<8x1x1xf32> to vector<8x8x8xf32>
    %21 = arith.subf %11, %20 : vector<8x8x8xf32>
    %22 = math.exp %21 : vector<8x8x8xf32>
    %cst_15 = arith.constant dense<0.000000e+00> : vector<8x8xf32>
    %23 = vector.multi_reduction <add>, %22, %cst_15 [2] : vector<8x8x8xf32> to vector<8x8xf32>
    %24 = vector.shape_cast %23 : vector<8x8xf32> to vector<8x8x1xf32>
    %cst_16 = arith.constant dense<0.000000e+00> : vector<8x1xf32>
    %25 = vector.multi_reduction <add>, %24, %cst_16 [1] : vector<8x8x1xf32> to vector<8x1xf32>
    %26 = vector.shape_cast %25 : vector<8x1xf32> to vector<8x1x1xf32>
    %27 = math.log %26 : vector<8x1x1xf32>
    %28 = arith.addf %19, %27 : vector<8x1x1xf32>
    %29 = vector.shape_cast %28 : vector<8x1x1xf32> to vector<8x1xf32>
    %30 = vector.extract_strided_slice %3 {offsets = [0, 128], sizes = [64, 128], strides = [1, 1]} : vector<64x512xf32> to vector<64x128xf32>
    %31 = vector.shape_cast %30 : vector<64x128xf32> to vector<8x8x128xf32>
    %32 = arith.truncf %31 : vector<8x8x128xf32> to vector<8x8x128xbf16>
    %cst_17 = arith.constant dense<0.000000e+00> : vector<8x8x8xf32>
    %33 = tpu.matmul %32, %4, %cst_17 {dimension_numbers = #tpu.dot_dimension_numbers<[2], [2], [1], [1], [0, 0, 0, 1, 1, 1], [0], [0]>} : vector<8x8x128xbf16>, vector<8x8x128xbf16>, vector<8x8x8xf32> -> vector<8x8x8xf32>
    %34 = arith.addf %33, %6 : vector<8x8x8xf32>
    %cst_18 = arith.constant dense<0xFF800000> : vector<8x8xf32>
    %35 = vector.multi_reduction <maximumf>, %34, %cst_18 [2] : vector<8x8x8xf32> to vector<8x8xf32>
    %36 = vector.shape_cast %35 : vector<8x8xf32> to vector<8x8x1xf32>
    %cst_19 = arith.constant dense<0xFF800000> : vector<8x1xf32>
    %37 = vector.multi_reduction <maximumf>, %36, %cst_19 [1] : vector<8x8x1xf32> to vector<8x1xf32>
    %38 = vector.shape_cast %37 : vector<8x1xf32> to vector<8x1x1xf32>
    %39 = tpu.weird %38 : vector<8x1x1xf32> -> vector<8x1x1xi1>
    %cst_20 = arith.constant dense<true> : vector<8x1x1xi1>
    %40 = arith.xori %39, %cst_20 : vector<8x1x1xi1>
    %cst_21 = arith.constant 0.000000e+00 : f32
    %41 = vector.broadcast %cst_21 : f32 to vector<8x1x1xf32>
    %42 = arith.select %40, %38, %41 : vector<8x1x1xi1>, vector<8x1x1xf32>
    %43 = vector.broadcast %42 : vector<8x1x1xf32> to vector<8x8x8xf32>
    %44 = arith.subf %34, %43 : vector<8x8x8xf32>
    %45 = math.exp %44 : vector<8x8x8xf32>
    %cst_22 = arith.constant dense<0.000000e+00> : vector<8x8xf32>
    %46 = vector.multi_reduction <add>, %45, %cst_22 [2] : vector<8x8x8xf32> to vector<8x8xf32>
    %47 = vector.shape_cast %46 : vector<8x8xf32> to vector<8x8x1xf32>
    %cst_23 = arith.constant dense<0.000000e+00> : vector<8x1xf32>
    %48 = vector.multi_reduction <add>, %47, %cst_23 [1] : vector<8x8x1xf32> to vector<8x1xf32>
    %49 = vector.shape_cast %48 : vector<8x1xf32> to vector<8x1x1xf32>
    %50 = math.log %49 : vector<8x1x1xf32>
    %51 = arith.addf %42, %50 : vector<8x1x1xf32>
    %52 = vector.shape_cast %51 : vector<8x1x1xf32> to vector<8x1xf32>
    %53 = vector.extract_strided_slice %3 {offsets = [0, 256], sizes = [64, 128], strides = [1, 1]} : vector<64x512xf32> to vector<64x128xf32>
    %54 = vector.shape_cast %53 : vector<64x128xf32> to vector<8x8x128xf32>
    %55 = arith.truncf %54 : vector<8x8x128xf32> to vector<8x8x128xbf16>
    %cst_24 = arith.constant dense<0.000000e+00> : vector<8x8x8xf32>
    %56 = tpu.matmul %55, %4, %cst_24 {dimension_numbers = #tpu.dot_dimension_numbers<[2], [2], [1], [1], [0, 0, 0, 1, 1, 1], [0], [0]>} : vector<8x8x128xbf16>, vector<8x8x128xbf16>, vector<8x8x8xf32> -> vector<8x8x8xf32>
    %57 = arith.addf %56, %6 : vector<8x8x8xf32>
    %cst_25 = arith.constant dense<0xFF800000> : vector<8x8xf32>
    %58 = vector.multi_reduction <maximumf>, %57, %cst_25 [2] : vector<8x8x8xf32> to vector<8x8xf32>
    %59 = vector.shape_cast %58 : vector<8x8xf32> to vector<8x8x1xf32>
    %cst_26 = arith.constant dense<0xFF800000> : vector<8x1xf32>
    %60 = vector.multi_reduction <maximumf>, %59, %cst_26 [1] : vector<8x8x1xf32> to vector<8x1xf32>
    %61 = vector.shape_cast %60 : vector<8x1xf32> to vector<8x1x1xf32>
    %62 = tpu.weird %61 : vector<8x1x1xf32> -> vector<8x1x1xi1>
    %cst_27 = arith.constant dense<true> : vector<8x1x1xi1>
    %63 = arith.xori %62, %cst_27 : vector<8x1x1xi1>
    %cst_28 = arith.constant 0.000000e+00 : f32
    %64 = vector.broadcast %cst_28 : f32 to vector<8x1x1xf32>
    %65 = arith.select %63, %61, %64 : vector<8x1x1xi1>, vector<8x1x1xf32>
    %66 = vector.broadcast %65 : vector<8x1x1xf32> to vector<8x8x8xf32>
    %67 = arith.subf %57, %66 : vector<8x8x8xf32>
    %68 = math.exp %67 : vector<8x8x8xf32>
    %cst_29 = arith.constant dense<0.000000e+00> : vector<8x8xf32>
    %69 = vector.multi_reduction <add>, %68, %cst_29 [2] : vector<8x8x8xf32> to vector<8x8xf32>
    %70 = vector.shape_cast %69 : vector<8x8xf32> to vector<8x8x1xf32>
    %cst_30 = arith.constant dense<0.000000e+00> : vector<8x1xf32>
    %71 = vector.multi_reduction <add>, %70, %cst_30 [1] : vector<8x8x1xf32> to vector<8x1xf32>
    %72 = vector.shape_cast %71 : vector<8x1xf32> to vector<8x1x1xf32>
    %73 = math.log %72 : vector<8x1x1xf32>
    %74 = arith.addf %65, %73 : vector<8x1x1xf32>
    %75 = vector.shape_cast %74 : vector<8x1x1xf32> to vector<8x1xf32>
    %76 = vector.extract_strided_slice %3 {offsets = [0, 384], sizes = [64, 128], strides = [1, 1]} : vector<64x512xf32> to vector<64x128xf32>
    %77 = vector.shape_cast %76 : vector<64x128xf32> to vector<8x8x128xf32>
    %78 = arith.truncf %77 : vector<8x8x128xf32> to vector<8x8x128xbf16>
    %cst_31 = arith.constant dense<0.000000e+00> : vector<8x8x8xf32>
    %79 = tpu.matmul %78, %4, %cst_31 {dimension_numbers = #tpu.dot_dimension_numbers<[2], [2], [1], [1], [0, 0, 0, 1, 1, 1], [0], [0]>} : vector<8x8x128xbf16>, vector<8x8x128xbf16>, vector<8x8x8xf32> -> vector<8x8x8xf32>
    %80 = arith.addf %79, %6 : vector<8x8x8xf32>
    %cst_32 = arith.constant dense<0xFF800000> : vector<8x8xf32>
    %81 = vector.multi_reduction <maximumf>, %80, %cst_32 [2] : vector<8x8x8xf32> to vector<8x8xf32>
    %82 = vector.shape_cast %81 : vector<8x8xf32> to vector<8x8x1xf32>
    %cst_33 = arith.constant dense<0xFF800000> : vector<8x1xf32>
    %83 = vector.multi_reduction <maximumf>, %82, %cst_33 [1] : vector<8x8x1xf32> to vector<8x1xf32>
    %84 = vector.shape_cast %83 : vector<8x1xf32> to vector<8x1x1xf32>
    %85 = tpu.weird %84 : vector<8x1x1xf32> -> vector<8x1x1xi1>
    %cst_34 = arith.constant dense<true> : vector<8x1x1xi1>
    %86 = arith.xori %85, %cst_34 : vector<8x1x1xi1>
    %cst_35 = arith.constant 0.000000e+00 : f32
    %87 = vector.broadcast %cst_35 : f32 to vector<8x1x1xf32>
    %88 = arith.select %86, %84, %87 : vector<8x1x1xi1>, vector<8x1x1xf32>
    %89 = vector.broadcast %88 : vector<8x1x1xf32> to vector<8x8x8xf32>
    %90 = arith.subf %80, %89 : vector<8x8x8xf32>
    %91 = math.exp %90 : vector<8x8x8xf32>
    %cst_36 = arith.constant dense<0.000000e+00> : vector<8x8xf32>
    %92 = vector.multi_reduction <add>, %91, %cst_36 [2] : vector<8x8x8xf32> to vector<8x8xf32>
    %93 = vector.shape_cast %92 : vector<8x8xf32> to vector<8x8x1xf32>
    %cst_37 = arith.constant dense<0.000000e+00> : vector<8x1xf32>
    %94 = vector.multi_reduction <add>, %93, %cst_37 [1] : vector<8x8x1xf32> to vector<8x1xf32>
    %95 = vector.shape_cast %94 : vector<8x1xf32> to vector<8x1x1xf32>
    %96 = math.log %95 : vector<8x1x1xf32>
    %97 = arith.addf %88, %96 : vector<8x1x1xf32>
    %98 = vector.shape_cast %97 : vector<8x1x1xf32> to vector<8x1xf32>
    %99 = tpu.concatenate %29, %52, %75, %98 in 1 : vector<8x1xf32>, vector<8x1xf32>, vector<8x1xf32>, vector<8x1xf32> -> vector<8x4xf32>
    %c0_38 = arith.constant 0 : index
    %c0_39 = arith.constant 0 : index
    %100 = vector.load %arg5[%c0_38, %c0_39] : memref<8x4xf32, #tpu.memory_space<vmem>>, vector<8x4xf32>
    tpu.vector_store %arg5[%c0_38, %c0_39], %99 {strides = array<i32>} : memref<8x4xf32, #tpu.memory_space<vmem>>, vector<8x4xf32>,
    return
  }
  func.func @transform_0(%arg0: i32) -> (i32, i32, i32) {
    %c0_i32 = arith.constant 0 : i32
    %c0_i32_0 = arith.constant 0 : i32
    %c0_i32_1 = arith.constant 0 : i32
    return %arg0, %c0_i32, %c0_i32_0 : i32, i32, i32
  }
  func.func @transform_1(%arg0: i32) -> (i32, i32, i32) {
    %c0_i32 = arith.constant 0 : i32
    %c0_i32_0 = arith.constant 0 : i32
    %c0_i32_1 = arith.constant 0 : i32
    return %arg0, %c0_i32, %c0_i32_0 : i32, i32, i32
  }
  func.func @transform_2(%arg0: i32) -> (i32, i32) {
    %c0_i32 = arith.constant 0 : i32
    %c0_i32_0 = arith.constant 0 : i32
    %c0_i32_1 = arith.constant 0 : i32
    return %c0_i32, %c0_i32_0 : i32, i32
  }
  func.func @transform_3(%arg0: i32) -> (i32, i32, i32) {
    %c0_i32 = arith.constant 0 : i32
    %c0_i32_0 = arith.constant 0 : i32
    %c0_i32_1 = arith.constant 0 : i32
    return %arg0, %c0_i32, %c0_i32_0 : i32, i32, i32
  }
  func.func @transform_4(%arg0: i32) -> (i32, i32) {
    %c0_i32 = arith.constant 0 : i32
    %c0_i32_0 = arith.constant 0 : i32
    return %arg0, %c0_i32 : i32, i32
  }
}

</mosaic_0001>

<llo_original>
// kernel: tpu_custom_call.1
$region0: #{tpu_custom_call.1}
  #allocation0 [shape = 'u32[]', space=smem, size = 0x4, offset = 0x4, fixed_abs, tag = 'smem constant byte address 0x4 - core index']
  #allocation1 [shape = 'u32[144,128]{1,0:T(1,128)}', space=vmem, size = 0x12000, scoped, tag = 'internal scratch']
  %s0 = inlined_call_operand.hbm [shape: bf16[8,8,128], index: 0, kind: input, shape index: {}]
  %s1 = inlined_call_operand.hbm [shape: bf16[8,8,128], index: 1, kind: input, shape index: {}]
  %s2 = inlined_call_operand.hbm [shape: bf16[128,512], index: 2, kind: input, shape index: {}]
  %s3 = inlined_call_operand.hbm [shape: bf16[8,8,8], index: 3, kind: input, shape index: {}]
  %s4 = inlined_call_operand.vmem [shape: f32[8,4], index: 4, kind: output, shape index: {}]
  %s5 = sld [smem:[#allocation0]]
  $region42: #{tpu_custom_call.1} parent=0
    _
  %s7 = ssub.s32 1, %s5
  %s8 = scalar_select 0, %s7, %s5
  $region1: #{tpu_custom_call.1} parent=0
    #allocation2 [shape = 'u8[16384]{0}', space=vmem, size = 0x4000, scoped, tag = 'input window, operand 0, single buffered']
    #allocation3 [shape = 's32[1]{0}', space=sflag, size = 0x4, scoped, tag = 'scoped memory for tpu_custom_call.1']
    #allocation4 [shape = 'u8[16384]{0}', space=vmem, size = 0x4000, scoped, tag = 'input window, operand 1, single buffered']
    #allocation5 [shape = 's32[1]{0}', space=sflag, size = 0x4, scoped, tag = 'scoped memory for tpu_custom_call.1']
    #allocation6 [shape = 'u8[131072]{0}', space=vmem, size = 0x20000, scoped, tag = 'input window, operand 2, single buffered']
    #allocation7 [shape = 'u8[16384]{0}', space=vmem, size = 0x4000, scoped, tag = 'input window, operand 3, single buffered']
    #allocation8 [shape = 's32[1]{0}', space=sflag, size = 0x4, scoped, tag = 'scoped memory for tpu_custom_call.1']
    %9 = vsyncpa [#allocation3], 0
    %10 = vsyncpa [#allocation5], 0
    %11 = vsyncpa [#allocation8], 0
    // Predicated region
    $region2: #{tpu_custom_call.1} parent=1 // pred_check
      _
    $region3: #{tpu_custom_call.1} parent=1 // pred_check_branch
      %13 = sbr.rel (0) target = $region5
    $region4: #{tpu_custom_call.1} parent=1 // pred_region
      %s15 = ssub.s32 512, 512
      %16 = vsyncadd [#allocation3], %s15
      %s17 = sshll.u32 [#allocation2], 4
      %s18 = int_to_ptr.vmem [resolvable:$true] %s17
      %23 = dma.hbm_to_vmem [thread:$0]  %s0, 512, %s18, [#allocation3], 64, 64, 4
    $region5: #{tpu_custom_call.1} parent=1 // pred_fallthru
      _
    // Predicated region
    $region6: #{tpu_custom_call.1} parent=1 // pred_check
      _
    $region7: #{tpu_custom_call.1} parent=1 // pred_check_branch
      %25 = sbr.rel (0) target = $region9
    $region8: #{tpu_custom_call.1} parent=1 // pred_region
      %s27 = ssub.s32 512, 512
      %28 = vsyncadd [#allocation5], %s27
      %s29 = sshll.u32 [#allocation4], 4
      %s30 = int_to_ptr.vmem [resolvable:$true] %s29
      %35 = dma.hbm_to_vmem [thread:$0]  %s1, 512, %s30, [#allocation5], 64, 64, 4
    $region9: #{tpu_custom_call.1} parent=1 // pred_fallthru
      _
    // Predicated region
    $region10: #{tpu_custom_call.1} parent=1 // pred_check
      _
    $region11: #{tpu_custom_call.1} parent=1 // pred_check_branch
      %37 = sbr.rel (0) target = $region13
    $region12: #{tpu_custom_call.1} parent=1 // pred_region
      %s39 = ssub.s32 4096, 4096
      %40 = vsyncadd [#allocation5], %s39
      %s41 = sshll.u32 [#allocation6], 4
      %s42 = int_to_ptr.vmem [resolvable:$true] %s41
      %47 = dma.hbm_to_vmem [thread:$0]  %s2, 4096, %s42, [#allocation5], 256, 256, 16
    $region13: #{tpu_custom_call.1} parent=1 // pred_fallthru
      _
    // Predicated region
    $region14: #{tpu_custom_call.1} parent=1 // pred_check
      _
    $region15: #{tpu_custom_call.1} parent=1 // pred_check_branch
      %49 = sbr.rel (0) target = $region17
    $region16: #{tpu_custom_call.1} parent=1 // pred_region
      %s51 = ssub.s32 512, 512
      %52 = vsyncadd [#allocation8], %s51
      %s53 = sshll.u32 [#allocation7], 4
      %s54 = int_to_ptr.vmem [resolvable:$true] %s53
      %59 = dma.hbm_to_vmem [thread:$0]  %s3, 512, %s54, [#allocation8], 64, 64, 4
    $region17: #{tpu_custom_call.1} parent=1 // pred_fallthru
      _
    // Predicated region
    $region18: #{tpu_custom_call.1} parent=1 // pred_check
      _
    $region19: #{tpu_custom_call.1} parent=1 // pred_check_branch
      %61 = sbr.rel (0) target = $region21
    $region20: #{tpu_custom_call.1} parent=1 // pred_region
      %62 = dma.done [#allocation3], 512
    $region21: #{tpu_custom_call.1} parent=1 // pred_fallthru
      _
    // Predicated region
    $region22: #{tpu_custom_call.1} parent=1 // pred_check
      _
    $region23: #{tpu_custom_call.1} parent=1 // pred_check_branch
      %64 = sbr.rel (0) target = $region25
    $region24: #{tpu_custom_call.1} parent=1 // pred_region
      %65 = dma.done [#allocation5], 512
    $region25: #{tpu_custom_call.1} parent=1 // pred_fallthru
      _
    // Predicated region
    $region26: #{tpu_custom_call.1} parent=1 // pred_check
      _
    $region27: #{tpu_custom_call.1} parent=1 // pred_check_branch
      %67 = sbr.rel (0) target = $region29
    $region28: #{tpu_custom_call.1} parent=1 // pred_region
      %68 = dma.done [#allocation5], 4096
    $region29: #{tpu_custom_call.1} parent=1 // pred_fallthru
      _
    // Predicated region
    $region30: #{tpu_custom_call.1} parent=1 // pred_check
      _
    $region31: #{tpu_custom_call.1} parent=1 // pred_check_branch
      %70 = sbr.rel (0) target = $region33
    $region32: #{tpu_custom_call.1} parent=1 // pred_region
      %71 = dma.done [#allocation8], 512
    $region33: #{tpu_custom_call.1} parent=1 // pred_fallthru
      _
    %v73 = vld [vmem:[#allocation2] sm:$0xf]
    %v74 = vld [vmem:[#allocation2 + $0x4] sm:$0xf]
    %v75 = vld [vmem:[#allocation2 + $0x8] sm:$0xf]
    %v76 = vld [vmem:[#allocation2 + $0xc] sm:$0xf]
    %v77 = vld [vmem:[#allocation2 + $0x10] sm:$0xf]
    %v78 = vld [vmem:[#allocation2 + $0x14] sm:$0xf]
    %v79 = vld [vmem:[#allocation2 + $0x18] sm:$0xf]
    %v80 = vld [vmem:[#allocation2 + $0x1c] sm:$0xf]
    %v81 = vld [vmem:[#allocation6] sm:$0xff]
    %v82 = vld [vmem:[#allocation6 + $0x8] sm:$0xff]
    %v83 = vld [vmem:[#allocation6 + $0x10] sm:$0xff]
    %v84 = vld [vmem:[#allocation6 + $0x18] sm:$0xff]
    %v85 = vld [vmem:[#allocation6 + $0x20] sm:$0xff]
    %v86 = vld [vmem:[#allocation6 + $0x28] sm:$0xff]
    %v87 = vld [vmem:[#allocation6 + $0x30] sm:$0xff]
    %v88 = vld [vmem:[#allocation6 + $0x38] sm:$0xff]
    %v89 = vld [vmem:[#allocation6 + $0x40] sm:$0xff]
    %v90 = vld [vmem:[#allocation6 + $0x48] sm:$0xff]
    %v91 = vld [vmem:[#allocation6 + $0x50] sm:$0xff]
    %v92 = vld [vmem:[#allocation6 + $0x58] sm:$0xff]
    %v93 = vld [vmem:[#allocation6 + $0x60] sm:$0xff]
    %v94 = vld [vmem:[#allocation6 + $0x68] sm:$0xff]
    %v95 = vld [vmem:[#allocation6 + $0x70] sm:$0xff]
    %v96 = vld [vmem:[#allocation6 + $0x78] sm:$0xff]
    %v97 = vld [vmem:[#allocation6 + $0x80] sm:$0xff]
    %v98 = vld [vmem:[#allocation6 + $0x88] sm:$0xff]
    %v99 = vld [vmem:[#allocation6 + $0x90] sm:$0xff]
    %v100 = vld [vmem:[#allocation6 + $0x98] sm:$0xff]
    %v101 = vld [vmem:[#allocation6 + $0xa0] sm:$0xff]
    %v102 = vld [vmem:[#allocation6 + $0xa8] sm:$0xff]
    %v103 = vld [vmem:[#allocation6 + $0xb0] sm:$0xff]
    %v104 = vld [vmem:[#allocation6 + $0xb8] sm:$0xff]
    %v105 = vld [vmem:[#allocation6 + $0xc0] sm:$0xff]
    %v106 = vld [vmem:[#allocation6 + $0xc8] sm:$0xff]
    %v107 = vld [vmem:[#allocation6 + $0xd0] sm:$0xff]
    %v108 = vld [vmem:[#allocation6 + $0xd8] sm:$0xff]
    %v109 = vld [vmem:[#allocation6 + $0xe0] sm:$0xff]
    %v110 = vld [vmem:[#allocation6 + $0xe8] sm:$0xff]
    %v111 = vld [vmem:[#allocation6 + $0xf0] sm:$0xff]
    %v112 = vld [vmem:[#allocation6 + $0xf8] sm:$0xff]
    %v121 = vunpack.c.l.b16 %v73
    %v122 = vunpack.c.l.b16 %v74
    %v123 = vunpack.c.l.b16 %v75
    %v124 = vunpack.c.l.b16 %v76
    %v125 = vunpack.c.l.b16 %v77
    %v126 = vunpack.c.l.b16 %v78
    %v127 = vunpack.c.l.b16 %v79
    %v128 = vunpack.c.l.b16 %v80
    %v129 = vpack.c.b16 %v122, %v121
    %v130 = vpack.c.b16 %v124, %v123
    %v131 = vpack.c.b16 %v126, %v125
    %v132 = vpack.c.b16 %v128, %v127
    %v169 = vunpack.c.l.b16 %v81
    %v170 = vunpack.c.h.b16 %v81
    %v171 = vunpack.c.l.b16 %v82
    %v172 = vunpack.c.h.b16 %v82
    %v173 = vunpack.c.l.b16 %v83
    %v174 = vunpack.c.h.b16 %v83
    %v175 = vunpack.c.l.b16 %v84
    %v176 = vunpack.c.h.b16 %v84
    %v177 = vunpack.c.l.b16 %v85
    %v178 = vunpack.c.h.b16 %v85
    %v179 = vunpack.c.l.b16 %v86
    %v180 = vunpack.c.h.b16 %v86
    %v181 = vunpack.c.l.b16 %v87
    %v182 = vunpack.c.h.b16 %v87
    %v183 = vunpack.c.l.b16 %v88
    %v184 = vunpack.c.h.b16 %v88
    %v185 = vunpack.c.l.b16 %v89
    %v186 = vunpack.c.h.b16 %v89
    %v187 = vunpack.c.l.b16 %v90
    %v188 = vunpack.c.h.b16 %v90
    %v189 = vunpack.c.l.b16 %v91
    %v190 = vunpack.c.h.b16 %v91
    %v191 = vunpack.c.l.b16 %v92
    %v192 = vunpack.c.h.b16 %v92
    %v193 = vunpack.c.l.b16 %v93
    %v194 = vunpack.c.h.b16 %v93
    %v195 = vunpack.c.l.b16 %v94
    %v196 = vunpack.c.h.b16 %v94
    %v197 = vunpack.c.l.b16 %v95
    %v198 = vunpack.c.h.b16 %v95
    %v199 = vunpack.c.l.b16 %v96
    %v200 = vunpack.c.h.b16 %v96
    %v201 = vunpack.c.l.b16 %v97
    %v202 = vunpack.c.h.b16 %v97
    %v203 = vunpack.c.l.b16 %v98
    %v204 = vunpack.c.h.b16 %v98
    %v205 = vunpack.c.l.b16 %v99
    %v206 = vunpack.c.h.b16 %v99
    %v207 = vunpack.c.l.b16 %v100
    %v208 = vunpack.c.h.b16 %v100
    %v209 = vunpack.c.l.b16 %v101
    %v210 = vunpack.c.h.b16 %v101
    %v211 = vunpack.c.l.b16 %v102
    %v212 = vunpack.c.h.b16 %v102
    %v213 = vunpack.c.l.b16 %v103
    %v214 = vunpack.c.h.b16 %v103
    %v215 = vunpack.c.l.b16 %v104
    %v216 = vunpack.c.h.b16 %v104
    %v217 = vunpack.c.l.b16 %v105
    %v218 = vunpack.c.h.b16 %v105
    %v219 = vunpack.c.l.b16 %v106
    %v220 = vunpack.c.h.b16 %v106
    %v221 = vunpack.c.l.b16 %v107
    %v222 = vunpack.c.h.b16 %v107
    %v223 = vunpack.c.l.b16 %v108
    %v224 = vunpack.c.h.b16 %v108
    %v225 = vunpack.c.l.b16 %v109
    %v226 = vunpack.c.h.b16 %v109
    %v227 = vunpack.c.l.b16 %v110
    %v228 = vunpack.c.h.b16 %v110
    %v229 = vunpack.c.l.b16 %v111
    %v230 = vunpack.c.h.b16 %v111
    %v231 = vunpack.c.l.b16 %v112
    %v232 = vunpack.c.h.b16 %v112
    %v233 = vpack.c.b16 %v173, %v169
    %v234 = vpack.c.b16 %v174, %v170
    %v235 = vpack.c.b16 %v175, %v171
    %v236 = vpack.c.b16 %v176, %v172
    %v237 = vpack.c.b16 %v181, %v177
    %v238 = vpack.c.b16 %v182, %v178
    %v239 = vpack.c.b16 %v183, %v179
    %v240 = vpack.c.b16 %v184, %v180
    %v241 = vpack.c.b16 %v189, %v185
    %v242 = vpack.c.b16 %v190, %v186
    %v243 = vpack.c.b16 %v191, %v187
    %v244 = vpack.c.b16 %v192, %v188
    %v245 = vpack.c.b16 %v197, %v193
    %v246 = vpack.c.b16 %v198, %v194
    %v247 = vpack.c.b16 %v199, %v195
    %v248 = vpack.c.b16 %v200, %v196
    %v249 = vpack.c.b16 %v205, %v201
    %v250 = vpack.c.b16 %v206, %v202
    %v251 = vpack.c.b16 %v207, %v203
    %v252 = vpack.c.b16 %v208, %v204
    %v253 = vpack.c.b16 %v213, %v209
    %v254 = vpack.c.b16 %v214, %v210
    %v255 = vpack.c.b16 %v215, %v211
    %v256 = vpack.c.b16 %v216, %v212
    %v257 = vpack.c.b16 %v221, %v217
    %v258 = vpack.c.b16 %v222, %v218
    %v259 = vpack.c.b16 %v223, %v219
    %v260 = vpack.c.b16 %v224, %v220
    %v261 = vpack.c.b16 %v229, %v225
    %v262 = vpack.c.b16 %v230, %v226
    %v263 = vpack.c.b16 %v231, %v227
    %v264 = vpack.c.b16 %v232, %v228
    %297 = vmatprep.subr.bf16.mxu0 %v262
    %298 = vmatpush1.bf16.msra.mxu0 %v261
    %299 = vmatprep.subr.bf16.mxu0 %v258
    %300 = vmatpush1.bf16.msra.mxu0 %v257
    %301 = vmatprep.subr.bf16.mxu0 %v254
    %302 = vmatpush1.bf16.msra.mxu0 %v253
    %303 = vmatprep.subr.bf16.mxu0 %v250
    %304 = vmatpush1.bf16.msra.mxu0 %v249
    %305 = vmatprep.subr.bf16.mxu0 %v246
    %306 = vmatpush1.bf16.msra.mxu0 %v245
    %307 = vmatprep.subr.bf16.mxu0 %v242
    %308 = vmatpush1.bf16.msra.mxu0 %v241
    %309 = vmatprep.subr.bf16.mxu0 %v238
    %310 = vmatpush1.bf16.msra.mxu0 %v237
    %311 = vmatprep.subr.bf16.mxu0 %v234
    %312 = vmatpush1.bf16.msra.mxu0 %v233
    %313 = vmatprep.subr.bf16.mxu0 0
    %314 = vmatpush2.bf16.msra.mxu0 0
    %315 = vmatprep.subr.bf16.mxu0 0
    %316 = vmatpush2.bf16.msra.mxu0 0
    %317 = vmatprep.subr.bf16.mxu0 0
    %318 = vmatpush2.bf16.msra.mxu0 0
    %319 = vmatprep.subr.bf16.mxu0 0
    %320 = vmatpush2.bf16.msra.mxu0 0
    %321 = vmatprep.subr.bf16.mxu0 0
    %322 = vmatpush2.bf16.msra.mxu0 0
    %323 = vmatprep.subr.bf16.mxu0 0
    %324 = vmatpush2.bf16.msra.mxu0 0
    %325 = vmatprep.subr.bf16.mxu0 0
    %326 = vmatpush2.bf16.msra.mxu0 0
    %327 = vmatprep.subr.bf16.mxu0 0
    %328 = vmatpush2.bf16.msra.mxu0 0
    %329 = vmatprep.mubr.bf16.mxu0 0
    %330 = vmatmul.mubr.bf16.gmra.mxu0 %v129
    %v331 = vpop.f32.mrf.mxu0
    %v332 = vadd.f32 0.0, %v331
    %v333 = vpop.f32.mrf.mxu0
    %v334 = vadd.f32 0.0, %v333
    %v335 = vpop.f32.mrf.mxu0
    %v336 = vadd.f32 0.0, %v335
    %v337 = vpop.f32.mrf.mxu0
    %v338 = vadd.f32 0.0, %v337
    %339 = vmatprep.mubr.bf16.mxu0 0
    %340 = vmatmul.mubr.bf16.gmra.mxu0 %v130
    %v341 = vpop.f32.mrf.mxu0
    %v342 = vadd.f32 0.0, %v341
    %v343 = vpop.f32.mrf.mxu0
    %v344 = vadd.f32 0.0, %v343
    %v345 = vpop.f32.mrf.mxu0
    %v346 = vadd.f32 0.0, %v345
    %v347 = vpop.f32.mrf.mxu0
    %v348 = vadd.f32 0.0, %v347
    %349 = vmatprep.mubr.bf16.mxu0 0
    %350 = vmatmul.mubr.bf16.gmra.mxu0 %v131
    %v351 = vpop.f32.mrf.mxu0
    %v352 = vadd.f32 0.0, %v351
    %v353 = vpop.f32.mrf.mxu0
    %v354 = vadd.f32 0.0, %v353
    %v355 = vpop.f32.mrf.mxu0
    %v356 = vadd.f32 0.0, %v355
    %v357 = vpop.f32.mrf.mxu0
    %v358 = vadd.f32 0.0, %v357
    %359 = vmatprep.mubr.bf16.mxu0 0
    %360 = vmatmul.mubr.bf16.gmra.mxu0 %v132
    %v361 = vpop.f32.mrf.mxu0
    %v362 = vadd.f32 0.0, %v361
    %v363 = vpop.f32.mrf.mxu0
    %v364 = vadd.f32 0.0, %v363
    %v365 = vpop.f32.mrf.mxu0
    %v366 = vadd.f32 0.0, %v365
    %v367 = vpop.f32.mrf.mxu0
    %v368 = vadd.f32 0.0, %v367
    %369 = vdwg.mxu0
    %370 = vmatprep.subr.bf16.mxu0 %v264
    %371 = vmatpush1.bf16.msra.mxu0 %v263
    %372 = vmatprep.subr.bf16.mxu0 %v260
    %373 = vmatpush1.bf16.msra.mxu0 %v259
    %374 = vmatprep.subr.bf16.mxu0 %v256
    %375 = vmatpush1.bf16.msra.mxu0 %v255
    %376 = vmatprep.subr.bf16.mxu0 %v252
    %377 = vmatpush1.bf16.msra.mxu0 %v251
    %378 = vmatprep.subr.bf16.mxu0 %v248
    %379 = vmatpush1.bf16.msra.mxu0 %v247
    %380 = vmatprep.subr.bf16.mxu0 %v244
    %381 = vmatpush1.bf16.msra.mxu0 %v243
    %382 = vmatprep.subr.bf16.mxu0 %v240
    %383 = vmatpush1.bf16.msra.mxu0 %v239
    %384 = vmatprep.subr.bf16.mxu0 %v236
    %385 = vmatpush1.bf16.msra.mxu0 %v235
    %386 = vmatprep.subr.bf16.mxu0 0
    %387 = vmatpush2.bf16.msra.mxu0 0
    %388 = vmatprep.subr.bf16.mxu0 0
    %389 = vmatpush2.bf16.msra.mxu0 0
    %390 = vmatprep.subr.bf16.mxu0 0
    %391 = vmatpush2.bf16.msra.mxu0 0
    %392 = vmatprep.subr.bf16.mxu0 0
    %393 = vmatpush2.bf16.msra.mxu0 0
    %394 = vmatprep.subr.bf16.mxu0 0
    %395 = vmatpush2.bf16.msra.mxu0 0
    %396 = vmatprep.subr.bf16.mxu0 0
    %397 = vmatpush2.bf16.msra.mxu0 0
    %398 = vmatprep.subr.bf16.mxu0 0
    %399 = vmatpush2.bf16.msra.mxu0 0
    %400 = vmatprep.subr.bf16.mxu0 0
    %401 = vmatpush2.bf16.msra.mxu0 0
    %402 = vmatprep.mubr.bf16.mxu0 0
    %403 = vmatmul.mubr.bf16.gmra.mxu0 %v129
    %v404 = vpop.f32.mrf.mxu0
    %v405 = vadd.f32 0.0, %v404
    %v406 = vpop.f32.mrf.mxu0
    %v407 = vadd.f32 0.0, %v406
    %v408 = vpop.f32.mrf.mxu0
    %v409 = vadd.f32 0.0, %v408
    %v410 = vpop.f32.mrf.mxu0
    %v411 = vadd.f32 0.0, %v410
    %412 = vmatprep.mubr.bf16.mxu0 0
    %413 = vmatmul.mubr.bf16.gmra.mxu0 %v130
    %v414 = vpop.f32.mrf.mxu0
    %v415 = vadd.f32 0.0, %v414
    %v416 = vpop.f32.mrf.mxu0
    %v417 = vadd.f32 0.0, %v416
    %v418 = vpop.f32.mrf.mxu0
    %v419 = vadd.f32 0.0, %v418
    %v420 = vpop.f32.mrf.mxu0
    %v421 = vadd.f32 0.0, %v420
    %422 = vmatprep.mubr.bf16.mxu0 0
    %423 = vmatmul.mubr.bf16.gmra.mxu0 %v131
    %v424 = vpop.f32.mrf.mxu0
    %v425 = vadd.f32 0.0, %v424
    %v426 = vpop.f32.mrf.mxu0
    %v427 = vadd.f32 0.0, %v426
    %v428 = vpop.f32.mrf.mxu0
    %v429 = vadd.f32 0.0, %v428
    %v430 = vpop.f32.mrf.mxu0
    %v431 = vadd.f32 0.0, %v430
    %432 = vmatprep.mubr.bf16.mxu0 0
    %433 = vmatmul.mubr.bf16.gmra.mxu0 %v132
    %v434 = vpop.f32.mrf.mxu0
    %v435 = vadd.f32 0.0, %v434
    %v436 = vpop.f32.mrf.mxu0
    %v437 = vadd.f32 0.0, %v436
    %v438 = vpop.f32.mrf.mxu0
    %v439 = vadd.f32 0.0, %v438
    %v440 = vpop.f32.mrf.mxu0
    %v441 = vadd.f32 0.0, %v440
    %442 = vdwg.mxu0
    %v443 = vld [vmem:[#allocation4] sm:$0xf]
    %v444 = vld [vmem:[#allocation4 + $0x4] sm:$0xf]
    %v445 = vld [vmem:[#allocation4 + $0x8] sm:$0xf]
    %v446 = vld [vmem:[#allocation4 + $0xc] sm:$0xf]
    %v447 = vld [vmem:[#allocation4 + $0x10] sm:$0xf]
    %v448 = vld [vmem:[#allocation4 + $0x14] sm:$0xf]
    %v449 = vld [vmem:[#allocation4 + $0x18] sm:$0xf]
    %v450 = vld [vmem:[#allocation4 + $0x1c] sm:$0xf]
    %v451 = vld [vmem:[#allocation7] sm:$0xf]
    %v452 = vld [vmem:[#allocation7 + $0x4] sm:$0xf]
    %v453 = vld [vmem:[#allocation7 + $0x8] sm:$0xf]
    %v454 = vld [vmem:[#allocation7 + $0xc] sm:$0xf]
    %v455 = vld [vmem:[#allocation7 + $0x10] sm:$0xf]
    %v456 = vld [vmem:[#allocation7 + $0x14] sm:$0xf]
    %v457 = vld [vmem:[#allocation7 + $0x18] sm:$0xf]
    %v458 = vld [vmem:[#allocation7 + $0x1c] sm:$0xf]
    %v459 = vunpack.c.l.bf16 %v451
    %v460 = vunpack.c.l.bf16 %v452
    %v461 = vunpack.c.l.bf16 %v453
    %v462 = vunpack.c.l.bf16 %v454
    %v463 = vunpack.c.l.bf16 %v455
    %v464 = vunpack.c.l.bf16 %v456
    %v465 = vunpack.c.l.bf16 %v457
    %v466 = vunpack.c.l.bf16 %v458
    %v467 = vpack.c.bf16 %v332, %v332
    %v468 = vpack.c.bf16 %v336, %v336
    %v469 = vpack.c.bf16 %v342, %v342
    %v470 = vpack.c.bf16 %v346, %v346
    %v471 = vpack.c.bf16 %v352, %v352
    %v472 = vpack.c.bf16 %v356, %v356
    %v473 = vpack.c.bf16 %v362, %v362
    %v474 = vpack.c.bf16 %v366, %v366
    %475 = vmatprep.subr.bf16.mxu0 0
    %476 = vmatpush1.bf16.xpose.msra.mxu0 0
    %477 = vmatprep.subr.bf16.mxu0 0
    %478 = vmatpush1.bf16.xpose.msra.mxu0 0
    %479 = vmatprep.subr.bf16.mxu0 0
    %480 = vmatpush1.bf16.xpose.msra.mxu0 0
    %481 = vmatprep.subr.bf16.mxu0 0
    %482 = vmatpush1.bf16.xpose.msra.mxu0 0
    %483 = vmatprep.subr.bf16.mxu0 0
    %484 = vmatpush1.bf16.xpose.msra.mxu0 0
    %485 = vmatprep.subr.bf16.mxu0 0
    %486 = vmatpush1.bf16.xpose.msra.mxu0 0
    %487 = vmatprep.subr.bf16.mxu0 0
    %488 = vmatpush1.bf16.xpose.msra.mxu0 0
    %489 = vmatprep.subr.bf16.mxu0 0
    %490 = vmatpush1.bf16.xpose.msra.mxu0 %v443
    %491 = vmatprep.subr.bf16.mxu0 0
    %492 = vmatpush2.bf16.xpose.msra.mxu0 0
    %493 = vmatprep.subr.bf16.mxu0 0
    %494 = vmatpush2.bf16.xpose.msra.mxu0 0
    %495 = vmatprep.subr.bf16.mxu0 0
    %496 = vmatpush2.bf16.xpose.msra.mxu0 0
    %497 = vmatprep.subr.bf16.mxu0 0
    %498 = vmatpush2.bf16.xpose.msra.mxu0 0
    %499 = vmatprep.subr.bf16.mxu0 0
    %500 = vmatpush2.bf16.xpose.msra.mxu0 0
    %501 = vmatprep.subr.bf16.mxu0 0
    %502 = vmatpush2.bf16.xpose.msra.mxu0 0
    %503 = vmatprep.subr.bf16.mxu0 0
    %504 = vmatpush2.bf16.xpose.msra.mxu0 0
    %505 = vmatprep.subr.bf16.mxu0 0
    %506 = vmatpush2.bf16.xpose.msra.mxu0 0
    %507 = vmatprep.mubr.bf16.mxu0 0
    %508 = vmatmul.mubr.bf16.gmra.mxu0 %v467
    %v509 = vpop.f32.mrf.mxu0
    %v510 = vadd.f32 %v459, %v509
    %v511 = vpop.f32.mrf.mxu0
    %v512 = vpop.f32.mrf.mxu0
    %v513 = vpop.f32.mrf.mxu0
    %514 = vdwg.mxu0
    %515 = vmatprep.subr.bf16.mxu0 0
    %516 = vmatpush1.bf16.xpose.msra.mxu0 0
    %517 = vmatprep.subr.bf16.mxu0 0
    %518 = vmatpush1.bf16.xpose.msra.mxu0 0
    %519 = vmatprep.subr.bf16.mxu0 0
    %520 = vmatpush1.bf16.xpose.msra.mxu0 0
    %521 = vmatprep.subr.bf16.mxu0 0
    %522 = vmatpush1.bf16.xpose.msra.mxu0 0
    %523 = vmatprep.subr.bf16.mxu0 0
    %524 = vmatpush1.bf16.xpose.msra.mxu0 0
    %525 = vmatprep.subr.bf16.mxu0 0
    %526 = vmatpush1.bf16.xpose.msra.mxu0 0
    %527 = vmatprep.subr.bf16.mxu0 0
    %528 = vmatpush1.bf16.xpose.msra.mxu0 0
    %529 = vmatprep.subr.bf16.mxu0 0
    %530 = vmatpush1.bf16.xpose.msra.mxu0 %v444
    %531 = vmatprep.subr.bf16.mxu0 0
    %532 = vmatpush2.bf16.xpose.msra.mxu0 0
    %533 = vmatprep.subr.bf16.mxu0 0
    %534 = vmatpush2.bf16.xpose.msra.mxu0 0
    %535 = vmatprep.subr.bf16.mxu0 0
    %536 = vmatpush2.bf16.xpose.msra.mxu0 0
    %537 = vmatprep.subr.bf16.mxu0 0
    %538 = vmatpush2.bf16.xpose.msra.mxu0 0
    %539 = vmatprep.subr.bf16.mxu0 0
    %540 = vmatpush2.bf16.xpose.msra.mxu0 0
    %541 = vmatprep.subr.bf16.mxu0 0
    %542 = vmatpush2.bf16.xpose.msra.mxu0 0
    %543 = vmatprep.subr.bf16.mxu0 0
    %544 = vmatpush2.bf16.xpose.msra.mxu0 0
    %545 = vmatprep.subr.bf16.mxu0 0
    %546 = vmatpush2.bf16.xpose.msra.mxu0 0
    %547 = vmatprep.mubr.bf16.mxu0 0
    %548 = vmatmul.mubr.bf16.gmra.mxu0 %v468
    %v549 = vpop.f32.mrf.mxu0
    %v550 = vadd.f32 %v460, %v549
    %v551 = vpop.f32.mrf.mxu0
    %v552 = vpop.f32.mrf.mxu0
    %v553 = vpop.f32.mrf.mxu0
    %554 = vdwg.mxu0
    %555 = vmatprep.subr.bf16.mxu0 0
    %556 = vmatpush1.bf16.xpose.msra.mxu0 0
    %557 = vmatprep.subr.bf16.mxu0 0
    %558 = vmatpush1.bf16.xpose.msra.mxu0 0
    %559 = vmatprep.subr.bf16.mxu0 0
    %560 = vmatpush1.bf16.xpose.msra.mxu0 0
    %561 = vmatprep.subr.bf16.mxu0 0
    %562 = vmatpush1.bf16.xpose.msra.mxu0 0
    %563 = vmatprep.subr.bf16.mxu0 0
    %564 = vmatpush1.bf16.xpose.msra.mxu0 0
    %565 = vmatprep.subr.bf16.mxu0 0
    %566 = vmatpush1.bf16.xpose.msra.mxu0 0
    %567 = vmatprep.subr.bf16.mxu0 0
    %568 = vmatpush1.bf16.xpose.msra.mxu0 0
    %569 = vmatprep.subr.bf16.mxu0 0
    %570 = vmatpush1.bf16.xpose.msra.mxu0 %v445
    %571 = vmatprep.subr.bf16.mxu0 0
    %572 = vmatpush2.bf16.xpose.msra.mxu0 0
    %573 = vmatprep.subr.bf16.mxu0 0
    %574 = vmatpush2.bf16.xpose.msra.mxu0 0
    %575 = vmatprep.subr.bf16.mxu0 0
    %576 = vmatpush2.bf16.xpose.msra.mxu0 0
    %577 = vmatprep.subr.bf16.mxu0 0
    %578 = vmatpush2.bf16.xpose.msra.mxu0 0
    %579 = vmatprep.subr.bf16.mxu0 0
    %580 = vmatpush2.bf16.xpose.msra.mxu0 0
    %581 = vmatprep.subr.bf16.mxu0 0
    %582 = vmatpush2.bf16.xpose.msra.mxu0 0
    %583 = vmatprep.subr.bf16.mxu0 0
    %584 = vmatpush2.bf16.xpose.msra.mxu0 0
    %585 = vmatprep.subr.bf16.mxu0 0
    %586 = vmatpush2.bf16.xpose.msra.mxu0 0
    %587 = vmatprep.mubr.bf16.mxu0 0
    %588 = vmatmul.mubr.bf16.gmra.mxu0 %v469
    %v589 = vpop.f32.mrf.mxu0
    %v590 = vadd.f32 %v461, %v589
    %v591 = vpop.f32.mrf.mxu0
    %v592 = vpop.f32.mrf.mxu0
    %v593 = vpop.f32.mrf.mxu0
    %594 = vdwg.mxu0
    %595 = vmatprep.subr.bf16.mxu0 0
    %596 = vmatpush1.bf16.xpose.msra.mxu0 0
    %597 = vmatprep.subr.bf16.mxu0 0
    %598 = vmatpush1.bf16.xpose.msra.mxu0 0
    %599 = vmatprep.subr.bf16.mxu0 0
    %600 = vmatpush1.bf16.xpose.msra.mxu0 0
    %601 = vmatprep.subr.bf16.mxu0 0
    %602 = vmatpush1.bf16.xpose.msra.mxu0 0
    %603 = vmatprep.subr.bf16.mxu0 0
    %604 = vmatpush1.bf16.xpose.msra.mxu0 0
    %605 = vmatprep.subr.bf16.mxu0 0
    %606 = vmatpush1.bf16.xpose.msra.mxu0 0
    %607 = vmatprep.subr.bf16.mxu0 0
    %608 = vmatpush1.bf16.xpose.msra.mxu0 0
    %609 = vmatprep.subr.bf16.mxu0 0
    %610 = vmatpush1.bf16.xpose.msra.mxu0 %v446
    %611 = vmatprep.subr.bf16.mxu0 0
    %612 = vmatpush2.bf16.xpose.msra.mxu0 0
    %613 = vmatprep.subr.bf16.mxu0 0
    %614 = vmatpush2.bf16.xpose.msra.mxu0 0
    %615 = vmatprep.subr.bf16.mxu0 0
    %616 = vmatpush2.bf16.xpose.msra.mxu0 0
    %617 = vmatprep.subr.bf16.mxu0 0
    %618 = vmatpush2.bf16.xpose.msra.mxu0 0
    %619 = vmatprep.subr.bf16.mxu0 0
    %620 = vmatpush2.bf16.xpose.msra.mxu0 0
    %621 = vmatprep.subr.bf16.mxu0 0
    %622 = vmatpush2.bf16.xpose.msra.mxu0 0
    %623 = vmatprep.subr.bf16.mxu0 0
    %624 = vmatpush2.bf16.xpose.msra.mxu0 0
    %625 = vmatprep.subr.bf16.mxu0 0
    %626 = vmatpush2.bf16.xpose.msra.mxu0 0
    %627 = vmatprep.mubr.bf16.mxu0 0
    %628 = vmatmul.mubr.bf16.gmra.mxu0 %v470
    %v629 = vpop.f32.mrf.mxu0
    %v630 = vadd.f32 %v462, %v629
    %v631 = vpop.f32.mrf.mxu0
    %v632 = vpop.f32.mrf.mxu0
    %v633 = vpop.f32.mrf.mxu0
    %634 = vdwg.mxu0
    %635 = vmatprep.subr.bf16.mxu0 0
    %636 = vmatpush1.bf16.xpose.msra.mxu0 0
    %637 = vmatprep.subr.bf16.mxu0 0
    %638 = vmatpush1.bf16.xpose.msra.mxu0 0
    %639 = vmatprep.subr.bf16.mxu0 0
    %640 = vmatpush1.bf16.xpose.msra.mxu0 0
    %641 = vmatprep.subr.bf16.mxu0 0
    %642 = vmatpush1.bf16.xpose.msra.mxu0 0
    %643 = vmatprep.subr.bf16.mxu0 0
    %644 = vmatpush1.bf16.xpose.msra.mxu0 0
    %645 = vmatprep.subr.bf16.mxu0 0
    %646 = vmatpush1.bf16.xpose.msra.mxu0 0
    %647 = vmatprep.subr.bf16.mxu0 0
    %648 = vmatpush1.bf16.xpose.msra.mxu0 0
    %649 = vmatprep.subr.bf16.mxu0 0
    %650 = vmatpush1.bf16.xpose.msra.mxu0 %v447
    %651 = vmatprep.subr.bf16.mxu0 0
    %652 = vmatpush2.bf16.xpose.msra.mxu0 0
    %653 = vmatprep.subr.bf16.mxu0 0
    %654 = vmatpush2.bf16.xpose.msra.mxu0 0
    %655 = vmatprep.subr.bf16.mxu0 0
    %656 = vmatpush2.bf16.xpose.msra.mxu0 0
    %657 = vmatprep.subr.bf16.mxu0 0
    %658 = vmatpush2.bf16.xpose.msra.mxu0 0
    %659 = vmatprep.subr.bf16.mxu0 0
    %660 = vmatpush2.bf16.xpose.msra.mxu0 0
    %661 = vmatprep.subr.bf16.mxu0 0
    %662 = vmatpush2.bf16.xpose.msra.mxu0 0
    %663 = vmatprep.subr.bf16.mxu0 0
    %664 = vmatpush2.bf16.xpose.msra.mxu0 0
    %665 = vmatprep.subr.bf16.mxu0 0
    %666 = vmatpush2.bf16.xpose.msra.mxu0 0
    %667 = vmatprep.mubr.bf16.mxu0 0
    %668 = vmatmul.mubr.bf16.gmra.mxu0 %v471
    %v669 = vpop.f32.mrf.mxu0
    %v670 = vadd.f32 %v463, %v669
    %v671 = vpop.f32.mrf.mxu0
    %v672 = vpop.f32.mrf.mxu0
    %v673 = vpop.f32.mrf.mxu0
    %674 = vdwg.mxu0
    %675 = vmatprep.subr.bf16.mxu0 0
    %676 = vmatpush1.bf16.xpose.msra.mxu0 0
    %677 = vmatprep.subr.bf16.mxu0 0
    %678 = vmatpush1.bf16.xpose.msra.mxu0 0
    %679 = vmatprep.subr.bf16.mxu0 0
    %680 = vmatpush1.bf16.xpose.msra.mxu0 0
    %681 = vmatprep.subr.bf16.mxu0 0
    %682 = vmatpush1.bf16.xpose.msra.mxu0 0
    %683 = vmatprep.subr.bf16.mxu0 0
    %684 = vmatpush1.bf16.xpose.msra.mxu0 0
    %685 = vmatprep.subr.bf16.mxu0 0
    %686 = vmatpush1.bf16.xpose.msra.mxu0 0
    %687 = vmatprep.subr.bf16.mxu0 0
    %688 = vmatpush1.bf16.xpose.msra.mxu0 0
    %689 = vmatprep.subr.bf16.mxu0 0
    %690 = vmatpush1.bf16.xpose.msra.mxu0 %v448
    %691 = vmatprep.subr.bf16.mxu0 0
    %692 = vmatpush2.bf16.xpose.msra.mxu0 0
    %693 = vmatprep.subr.bf16.mxu0 0
    %694 = vmatpush2.bf16.xpose.msra.mxu0 0
    %695 = vmatprep.subr.bf16.mxu0 0
    %696 = vmatpush2.bf16.xpose.msra.mxu0 0
    %697 = vmatprep.subr.bf16.mxu0 0
    %698 = vmatpush2.bf16.xpose.msra.mxu0 0
    %699 = vmatprep.subr.bf16.mxu0 0
    %700 = vmatpush2.bf16.xpose.msra.mxu0 0
    %701 = vmatprep.subr.bf16.mxu0 0
    %702 = vmatpush2.bf16.xpose.msra.mxu0 0
    %703 = vmatprep.subr.bf16.mxu0 0
    %704 = vmatpush2.bf16.xpose.msra.mxu0 0
    %705 = vmatprep.subr.bf16.mxu0 0
    %706 = vmatpush2.bf16.xpose.msra.mxu0 0
    %707 = vmatprep.mubr.bf16.mxu0 0
    %708 = vmatmul.mubr.bf16.gmra.mxu0 %v472
    %v709 = vpop.f32.mrf.mxu0
    %v710 = vadd.f32 %v464, %v709
    %v711 = vpop.f32.mrf.mxu0
    %v712 = vpop.f32.mrf.mxu0
    %v713 = vpop.f32.mrf.mxu0
    %714 = vdwg.mxu0
    %715 = vmatprep.subr.bf16.mxu0 0
    %716 = vmatpush1.bf16.xpose.msra.mxu0 0
    %717 = vmatprep.subr.bf16.mxu0 0
    %718 = vmatpush1.bf16.xpose.msra.mxu0 0
    %719 = vmatprep.subr.bf16.mxu0 0
    %720 = vmatpush1.bf16.xpose.msra.mxu0 0
    %721 = vmatprep.subr.bf16.mxu0 0
    %722 = vmatpush1.bf16.xpose.msra.mxu0 0
    %723 = vmatprep.subr.bf16.mxu0 0
    %724 = vmatpush1.bf16.xpose.msra.mxu0 0
    %725 = vmatprep.subr.bf16.mxu0 0
    %726 = vmatpush1.bf16.xpose.msra.mxu0 0
    %727 = vmatprep.subr.bf16.mxu0 0
    %728 = vmatpush1.bf16.xpose.msra.mxu0 0
    %729 = vmatprep.subr.bf16.mxu0 0
    %730 = vmatpush1.bf16.xpose.msra.mxu0 %v449
    %731 = vmatprep.subr.bf16.mxu0 0
    %732 = vmatpush2.bf16.xpose.msra.mxu0 0
    %733 = vmatprep.subr.bf16.mxu0 0
    %734 = vmatpush2.bf16.xpose.msra.mxu0 0
    %735 = vmatprep.subr.bf16.mxu0 0
    %736 = vmatpush2.bf16.xpose.msra.mxu0 0
    %737 = vmatprep.subr.bf16.mxu0 0
    %738 = vmatpush2.bf16.xpose.msra.mxu0 0
    %739 = vmatprep.subr.bf16.mxu0 0
    %740 = vmatpush2.bf16.xpose.msra.mxu0 0
    %741 = vmatprep.subr.bf16.mxu0 0
    %742 = vmatpush2.bf16.xpose.msra.mxu0 0
    %743 = vmatprep.subr.bf16.mxu0 0
    %744 = vmatpush2.bf16.xpose.msra.mxu0 0
    %745 = vmatprep.subr.bf16.mxu0 0
    %746 = vmatpush2.bf16.xpose.msra.mxu0 0
    %747 = vmatprep.mubr.bf16.mxu0 0
    %748 = vmatmul.mubr.bf16.gmra.mxu0 %v473
    %v749 = vpop.f32.mrf.mxu0
    %v750 = vadd.f32 %v465, %v749
    %v751 = vpop.f32.mrf.mxu0
    %v752 = vpop.f32.mrf.mxu0
    %v753 = vpop.f32.mrf.mxu0
    %754 = vdwg.mxu0
    %755 = vmatprep.subr.bf16.mxu0 0
    %756 = vmatpush1.bf16.xpose.msra.mxu0 0
    %757 = vmatprep.subr.bf16.mxu0 0
    %758 = vmatpush1.bf16.xpose.msra.mxu0 0
    %759 = vmatprep.subr.bf16.mxu0 0
    %760 = vmatpush1.bf16.xpose.msra.mxu0 0
    %761 = vmatprep.subr.bf16.mxu0 0
    %762 = vmatpush1.bf16.xpose.msra.mxu0 0
    %763 = vmatprep.subr.bf16.mxu0 0
    %764 = vmatpush1.bf16.xpose.msra.mxu0 0
    %765 = vmatprep.subr.bf16.mxu0 0
    %766 = vmatpush1.bf16.xpose.msra.mxu0 0
    %767 = vmatprep.subr.bf16.mxu0 0
    %768 = vmatpush1.bf16.xpose.msra.mxu0 0
    %769 = vmatprep.subr.bf16.mxu0 0
    %770 = vmatpush1.bf16.xpose.msra.mxu0 %v450
    %771 = vmatprep.subr.bf16.mxu0 0
    %772 = vmatpush2.bf16.xpose.msra.mxu0 0
    %773 = vmatprep.subr.bf16.mxu0 0
    %774 = vmatpush2.bf16.xpose.msra.mxu0 0
    %775 = vmatprep.subr.bf16.mxu0 0
    %776 = vmatpush2.bf16.xpose.msra.mxu0 0
    %777 = vmatprep.subr.bf16.mxu0 0
    %778 = vmatpush2.bf16.xpose.msra.mxu0 0
    %779 = vmatprep.subr.bf16.mxu0 0
    %780 = vmatpush2.bf16.xpose.msra.mxu0 0
    %781 = vmatprep.subr.bf16.mxu0 0
    %782 = vmatpush2.bf16.xpose.msra.mxu0 0
    %783 = vmatprep.subr.bf16.mxu0 0
    %784 = vmatpush2.bf16.xpose.msra.mxu0 0
    %785 = vmatprep.subr.bf16.mxu0 0
    %786 = vmatpush2.bf16.xpose.msra.mxu0 0
    %787 = vmatprep.mubr.bf16.mxu0 0
    %788 = vmatmul.mubr.bf16.gmra.mxu0 %v474
    %v789 = vpop.f32.mrf.mxu0
    %v790 = vadd.f32 %v466, %v789
    %v791 = vpop.f32.mrf.mxu0
    %v792 = vpop.f32.mrf.mxu0
    %v793 = vpop.f32.mrf.mxu0
    %794 = vdwg.mxu0
    %vm795 = vcmask 64512
    %v796 = vsel %vm795, %v510, -inf
    %797 = vmax.xlane.f32.xlu0 %v796
    %v798 = vpop.xlane.xlu0 %797
    %v799 = vsel %vm795, %v550, -inf
    %800 = vmax.xlane.f32.xlu0 %v799
    %v801 = vpop.xlane.xlu0 %800
    %v802 = vsel %vm795, %v590, -inf
    %803 = vmax.xlane.f32.xlu0 %v802
    %v804 = vpop.xlane.xlu0 %803
    %v805 = vsel %vm795, %v630, -inf
    %806 = vmax.xlane.f32.xlu0 %v805
    %v807 = vpop.xlane.xlu0 %806
    %v808 = vsel %vm795, %v670, -inf
    %809 = vmax.xlane.f32.xlu0 %v808
    %v810 = vpop.xlane.xlu0 %809
    %v811 = vsel %vm795, %v710, -inf
    %812 = vmax.xlane.f32.xlu0 %v811
    %v813 = vpop.xlane.xlu0 %812
    %v814 = vsel %vm795, %v750, -inf
    %815 = vmax.xlane.f32.xlu0 %v814
    %v816 = vpop.xlane.xlu0 %815
    %v817 = vsel %vm795, %v790, -inf
    %818 = vmax.xlane.f32.xlu0 %v817
    %v819 = vpop.xlane.xlu0 %818
    %v820 = vrot.slane %v798, 4
    %v821 = vmax.f32 %v798, %v820
    %v822 = vrot.slane %v821, 2
    %v823 = vmax.f32 %v821, %v822
    %v824 = vrot.slane %v823, 1
    %v825 = vmax.f32 %v823, %v824
    %v826 = vrot.slane %v801, 4
    %v827 = vmax.f32 %v801, %v826
    %v828 = vrot.slane %v827, 2
    %v829 = vmax.f32 %v827, %v828
    %v830 = vrot.slane %v829, 1
    %v831 = vmax.f32 %v829, %v830
    %v832 = vrot.slane %v804, 4
    %v833 = vmax.f32 %v804, %v832
    %v834 = vrot.slane %v833, 2
    %v835 = vmax.f32 %v833, %v834
    %v836 = vrot.slane %v835, 1
    %v837 = vmax.f32 %v835, %v836
    %v838 = vrot.slane %v807, 4
    %v839 = vmax.f32 %v807, %v838
    %v840 = vrot.slane %v839, 2
    %v841 = vmax.f32 %v839, %v840
    %v842 = vrot.slane %v841, 1
    %v843 = vmax.f32 %v841, %v842
    %v844 = vrot.slane %v810, 4
    %v845 = vmax.f32 %v810, %v844
    %v846 = vrot.slane %v845, 2
    %v847 = vmax.f32 %v845, %v846
    %v848 = vrot.slane %v847, 1
    %v849 = vmax.f32 %v847, %v848
    %v850 = vrot.slane %v813, 4
    %v851 = vmax.f32 %v813, %v850
    %v852 = vrot.slane %v851, 2
    %v853 = vmax.f32 %v851, %v852
    %v854 = vrot.slane %v853, 1
    %v855 = vmax.f32 %v853, %v854
    %v856 = vrot.slane %v816, 4
    %v857 = vmax.f32 %v816, %v856
    %v858 = vrot.slane %v857, 2
    %v859 = vmax.f32 %v857, %v858
    %v860 = vrot.slane %v859, 1
    %v861 = vmax.f32 %v859, %v860
    %v862 = vrot.slane %v819, 4
    %v863 = vmax.f32 %v819, %v862
    %v864 = vrot.slane %v863, 2
    %v865 = vmax.f32 %v863, %v864
    %v866 = vrot.slane %v865, 1
    %v867 = vmax.f32 %v865, %v866
    %vm868 = vweird.f32 %v825
    %vm869 = vweird.f32 %v831
    %vm870 = vweird.f32 %v837
    %vm871 = vweird.f32 %v843
    %vm872 = vweird.f32 %v849
    %vm873 = vweird.f32 %v855
    %vm874 = vweird.f32 %v861
    %vm875 = vweird.f32 %v867
    %vm876 = vmxor %vm868, 1
    %vm877 = vmxor %vm869, 1
    %vm878 = vmxor %vm870, 1
    %vm879 = vmxor %vm871, 1
    %vm880 = vmxor %vm872, 1
    %vm881 = vmxor %vm873, 1
    %vm882 = vmxor %vm874, 1
    %vm883 = vmxor %vm875, 1
    %v884 = vsel %vm876, %v825, 0.0
    %v885 = vsel %vm877, %v831, 0.0
    %v886 = vsel %vm878, %v837, 0.0
    %v887 = vsel %vm879, %v843, 0.0
    %v888 = vsel %vm880, %v849, 0.0
    %v889 = vsel %vm881, %v855, 0.0
    %v890 = vsel %vm882, %v861, 0.0
    %v891 = vsel %vm883, %v867, 0.0
    %v892 = vsub.f32 %v510, %v884
    %v893 = vsub.f32 %v550, %v885
    %v894 = vsub.f32 %v590, %v886
    %v895 = vsub.f32 %v630, %v887
    %v896 = vsub.f32 %v670, %v888
    %v897 = vsub.f32 %v710, %v889
    %v898 = vsub.f32 %v750, %v890
    %v899 = vsub.f32 %v790, %v891
    %v900 = vmul.f32 %v892, 1.442695
    %v901 = vpow.pop %v900
    %v902 = vmul.f32 %v893, 1.442695
    %v903 = vpow.pop %v902
    %v904 = vmul.f32 %v894, 1.442695
    %v905 = vpow.pop %v904
    %v906 = vmul.f32 %v895, 1.442695
    %v907 = vpow.pop %v906
    %v908 = vmul.f32 %v896, 1.442695
    %v909 = vpow.pop %v908
    %v910 = vmul.f32 %v897, 1.442695
    %v911 = vpow.pop %v910
    %v912 = vmul.f32 %v898, 1.442695
    %v913 = vpow.pop %v912
    %v914 = vmul.f32 %v899, 1.442695
    %v915 = vpow.pop %v914
    %v916 = vsel %vm795, %v901, 0.0
    %917 = vadd.xlane.f32.xlu0 %v916
    %v918 = vpop.xlane.xlu0 %917
    %v919 = vsel %vm795, %v903, 0.0
    %920 = vadd.xlane.f32.xlu0 %v919
    %v921 = vpop.xlane.xlu0 %920
    %v922 = vsel %vm795, %v905, 0.0
    %923 = vadd.xlane.f32.xlu0 %v922
    %v924 = vpop.xlane.xlu0 %923
    %v925 = vsel %vm795, %v907, 0.0
    %926 = vadd.xlane.f32.xlu0 %v925
    %v927 = vpop.xlane.xlu0 %926
    %v928 = vsel %vm795, %v909, 0.0
    %929 = vadd.xlane.f32.xlu0 %v928
    %v930 = vpop.xlane.xlu0 %929
    %v931 = vsel %vm795, %v911, 0.0
    %932 = vadd.xlane.f32.xlu0 %v931
    %v933 = vpop.xlane.xlu0 %932
    %v934 = vsel %vm795, %v913, 0.0
    %935 = vadd.xlane.f32.xlu0 %v934
    %v936 = vpop.xlane.xlu0 %935
    %v937 = vsel %vm795, %v915, 0.0
    %938 = vadd.xlane.f32.xlu0 %v937
    %v939 = vpop.xlane.xlu0 %938
    %v940 = vrot.slane %v918, 4
    %v941 = vadd.f32 %v918, %v940
    %v942 = vrot.slane %v941, 2
    %v943 = vadd.f32 %v941, %v942
    %v944 = vrot.slane %v943, 1
    %v945 = vadd.f32 %v943, %v944
    %v946 = vrot.slane %v921, 4
    %v947 = vadd.f32 %v921, %v946
    %v948 = vrot.slane %v947, 2
    %v949 = vadd.f32 %v947, %v948
    %v950 = vrot.slane %v949, 1
    %v951 = vadd.f32 %v949, %v950
    %v952 = vrot.slane %v924, 4
    %v953 = vadd.f32 %v924, %v952
    %v954 = vrot.slane %v953, 2
    %v955 = vadd.f32 %v953, %v954
    %v956 = vrot.slane %v955, 1
    %v957 = vadd.f32 %v955, %v956
    %v958 = vrot.slane %v927, 4
    %v959 = vadd.f32 %v927, %v958
    %v960 = vrot.slane %v959, 2
    %v961 = vadd.f32 %v959, %v960
    %v962 = vrot.slane %v961, 1
    %v963 = vadd.f32 %v961, %v962
    %v964 = vrot.slane %v930, 4
    %v965 = vadd.f32 %v930, %v964
    %v966 = vrot.slane %v965, 2
    %v967 = vadd.f32 %v965, %v966
    %v968 = vrot.slane %v967, 1
    %v969 = vadd.f32 %v967, %v968
    %v970 = vrot.slane %v933, 4
    %v971 = vadd.f32 %v933, %v970
    %v972 = vrot.slane %v971, 2
    %v973 = vadd.f32 %v971, %v972
    %v974 = vrot.slane %v973, 1
    %v975 = vadd.f32 %v973, %v974
    %v976 = vrot.slane %v936, 4
    %v977 = vadd.f32 %v936, %v976
    %v978 = vrot.slane %v977, 2
    %v979 = vadd.f32 %v977, %v978
    %v980 = vrot.slane %v979, 1
    %v981 = vadd.f32 %v979, %v980
    %v982 = vrot.slane %v939, 4
    %v983 = vadd.f32 %v939, %v982
    %v984 = vrot.slane %v983, 2
    %v985 = vadd.f32 %v983, %v984
    %v986 = vrot.slane %v985, 1
    %v987 = vadd.f32 %v985, %v986
    %v988 = vlog2.pop %v945
    %v989 = vmul.f32 %v988, 0.6931472
    %v990 = vlog2.pop %v951
    %v991 = vmul.f32 %v990, 0.6931472
    %v992 = vlog2.pop %v957
    %v993 = vmul.f32 %v992, 0.6931472
    %v994 = vlog2.pop %v963
    %v995 = vmul.f32 %v994, 0.6931472
    %v996 = vlog2.pop %v969
    %v997 = vmul.f32 %v996, 0.6931472
    %v998 = vlog2.pop %v975
    %v999 = vmul.f32 %v998, 0.6931472
    %v1000 = vlog2.pop %v981
    %v1001 = vmul.f32 %v1000, 0.6931472
    %v1002 = vlog2.pop %v987
    %v1003 = vmul.f32 %v1002, 0.6931472
    %v1004 = vadd.f32 %v884, %v989
    %v1005 = vadd.f32 %v885, %v991
    %v1006 = vadd.f32 %v886, %v993
    %v1007 = vadd.f32 %v887, %v995
    %v1008 = vadd.f32 %v888, %v997
    %v1009 = vadd.f32 %v889, %v999
    %v1010 = vadd.f32 %v890, %v1001
    %v1011 = vadd.f32 %v891, %v1003
    %v1012 = vpack.c.bf16 %v334, %v334
    %v1013 = vpack.c.bf16 %v338, %v338
    %v1014 = vpack.c.bf16 %v344, %v344
    %v1015 = vpack.c.bf16 %v348, %v348
    %v1016 = vpack.c.bf16 %v354, %v354
    %v1017 = vpack.c.bf16 %v358, %v358
    %v1018 = vpack.c.bf16 %v364, %v364
    %v1019 = vpack.c.bf16 %v368, %v368
    %1020 = vmatprep.subr.bf16.mxu0 0
    %1021 = vmatpush1.bf16.xpose.msra.mxu0 0
    %1022 = vmatprep.subr.bf16.mxu0 0
    %1023 = vmatpush1.bf16.xpose.msra.mxu0 0
    %1024 = vmatprep.subr.bf16.mxu0 0
    %1025 = vmatpush1.bf16.xpose.msra.mxu0 0
    %1026 = vmatprep.subr.bf16.mxu0 0
    %1027 = vmatpush1.bf16.xpose.msra.mxu0 0
    %1028 = vmatprep.subr.bf16.mxu0 0
    %1029 = vmatpush1.bf16.xpose.msra.mxu0 0
    %1030 = vmatprep.subr.bf16.mxu0 0
    %1031 = vmatpush1.bf16.xpose.msra.mxu0 0
    %1032 = vmatprep.subr.bf16.mxu0 0
    %1033 = vmatpush1.bf16.xpose.msra.mxu0 0
    %1034 = vmatprep.subr.bf16.mxu0 0
    %1035 = vmatpush1.bf16.xpose.msra.mxu0 %v443
    %1036 = vmatprep.subr.bf16.mxu0 0
    %1037 = vmatpush2.bf16.xpose.msra.mxu0 0
    %1038 = vmatprep.subr.bf16.mxu0 0
    %1039 = vmatpush2.bf16.xpose.msra.mxu0 0
    %1040 = vmatprep.subr.bf16.mxu0 0
    %1041 = vmatpush2.bf16.xpose.msra.mxu0 0
    %1042 = vmatprep.subr.bf16.mxu0 0
    %1043 = vmatpush2.bf16.xpose.msra.mxu0 0
    %1044 = vmatprep.subr.bf16.mxu0 0
    %1045 = vmatpush2.bf16.xpose.msra.mxu0 0
    %1046 = vmatprep.subr.bf16.mxu0 0
    %1047 = vmatpush2.bf16.xpose.msra.mxu0 0
    %1048 = vmatprep.subr.bf16.mxu0 0
    %1049 = vmatpush2.bf16.xpose.msra.mxu0 0
    %1050 = vmatprep.subr.bf16.mxu0 0
    %1051 = vmatpush2.bf16.xpose.msra.mxu0 0
    %1052 = vmatprep.mubr.bf16.mxu0 0
    %1053 = vmatmul.mubr.bf16.gmra.mxu0 %v1012
    %v1054 = vpop.f32.mrf.mxu0
    %v1055 = vadd.f32 %v459, %v1054
    %v1056 = vpop.f32.mrf.mxu0
    %v1057 = vpop.f32.mrf.mxu0
    %v1058 = vpop.f32.mrf.mxu0
    %1059 = vdwg.mxu0
    %1060 = vmatprep.subr.bf16.mxu0 0
    %1061 = vmatpush1.bf16.xpose.msra.mxu0 0
    %1062 = vmatprep.subr.bf16.mxu0 0
    %1063 = vmatpush1.bf16.xpose.msra.mxu0 0
    %1064 = vmatprep.subr.bf16.mxu0 0
    %1065 = vmatpush1.bf16.xpose.msra.mxu0 0
    %1066 = vmatprep.subr.bf16.mxu0 0
    %1067 = vmatpush1.bf16.xpose.msra.mxu0 0
    %1068 = vmatprep.subr.bf16.mxu0 0
    %1069 = vmatpush1.bf16.xpose.msra.mxu0 0
    %1070 = vmatprep.subr.bf16.mxu0 0
    %1071 = vmatpush1.bf16.xpose.msra.mxu0 0
    %1072 = vmatprep.subr.bf16.mxu0 0
    %1073 = vmatpush1.bf16.xpose.msra.mxu0 0
    %1074 = vmatprep.subr.bf16.mxu0 0
    %1075 = vmatpush1.bf16.xpose.msra.mxu0 %v444
    %1076 = vmatprep.subr.bf16.mxu0 0
    %1077 = vmatpush2.bf16.xpose.msra.mxu0 0
    %1078 = vmatprep.subr.bf16.mxu0 0
    %1079 = vmatpush2.bf16.xpose.msra.mxu0 0
    %1080 = vmatprep.subr.bf16.mxu0 0
    %1081 = vmatpush2.bf16.xpose.msra.mxu0 0
    %1082 = vmatprep.subr.bf16.mxu0 0
    %1083 = vmatpush2.bf16.xpose.msra.mxu0 0
    %1084 = vmatprep.subr.bf16.mxu0 0
    %1085 = vmatpush2.bf16.xpose.msra.mxu0 0
    %1086 = vmatprep.subr.bf16.mxu0 0
    %1087 = vmatpush2.bf16.xpose.msra.mxu0 0
    %1088 = vmatprep.subr.bf16.mxu0 0
    %1089 = vmatpush2.bf16.xpose.msra.mxu0 0
    %1090 = vmatprep.subr.bf16.mxu0 0
    %1091 = vmatpush2.bf16.xpose.msra.mxu0 0
    %1092 = vmatprep.mubr.bf16.mxu0 0
    %1093 = vmatmul.mubr.bf16.gmra.mxu0 %v1013
    %v1094 = vpop.f32.mrf.mxu0
    %v1095 = vadd.f32 %v460, %v1094
    %v1096 = vpop.f32.mrf.mxu0
    %v1097 = vpop.f32.mrf.mxu0
    %v1098 = vpop.f32.mrf.mxu0
    %1099 = vdwg.mxu0
    %1100 = vmatprep.subr.bf16.mxu0 0
    %1101 = vmatpush1.bf16.xpose.msra.mxu0 0
    %1102 = vmatprep.subr.bf16.mxu0 0
    %1103 = vmatpush1.bf16.xpose.msra.mxu0 0
    %1104 = vmatprep.subr.bf16.mxu0 0
    %1105 = vmatpush1.bf16.xpose.msra.mxu0 0
    %1106 = vmatprep.subr.bf16.mxu0 0
    %1107 = vmatpush1.bf16.xpose.msra.mxu0 0
    %1108 = vmatprep.subr.bf16.mxu0 0
    %1109 = vmatpush1.bf16.xpose.msra.mxu0 0
    %1110 = vmatprep.subr.bf16.mxu0 0
    %1111 = vmatpush1.bf16.xpose.msra.mxu0 0
    %1112 = vmatprep.subr.bf16.mxu0 0
    %1113 = vmatpush1.bf16.xpose.msra.mxu0 0
    %1114 = vmatprep.subr.bf16.mxu0 0
    %1115 = vmatpush1.bf16.xpose.msra.mxu0 %v445
    %1116 = vmatprep.subr.bf16.mxu0 0
    %1117 = vmatpush2.bf16.xpose.msra.mxu0 0
    %1118 = vmatprep.subr.bf16.mxu0 0
    %1119 = vmatpush2.bf16.xpose.msra.mxu0 0
    %1120 = vmatprep.subr.bf16.mxu0 0
    %1121 = vmatpush2.bf16.xpose.msra.mxu0 0
    %1122 = vmatprep.subr.bf16.mxu0 0
    %1123 = vmatpush2.bf16.xpose.msra.mxu0 0
    %1124 = vmatprep.subr.bf16.mxu0 0
    %1125 = vmatpush2.bf16.xpose.msra.mxu0 0
    %1126 = vmatprep.subr.bf16.mxu0 0
    %1127 = vmatpush2.bf16.xpose.msra.mxu0 0
    %1128 = vmatprep.subr.bf16.mxu0 0
    %1129 = vmatpush2.bf16.xpose.msra.mxu0 0
    %1130 = vmatprep.subr.bf16.mxu0 0
    %1131 = vmatpush2.bf16.xpose.msra.mxu0 0
    %1132 = vmatprep.mubr.bf16.mxu0 0
    %1133 = vmatmul.mubr.bf16.gmra.mxu0 %v1014
    %v1134 = vpop.f32.mrf.mxu0
    %v1135 = vadd.f32 %v461, %v1134
    %v1136 = vpop.f32.mrf.mxu0
    %v1137 = vpop.f32.mrf.mxu0
    %v1138 = vpop.f32.mrf.mxu0
    %1139 = vdwg.mxu0
    %1140 = vmatprep.subr.bf16.mxu0 0
    %1141 = vmatpush1.bf16.xpose.msra.mxu0 0
    %1142 = vmatprep.subr.bf16.mxu0 0
    %1143 = vmatpush1.bf16.xpose.msra.mxu0 0
    %1144 = vmatprep.subr.bf16.mxu0 0
    %1145 = vmatpush1.bf16.xpose.msra.mxu0 0
    %1146 = vmatprep.subr.bf16.mxu0 0
    %1147 = vmatpush1.bf16.xpose.msra.mxu0 0
    %1148 = vmatprep.subr.bf16.mxu0 0
    %1149 = vmatpush1.bf16.xpose.msra.mxu0 0
    %1150 = vmatprep.subr.bf16.mxu0 0
    %1151 = vmatpush1.bf16.xpose.msra.mxu0 0
    %1152 = vmatprep.subr.bf16.mxu0 0
    %1153 = vmatpush1.bf16.xpose.msra.mxu0 0
    %1154 = vmatprep.subr.bf16.mxu0 0
    %1155 = vmatpush1.bf16.xpose.msra.mxu0 %v446
    %1156 = vmatprep.subr.bf16.mxu0 0
    %1157 = vmatpush2.bf16.xpose.msra.mxu0 0
    %1158 = vmatprep.subr.bf16.mxu0 0
    %1159 = vmatpush2.bf16.xpose.msra.mxu0 0
    %1160 = vmatprep.subr.bf16.mxu0 0
    %1161 = vmatpush2.bf16.xpose.msra.mxu0 0
    %1162 = vmatprep.subr.bf16.mxu0 0
    %1163 = vmatpush2.bf16.xpose.msra.mxu0 0
    %1164 = vmatprep.subr.bf16.mxu0 0
    %1165 = vmatpush2.bf16.xpose.msra.mxu0 0
    %1166 = vmatprep.subr.bf16.mxu0 0
    %1167 = vmatpush2.bf16.xpose.msra.mxu0 0
    %1168 = vmatprep.subr.bf16.mxu0 0
    %1169 = vmatpush2.bf16.xpose.msra.mxu0 0
    %1170 = vmatprep.subr.bf16.mxu0 0
    %1171 = vmatpush2.bf16.xpose.msra.mxu0 0
    %1172 = vmatprep.mubr.bf16.mxu0 0
    %1173 = vmatmul.mubr.bf16.gmra.mxu0 %v1015
    %v1174 = vpop.f32.mrf.mxu0
    %v1175 = vadd.f32 %v462, %v1174
    %v1176 = vpop.f32.mrf.mxu0
    %v1177 = vpop.f32.mrf.mxu0
    %v1178 = vpop.f32.mrf.mxu0
    %1179 = vdwg.mxu0
    %1180 = vmatprep.subr.bf16.mxu0 0
    %1181 = vmatpush1.bf16.xpose.msra.mxu0 0
    %1182 = vmatprep.subr.bf16.mxu0 0
    %1183 = vmatpush1.bf16.xpose.msra.mxu0 0
    %1184 = vmatprep.subr.bf16.mxu0 0
    %1185 = vmatpush1.bf16.xpose.msra.mxu0 0
    %1186 = vmatprep.subr.bf16.mxu0 0
    %1187 = vmatpush1.bf16.xpose.msra.mxu0 0
    %1188 = vmatprep.subr.bf16.mxu0 0
    %1189 = vmatpush1.bf16.xpose.msra.mxu0 0
    %1190 = vmatprep.subr.bf16.mxu0 0
    %1191 = vmatpush1.bf16.xpose.msra.mxu0 0
    %1192 = vmatprep.subr.bf16.mxu0 0
    %1193 = vmatpush1.bf16.xpose.msra.mxu0 0
    %1194 = vmatprep.subr.bf16.mxu0 0
    %1195 = vmatpush1.bf16.xpose.msra.mxu0 %v447
    %1196 = vmatprep.subr.bf16.mxu0 0
    %1197 = vmatpush2.bf16.xpose.msra.mxu0 0
    %1198 = vmatprep.subr.bf16.mxu0 0
    %1199 = vmatpush2.bf16.xpose.msra.mxu0 0
    %1200 = vmatprep.subr.bf16.mxu0 0
    %1201 = vmatpush2.bf16.xpose.msra.mxu0 0
    %1202 = vmatprep.subr.bf16.mxu0 0
    %1203 = vmatpush2.bf16.xpose.msra.mxu0 0
    %1204 = vmatprep.subr.bf16.mxu0 0
    %1205 = vmatpush2.bf16.xpose.msra.mxu0 0
    %1206 = vmatprep.subr.bf16.mxu0 0
    %1207 = vmatpush2.bf16.xpose.msra.mxu0 0
    %1208 = vmatprep.subr.bf16.mxu0 0
    %1209 = vmatpush2.bf16.xpose.msra.mxu0 0
    %1210 = vmatprep.subr.bf16.mxu0 0
    %1211 = vmatpush2.bf16.xpose.msra.mxu0 0
    %1212 = vmatprep.mubr.bf16.mxu0 0
    %1213 = vmatmul.mubr.bf16.gmra.mxu0 %v1016
    %v1214 = vpop.f32.mrf.mxu0
    %v1215 = vadd.f32 %v463, %v1214
    %v1216 = vpop.f32.mrf.mxu0
    %v1217 = vpop.f32.mrf.mxu0
    %v1218 = vpop.f32.mrf.mxu0
    %1219 = vdwg.mxu0
    %1220 = vmatprep.subr.bf16.mxu0 0
    %1221 = vmatpush1.bf16.xpose.msra.mxu0 0
    %1222 = vmatprep.subr.bf16.mxu0 0
    %1223 = vmatpush1.bf16.xpose.msra.mxu0 0
    %1224 = vmatprep.subr.bf16.mxu0 0
    %1225 = vmatpush1.bf16.xpose.msra.mxu0 0
    %1226 = vmatprep.subr.bf16.mxu0 0
    %1227 = vmatpush1.bf16.xpose.msra.mxu0 0
    %1228 = vmatprep.subr.bf16.mxu0 0
    %1229 = vmatpush1.bf16.xpose.msra.mxu0 0
    %1230 = vmatprep.subr.bf16.mxu0 0
    %1231 = vmatpush1.bf16.xpose.msra.mxu0 0
    %1232 = vmatprep.subr.bf16.mxu0 0
    %1233 = vmatpush1.bf16.xpose.msra.mxu0 0
    %1234 = vmatprep.subr.bf16.mxu0 0
    %1235 = vmatpush1.bf16.xpose.msra.mxu0 %v448
    %1236 = vmatprep.subr.bf16.mxu0 0
    %1237 = vmatpush2.bf16.xpose.msra.mxu0 0
    %1238 = vmatprep.subr.bf16.mxu0 0
    %1239 = vmatpush2.bf16.xpose.msra.mxu0 0
    %1240 = vmatprep.subr.bf16.mxu0 0
    %1241 = vmatpush2.bf16.xpose.msra.mxu0 0
    %1242 = vmatprep.subr.bf16.mxu0 0
    %1243 = vmatpush2.bf16.xpose.msra.mxu0 0
    %1244 = vmatprep.subr.bf16.mxu0 0
    %1245 = vmatpush2.bf16.xpose.msra.mxu0 0
    %1246 = vmatprep.subr.bf16.mxu0 0
    %1247 = vmatpush2.bf16.xpose.msra.mxu0 0
    %1248 = vmatprep.subr.bf16.mxu0 0
    %1249 = vmatpush2.bf16.xpose.msra.mxu0 0
    %1250 = vmatprep.subr.bf16.mxu0 0
    %1251 = vmatpush2.bf16.xpose.msra.mxu0 0
    %1252 = vmatprep.mubr.bf16.mxu0 0
    %1253 = vmatmul.mubr.bf16.gmra.mxu0 %v1017
    %v1254 = vpop.f32.mrf.mxu0
    %v1255 = vadd.f32 %v464, %v1254
    %v1256 = vpop.f32.mrf.mxu0
    %v1257 = vpop.f32.mrf.mxu0
    %v1258 = vpop.f32.mrf.mxu0
    %1259 = vdwg.mxu0
    %1260 = vmatprep.subr.bf16.mxu0 0
    %1261 = vmatpush1.bf16.xpose.msra.mxu0 0
    %1262 = vmatprep.subr.bf16.mxu0 0
    %1263 = vmatpush1.bf16.xpose.msra.mxu0 0
    %1264 = vmatprep.subr.bf16.mxu0 0
    %1265 = vmatpush1.bf16.xpose.msra.mxu0 0
    %1266 = vmatprep.subr.bf16.mxu0 0
    %1267 = vmatpush1.bf16.xpose.msra.mxu0 0
    %1268 = vmatprep.subr.bf16.mxu0 0
    %1269 = vmatpush1.bf16.xpose.msra.mxu0 0
    %1270 = vmatprep.subr.bf16.mxu0 0
    %1271 = vmatpush1.bf16.xpose.msra.mxu0 0
    %1272 = vmatprep.subr.bf16.mxu0 0
    %1273 = vmatpush1.bf16.xpose.msra.mxu0 0
    %1274 = vmatprep.subr.bf16.mxu0 0
    %1275 = vmatpush1.bf16.xpose.msra.mxu0 %v449
    %1276 = vmatprep.subr.bf16.mxu0 0
    %1277 = vmatpush2.bf16.xpose.msra.mxu0 0
    %1278 = vmatprep.subr.bf16.mxu0 0
    %1279 = vmatpush2.bf16.xpose.msra.mxu0 0
    %1280 = vmatprep.subr.bf16.mxu0 0
    %1281 = vmatpush2.bf16.xpose.msra.mxu0 0
    %1282 = vmatprep.subr.bf16.mxu0 0
    %1283 = vmatpush2.bf16.xpose.msra.mxu0 0
    %1284 = vmatprep.subr.bf16.mxu0 0
    %1285 = vmatpush2.bf16.xpose.msra.mxu0 0
    %1286 = vmatprep.subr.bf16.mxu0 0
    %1287 = vmatpush2.bf16.xpose.msra.mxu0 0
    %1288 = vmatprep.subr.bf16.mxu0 0
    %1289 = vmatpush2.bf16.xpose.msra.mxu0 0
    %1290 = vmatprep.subr.bf16.mxu0 0
    %1291 = vmatpush2.bf16.xpose.msra.mxu0 0
    %1292 = vmatprep.mubr.bf16.mxu0 0
    %1293 = vmatmul.mubr.bf16.gmra.mxu0 %v1018
    %v1294 = vpop.f32.mrf.mxu0
    %v1295 = vadd.f32 %v465, %v1294
    %v1296 = vpop.f32.mrf.mxu0
    %v1297 = vpop.f32.mrf.mxu0
    %v1298 = vpop.f32.mrf.mxu0
    %1299 = vdwg.mxu0
    %1300 = vmatprep.subr.bf16.mxu0 0
    %1301 = vmatpush1.bf16.xpose.msra.mxu0 0
    %1302 = vmatprep.subr.bf16.mxu0 0
    %1303 = vmatpush1.bf16.xpose.msra.mxu0 0
    %1304 = vmatprep.subr.bf16.mxu0 0
    %1305 = vmatpush1.bf16.xpose.msra.mxu0 0
    %1306 = vmatprep.subr.bf16.mxu0 0
    %1307 = vmatpush1.bf16.xpose.msra.mxu0 0
    %1308 = vmatprep.subr.bf16.mxu0 0
    %1309 = vmatpush1.bf16.xpose.msra.mxu0 0
    %1310 = vmatprep.subr.bf16.mxu0 0
    %1311 = vmatpush1.bf16.xpose.msra.mxu0 0
    %1312 = vmatprep.subr.bf16.mxu0 0
    %1313 = vmatpush1.bf16.xpose.msra.mxu0 0
    %1314 = vmatprep.subr.bf16.mxu0 0
    %1315 = vmatpush1.bf16.xpose.msra.mxu0 %v450
    %1316 = vmatprep.subr.bf16.mxu0 0
    %1317 = vmatpush2.bf16.xpose.msra.mxu0 0
    %1318 = vmatprep.subr.bf16.mxu0 0
    %1319 = vmatpush2.bf16.xpose.msra.mxu0 0
    %1320 = vmatprep.subr.bf16.mxu0 0
    %1321 = vmatpush2.bf16.xpose.msra.mxu0 0
    %1322 = vmatprep.subr.bf16.mxu0 0
    %1323 = vmatpush2.bf16.xpose.msra.mxu0 0
    %1324 = vmatprep.subr.bf16.mxu0 0
    %1325 = vmatpush2.bf16.xpose.msra.mxu0 0
    %1326 = vmatprep.subr.bf16.mxu0 0
    %1327 = vmatpush2.bf16.xpose.msra.mxu0 0
    %1328 = vmatprep.subr.bf16.mxu0 0
    %1329 = vmatpush2.bf16.xpose.msra.mxu0 0
    %1330 = vmatprep.subr.bf16.mxu0 0
    %1331 = vmatpush2.bf16.xpose.msra.mxu0 0
    %1332 = vmatprep.mubr.bf16.mxu0 0
    %1333 = vmatmul.mubr.bf16.gmra.mxu0 %v1019
    %v1334 = vpop.f32.mrf.mxu0
    %v1335 = vadd.f32 %v466, %v1334
    %v1336 = vpop.f32.mrf.mxu0
    %v1337 = vpop.f32.mrf.mxu0
    %v1338 = vpop.f32.mrf.mxu0
    %1339 = vdwg.mxu0
    %v1340 = vsel %vm795, %v1055, -inf
    %1341 = vmax.xlane.f32.xlu0 %v1340
    %v1342 = vpop.xlane.xlu0 %1341
    %v1343 = vsel %vm795, %v1095, -inf
    %1344 = vmax.xlane.f32.xlu0 %v1343
    %v1345 = vpop.xlane.xlu0 %1344
    %v1346 = vsel %vm795, %v1135, -inf
    %1347 = vmax.xlane.f32.xlu0 %v1346
    %v1348 = vpop.xlane.xlu0 %1347
    %v1349 = vsel %vm795, %v1175, -inf
    %1350 = vmax.xlane.f32.xlu0 %v1349
    %v1351 = vpop.xlane.xlu0 %1350
    %v1352 = vsel %vm795, %v1215, -inf
    %1353 = vmax.xlane.f32.xlu0 %v1352
    %v1354 = vpop.xlane.xlu0 %1353
    %v1355 = vsel %vm795, %v1255, -inf
    %1356 = vmax.xlane.f32.xlu0 %v1355
    %v1357 = vpop.xlane.xlu0 %1356
    %v1358 = vsel %vm795, %v1295, -inf
    %1359 = vmax.xlane.f32.xlu0 %v1358
    %v1360 = vpop.xlane.xlu0 %1359
    %v1361 = vsel %vm795, %v1335, -inf
    %1362 = vmax.xlane.f32.xlu0 %v1361
    %v1363 = vpop.xlane.xlu0 %1362
    %v1364 = vrot.slane %v1342, 4
    %v1365 = vmax.f32 %v1342, %v1364
    %v1366 = vrot.slane %v1365, 2
    %v1367 = vmax.f32 %v1365, %v1366
    %v1368 = vrot.slane %v1367, 1
    %v1369 = vmax.f32 %v1367, %v1368
    %v1370 = vrot.slane %v1345, 4
    %v1371 = vmax.f32 %v1345, %v1370
    %v1372 = vrot.slane %v1371, 2
    %v1373 = vmax.f32 %v1371, %v1372
    %v1374 = vrot.slane %v1373, 1
    %v1375 = vmax.f32 %v1373, %v1374
    %v1376 = vrot.slane %v1348, 4
    %v1377 = vmax.f32 %v1348, %v1376
    %v1378 = vrot.slane %v1377, 2
    %v1379 = vmax.f32 %v1377, %v1378
    %v1380 = vrot.slane %v1379, 1
    %v1381 = vmax.f32 %v1379, %v1380
    %v1382 = vrot.slane %v1351, 4
    %v1383 = vmax.f32 %v1351, %v1382
    %v1384 = vrot.slane %v1383, 2
    %v1385 = vmax.f32 %v1383, %v1384
    %v1386 = vrot.slane %v1385, 1
    %v1387 = vmax.f32 %v1385, %v1386
    %v1388 = vrot.slane %v1354, 4
    %v1389 = vmax.f32 %v1354, %v1388
    %v1390 = vrot.slane %v1389, 2
    %v1391 = vmax.f32 %v1389, %v1390
    %v1392 = vrot.slane %v1391, 1
    %v1393 = vmax.f32 %v1391, %v1392
    %v1394 = vrot.slane %v1357, 4
    %v1395 = vmax.f32 %v1357, %v1394
    %v1396 = vrot.slane %v1395, 2
    %v1397 = vmax.f32 %v1395, %v1396
    %v1398 = vrot.slane %v1397, 1
    %v1399 = vmax.f32 %v1397, %v1398
    %v1400 = vrot.slane %v1360, 4
    %v1401 = vmax.f32 %v1360, %v1400
    %v1402 = vrot.slane %v1401, 2
    %v1403 = vmax.f32 %v1401, %v1402
    %v1404 = vrot.slane %v1403, 1
    %v1405 = vmax.f32 %v1403, %v1404
    %v1406 = vrot.slane %v1363, 4
    %v1407 = vmax.f32 %v1363, %v1406
    %v1408 = vrot.slane %v1407, 2
    %v1409 = vmax.f32 %v1407, %v1408
    %v1410 = vrot.slane %v1409, 1
    %v1411 = vmax.f32 %v1409, %v1410
    %vm1412 = vweird.f32 %v1369
    %vm1413 = vweird.f32 %v1375
    %vm1414 = vweird.f32 %v1381
    %vm1415 = vweird.f32 %v1387
    %vm1416 = vweird.f32 %v1393
    %vm1417 = vweird.f32 %v1399
    %vm1418 = vweird.f32 %v1405
    %vm1419 = vweird.f32 %v1411
    %vm1420 = vmxor %vm1412, 1
    %vm1421 = vmxor %vm1413, 1
    %vm1422 = vmxor %vm1414, 1
    %vm1423 = vmxor %vm1415, 1
    %vm1424 = vmxor %vm1416, 1
    %vm1425 = vmxor %vm1417, 1
    %vm1426 = vmxor %vm1418, 1
    %vm1427 = vmxor %vm1419, 1
    %v1428 = vsel %vm1420, %v1369, 0.0
    %v1429 = vsel %vm1421, %v1375, 0.0
    %v1430 = vsel %vm1422, %v1381, 0.0
    %v1431 = vsel %vm1423, %v1387, 0.0
    %v1432 = vsel %vm1424, %v1393, 0.0
    %v1433 = vsel %vm1425, %v1399, 0.0
    %v1434 = vsel %vm1426, %v1405, 0.0
    %v1435 = vsel %vm1427, %v1411, 0.0
    %v1436 = vsub.f32 %v1055, %v1428
    %v1437 = vsub.f32 %v1095, %v1429
    %v1438 = vsub.f32 %v1135, %v1430
    %v1439 = vsub.f32 %v1175, %v1431
    %v1440 = vsub.f32 %v1215, %v1432
    %v1441 = vsub.f32 %v1255, %v1433
    %v1442 = vsub.f32 %v1295, %v1434
    %v1443 = vsub.f32 %v1335, %v1435
    %v1444 = vmul.f32 %v1436, 1.442695
    %v1445 = vpow.pop %v1444
    %v1446 = vmul.f32 %v1437, 1.442695
    %v1447 = vpow.pop %v1446
    %v1448 = vmul.f32 %v1438, 1.442695
    %v1449 = vpow.pop %v1448
    %v1450 = vmul.f32 %v1439, 1.442695
    %v1451 = vpow.pop %v1450
    %v1452 = vmul.f32 %v1440, 1.442695
    %v1453 = vpow.pop %v1452
    %v1454 = vmul.f32 %v1441, 1.442695
    %v1455 = vpow.pop %v1454
    %v1456 = vmul.f32 %v1442, 1.442695
    %v1457 = vpow.pop %v1456
    %v1458 = vmul.f32 %v1443, 1.442695
    %v1459 = vpow.pop %v1458
    %v1460 = vsel %vm795, %v1445, 0.0
    %1461 = vadd.xlane.f32.xlu0 %v1460
    %v1462 = vpop.xlane.xlu0 %1461
    %v1463 = vsel %vm795, %v1447, 0.0
    %1464 = vadd.xlane.f32.xlu0 %v1463
    %v1465 = vpop.xlane.xlu0 %1464
    %v1466 = vsel %vm795, %v1449, 0.0
    %1467 = vadd.xlane.f32.xlu0 %v1466
    %v1468 = vpop.xlane.xlu0 %1467
    %v1469 = vsel %vm795, %v1451, 0.0
    %1470 = vadd.xlane.f32.xlu0 %v1469
    %v1471 = vpop.xlane.xlu0 %1470
    %v1472 = vsel %vm795, %v1453, 0.0
    %1473 = vadd.xlane.f32.xlu0 %v1472
    %v1474 = vpop.xlane.xlu0 %1473
    %v1475 = vsel %vm795, %v1455, 0.0
    %1476 = vadd.xlane.f32.xlu0 %v1475
    %v1477 = vpop.xlane.xlu0 %1476
    %v1478 = vsel %vm795, %v1457, 0.0
    %1479 = vadd.xlane.f32.xlu0 %v1478
    %v1480 = vpop.xlane.xlu0 %1479
    %v1481 = vsel %vm795, %v1459, 0.0
    %1482 = vadd.xlane.f32.xlu0 %v1481
    %v1483 = vpop.xlane.xlu0 %1482
    %v1484 = vrot.slane %v1462, 4
    %v1485 = vadd.f32 %v1462, %v1484
    %v1486 = vrot.slane %v1485, 2
    %v1487 = vadd.f32 %v1485, %v1486
    %v1488 = vrot.slane %v1487, 1
    %v1489 = vadd.f32 %v1487, %v1488
    %v1490 = vrot.slane %v1465, 4
    %v1491 = vadd.f32 %v1465, %v1490
    %v1492 = vrot.slane %v1491, 2
    %v1493 = vadd.f32 %v1491, %v1492
    %v1494 = vrot.slane %v1493, 1
    %v1495 = vadd.f32 %v1493, %v1494
    %v1496 = vrot.slane %v1468, 4
    %v1497 = vadd.f32 %v1468, %v1496
    %v1498 = vrot.slane %v1497, 2
    %v1499 = vadd.f32 %v1497, %v1498
    %v1500 = vrot.slane %v1499, 1
    %v1501 = vadd.f32 %v1499, %v1500
    %v1502 = vrot.slane %v1471, 4
    %v1503 = vadd.f32 %v1471, %v1502
    %v1504 = vrot.slane %v1503, 2
    %v1505 = vadd.f32 %v1503, %v1504
    %v1506 = vrot.slane %v1505, 1
    %v1507 = vadd.f32 %v1505, %v1506
    %v1508 = vrot.slane %v1474, 4
    %v1509 = vadd.f32 %v1474, %v1508
    %v1510 = vrot.slane %v1509, 2
    %v1511 = vadd.f32 %v1509, %v1510
    %v1512 = vrot.slane %v1511, 1
    %v1513 = vadd.f32 %v1511, %v1512
    %v1514 = vrot.slane %v1477, 4
    %v1515 = vadd.f32 %v1477, %v1514
    %v1516 = vrot.slane %v1515, 2
    %v1517 = vadd.f32 %v1515, %v1516
    %v1518 = vrot.slane %v1517, 1
    %v1519 = vadd.f32 %v1517, %v1518
    %v1520 = vrot.slane %v1480, 4
    %v1521 = vadd.f32 %v1480, %v1520
    %v1522 = vrot.slane %v1521, 2
    %v1523 = vadd.f32 %v1521, %v1522
    %v1524 = vrot.slane %v1523, 1
    %v1525 = vadd.f32 %v1523, %v1524
    %v1526 = vrot.slane %v1483, 4
    %v1527 = vadd.f32 %v1483, %v1526
    %v1528 = vrot.slane %v1527, 2
    %v1529 = vadd.f32 %v1527, %v1528
    %v1530 = vrot.slane %v1529, 1
    %v1531 = vadd.f32 %v1529, %v1530
    %v1532 = vlog2.pop %v1489
    %v1533 = vmul.f32 %v1532, 0.6931472
    %v1534 = vlog2.pop %v1495
    %v1535 = vmul.f32 %v1534, 0.6931472
    %v1536 = vlog2.pop %v1501
    %v1537 = vmul.f32 %v1536, 0.6931472
    %v1538 = vlog2.pop %v1507
    %v1539 = vmul.f32 %v1538, 0.6931472
    %v1540 = vlog2.pop %v1513
    %v1541 = vmul.f32 %v1540, 0.6931472
    %v1542 = vlog2.pop %v1519
    %v1543 = vmul.f32 %v1542, 0.6931472
    %v1544 = vlog2.pop %v1525
    %v1545 = vmul.f32 %v1544, 0.6931472
    %v1546 = vlog2.pop %v1531
    %v1547 = vmul.f32 %v1546, 0.6931472
    %v1548 = vadd.f32 %v1428, %v1533
    %v1549 = vadd.f32 %v1429, %v1535
    %v1550 = vadd.f32 %v1430, %v1537
    %v1551 = vadd.f32 %v1431, %v1539
    %v1552 = vadd.f32 %v1432, %v1541
    %v1553 = vadd.f32 %v1433, %v1543
    %v1554 = vadd.f32 %v1434, %v1545
    %v1555 = vadd.f32 %v1435, %v1547
    %v1556 = vpack.c.bf16 %v405, %v405
    %v1557 = vpack.c.bf16 %v409, %v409
    %v1558 = vpack.c.bf16 %v415, %v415
    %v1559 = vpack.c.bf16 %v419, %v419
    %v1560 = vpack.c.bf16 %v425, %v425
    %v1561 = vpack.c.bf16 %v429, %v429
    %v1562 = vpack.c.bf16 %v435, %v435
    %v1563 = vpack.c.bf16 %v439, %v439
    %1564 = vmatprep.subr.bf16.mxu0 0
    %1565 = vmatpush1.bf16.xpose.msra.mxu0 0
    %1566 = vmatprep.subr.bf16.mxu0 0
    %1567 = vmatpush1.bf16.xpose.msra.mxu0 0
    %1568 = vmatprep.subr.bf16.mxu0 0
    %1569 = vmatpush1.bf16.xpose.msra.mxu0 0
    %1570 = vmatprep.subr.bf16.mxu0 0
    %1571 = vmatpush1.bf16.xpose.msra.mxu0 0
    %1572 = vmatprep.subr.bf16.mxu0 0
    %1573 = vmatpush1.bf16.xpose.msra.mxu0 0
    %1574 = vmatprep.subr.bf16.mxu0 0
    %1575 = vmatpush1.bf16.xpose.msra.mxu0 0
    %1576 = vmatprep.subr.bf16.mxu0 0
    %1577 = vmatpush1.bf16.xpose.msra.mxu0 0
    %1578 = vmatprep.subr.bf16.mxu0 0
    %1579 = vmatpush1.bf16.xpose.msra.mxu0 %v443
    %1580 = vmatprep.subr.bf16.mxu0 0
    %1581 = vmatpush2.bf16.xpose.msra.mxu0 0
    %1582 = vmatprep.subr.bf16.mxu0 0
    %1583 = vmatpush2.bf16.xpose.msra.mxu0 0
    %1584 = vmatprep.subr.bf16.mxu0 0
    %1585 = vmatpush2.bf16.xpose.msra.mxu0 0
    %1586 = vmatprep.subr.bf16.mxu0 0
    %1587 = vmatpush2.bf16.xpose.msra.mxu0 0
    %1588 = vmatprep.subr.bf16.mxu0 0
    %1589 = vmatpush2.bf16.xpose.msra.mxu0 0
    %1590 = vmatprep.subr.bf16.mxu0 0
    %1591 = vmatpush2.bf16.xpose.msra.mxu0 0
    %1592 = vmatprep.subr.bf16.mxu0 0
    %1593 = vmatpush2.bf16.xpose.msra.mxu0 0
    %1594 = vmatprep.subr.bf16.mxu0 0
    %1595 = vmatpush2.bf16.xpose.msra.mxu0 0
    %1596 = vmatprep.mubr.bf16.mxu0 0
    %1597 = vmatmul.mubr.bf16.gmra.mxu0 %v1556
    %v1598 = vpop.f32.mrf.mxu0
    %v1599 = vadd.f32 %v459, %v1598
    %v1600 = vpop.f32.mrf.mxu0
    %v1601 = vpop.f32.mrf.mxu0
    %v1602 = vpop.f32.mrf.mxu0
    %1603 = vdwg.mxu0
    %1604 = vmatprep.subr.bf16.mxu0 0
    %1605 = vmatpush1.bf16.xpose.msra.mxu0 0
    %1606 = vmatprep.subr.bf16.mxu0 0
    %1607 = vmatpush1.bf16.xpose.msra.mxu0 0
    %1608 = vmatprep.subr.bf16.mxu0 0
    %1609 = vmatpush1.bf16.xpose.msra.mxu0 0
    %1610 = vmatprep.subr.bf16.mxu0 0
    %1611 = vmatpush1.bf16.xpose.msra.mxu0 0
    %1612 = vmatprep.subr.bf16.mxu0 0
    %1613 = vmatpush1.bf16.xpose.msra.mxu0 0
    %1614 = vmatprep.subr.bf16.mxu0 0
    %1615 = vmatpush1.bf16.xpose.msra.mxu0 0
    %1616 = vmatprep.subr.bf16.mxu0 0
    %1617 = vmatpush1.bf16.xpose.msra.mxu0 0
    %1618 = vmatprep.subr.bf16.mxu0 0
    %1619 = vmatpush1.bf16.xpose.msra.mxu0 %v444
    %1620 = vmatprep.subr.bf16.mxu0 0
    %1621 = vmatpush2.bf16.xpose.msra.mxu0 0
    %1622 = vmatprep.subr.bf16.mxu0 0
    %1623 = vmatpush2.bf16.xpose.msra.mxu0 0
    %1624 = vmatprep.subr.bf16.mxu0 0
    %1625 = vmatpush2.bf16.xpose.msra.mxu0 0
    %1626 = vmatprep.subr.bf16.mxu0 0
    %1627 = vmatpush2.bf16.xpose.msra.mxu0 0
    %1628 = vmatprep.subr.bf16.mxu0 0
    %1629 = vmatpush2.bf16.xpose.msra.mxu0 0
    %1630 = vmatprep.subr.bf16.mxu0 0
    %1631 = vmatpush2.bf16.xpose.msra.mxu0 0
    %1632 = vmatprep.subr.bf16.mxu0 0
    %1633 = vmatpush2.bf16.xpose.msra.mxu0 0
    %1634 = vmatprep.subr.bf16.mxu0 0
    %1635 = vmatpush2.bf16.xpose.msra.mxu0 0
    %1636 = vmatprep.mubr.bf16.mxu0 0
    %1637 = vmatmul.mubr.bf16.gmra.mxu0 %v1557
    %v1638 = vpop.f32.mrf.mxu0
    %v1639 = vadd.f32 %v460, %v1638
    %v1640 = vpop.f32.mrf.mxu0
    %v1641 = vpop.f32.mrf.mxu0
    %v1642 = vpop.f32.mrf.mxu0
    %1643 = vdwg.mxu0
    %1644 = vmatprep.subr.bf16.mxu0 0
    %1645 = vmatpush1.bf16.xpose.msra.mxu0 0
    %1646 = vmatprep.subr.bf16.mxu0 0
    %1647 = vmatpush1.bf16.xpose.msra.mxu0 0
    %1648 = vmatprep.subr.bf16.mxu0 0
    %1649 = vmatpush1.bf16.xpose.msra.mxu0 0
    %1650 = vmatprep.subr.bf16.mxu0 0
    %1651 = vmatpush1.bf16.xpose.msra.mxu0 0
    %1652 = vmatprep.subr.bf16.mxu0 0
    %1653 = vmatpush1.bf16.xpose.msra.mxu0 0
    %1654 = vmatprep.subr.bf16.mxu0 0
    %1655 = vmatpush1.bf16.xpose.msra.mxu0 0
    %1656 = vmatprep.subr.bf16.mxu0 0
    %1657 = vmatpush1.bf16.xpose.msra.mxu0 0
    %1658 = vmatprep.subr.bf16.mxu0 0
    %1659 = vmatpush1.bf16.xpose.msra.mxu0 %v445
    %1660 = vmatprep.subr.bf16.mxu0 0
    %1661 = vmatpush2.bf16.xpose.msra.mxu0 0
    %1662 = vmatprep.subr.bf16.mxu0 0
    %1663 = vmatpush2.bf16.xpose.msra.mxu0 0
    %1664 = vmatprep.subr.bf16.mxu0 0
    %1665 = vmatpush2.bf16.xpose.msra.mxu0 0
    %1666 = vmatprep.subr.bf16.mxu0 0
    %1667 = vmatpush2.bf16.xpose.msra.mxu0 0
    %1668 = vmatprep.subr.bf16.mxu0 0
    %1669 = vmatpush2.bf16.xpose.msra.mxu0 0
    %1670 = vmatprep.subr.bf16.mxu0 0
    %1671 = vmatpush2.bf16.xpose.msra.mxu0 0
    %1672 = vmatprep.subr.bf16.mxu0 0
    %1673 = vmatpush2.bf16.xpose.msra.mxu0 0
    %1674 = vmatprep.subr.bf16.mxu0 0
    %1675 = vmatpush2.bf16.xpose.msra.mxu0 0
    %1676 = vmatprep.mubr.bf16.mxu0 0
    %1677 = vmatmul.mubr.bf16.gmra.mxu0 %v1558
    %v1678 = vpop.f32.mrf.mxu0
    %v1679 = vadd.f32 %v461, %v1678
    %v1680 = vpop.f32.mrf.mxu0
    %v1681 = vpop.f32.mrf.mxu0
    %v1682 = vpop.f32.mrf.mxu0
    %1683 = vdwg.mxu0
    %1684 = vmatprep.subr.bf16.mxu0 0
    %1685 = vmatpush1.bf16.xpose.msra.mxu0 0
    %1686 = vmatprep.subr.bf16.mxu0 0
    %1687 = vmatpush1.bf16.xpose.msra.mxu0 0
    %1688 = vmatprep.subr.bf16.mxu0 0
    %1689 = vmatpush1.bf16.xpose.msra.mxu0 0
    %1690 = vmatprep.subr.bf16.mxu0 0
    %1691 = vmatpush1.bf16.xpose.msra.mxu0 0
    %1692 = vmatprep.subr.bf16.mxu0 0
    %1693 = vmatpush1.bf16.xpose.msra.mxu0 0
    %1694 = vmatprep.subr.bf16.mxu0 0
    %1695 = vmatpush1.bf16.xpose.msra.mxu0 0
    %1696 = vmatprep.subr.bf16.mxu0 0
    %1697 = vmatpush1.bf16.xpose.msra.mxu0 0
    %1698 = vmatprep.subr.bf16.mxu0 0
    %1699 = vmatpush1.bf16.xpose.msra.mxu0 %v446
    %1700 = vmatprep.subr.bf16.mxu0 0
    %1701 = vmatpush2.bf16.xpose.msra.mxu0 0
    %1702 = vmatprep.subr.bf16.mxu0 0
    %1703 = vmatpush2.bf16.xpose.msra.mxu0 0
    %1704 = vmatprep.subr.bf16.mxu0 0
    %1705 = vmatpush2.bf16.xpose.msra.mxu0 0
    %1706 = vmatprep.subr.bf16.mxu0 0
    %1707 = vmatpush2.bf16.xpose.msra.mxu0 0
    %1708 = vmatprep.subr.bf16.mxu0 0
    %1709 = vmatpush2.bf16.xpose.msra.mxu0 0
    %1710 = vmatprep.subr.bf16.mxu0 0
    %1711 = vmatpush2.bf16.xpose.msra.mxu0 0
    %1712 = vmatprep.subr.bf16.mxu0 0
    %1713 = vmatpush2.bf16.xpose.msra.mxu0 0
    %1714 = vmatprep.subr.bf16.mxu0 0
    %1715 = vmatpush2.bf16.xpose.msra.mxu0 0
    %1716 = vmatprep.mubr.bf16.mxu0 0
    %1717 = vmatmul.mubr.bf16.gmra.mxu0 %v1559
    %v1718 = vpop.f32.mrf.mxu0
    %v1719 = vadd.f32 %v462, %v1718
    %v1720 = vpop.f32.mrf.mxu0
    %v1721 = vpop.f32.mrf.mxu0
    %v1722 = vpop.f32.mrf.mxu0
    %1723 = vdwg.mxu0
    %1724 = vmatprep.subr.bf16.mxu0 0
    %1725 = vmatpush1.bf16.xpose.msra.mxu0 0
    %1726 = vmatprep.subr.bf16.mxu0 0
    %1727 = vmatpush1.bf16.xpose.msra.mxu0 0
    %1728 = vmatprep.subr.bf16.mxu0 0
    %1729 = vmatpush1.bf16.xpose.msra.mxu0 0
    %1730 = vmatprep.subr.bf16.mxu0 0
    %1731 = vmatpush1.bf16.xpose.msra.mxu0 0
    %1732 = vmatprep.subr.bf16.mxu0 0
    %1733 = vmatpush1.bf16.xpose.msra.mxu0 0
    %1734 = vmatprep.subr.bf16.mxu0 0
    %1735 = vmatpush1.bf16.xpose.msra.mxu0 0
    %1736 = vmatprep.subr.bf16.mxu0 0
    %1737 = vmatpush1.bf16.xpose.msra.mxu0 0
    %1738 = vmatprep.subr.bf16.mxu0 0
    %1739 = vmatpush1.bf16.xpose.msra.mxu0 %v447
    %1740 = vmatprep.subr.bf16.mxu0 0
    %1741 = vmatpush2.bf16.xpose.msra.mxu0 0
    %1742 = vmatprep.subr.bf16.mxu0 0
    %1743 = vmatpush2.bf16.xpose.msra.mxu0 0
    %1744 = vmatprep.subr.bf16.mxu0 0
    %1745 = vmatpush2.bf16.xpose.msra.mxu0 0
    %1746 = vmatprep.subr.bf16.mxu0 0
    %1747 = vmatpush2.bf16.xpose.msra.mxu0 0
    %1748 = vmatprep.subr.bf16.mxu0 0
    %1749 = vmatpush2.bf16.xpose.msra.mxu0 0
    %1750 = vmatprep.subr.bf16.mxu0 0
    %1751 = vmatpush2.bf16.xpose.msra.mxu0 0
    %1752 = vmatprep.subr.bf16.mxu0 0
    %1753 = vmatpush2.bf16.xpose.msra.mxu0 0
    %1754 = vmatprep.subr.bf16.mxu0 0
    %1755 = vmatpush2.bf16.xpose.msra.mxu0 0
    %1756 = vmatprep.mubr.bf16.mxu0 0
    %1757 = vmatmul.mubr.bf16.gmra.mxu0 %v1560
    %v1758 = vpop.f32.mrf.mxu0
    %v1759 = vadd.f32 %v463, %v1758
    %v1760 = vpop.f32.mrf.mxu0
    %v1761 = vpop.f32.mrf.mxu0
    %v1762 = vpop.f32.mrf.mxu0
    %1763 = vdwg.mxu0
    %1764 = vmatprep.subr.bf16.mxu0 0
    %1765 = vmatpush1.bf16.xpose.msra.mxu0 0
    %1766 = vmatprep.subr.bf16.mxu0 0
    %1767 = vmatpush1.bf16.xpose.msra.mxu0 0
    %1768 = vmatprep.subr.bf16.mxu0 0
    %1769 = vmatpush1.bf16.xpose.msra.mxu0 0
    %1770 = vmatprep.subr.bf16.mxu0 0
    %1771 = vmatpush1.bf16.xpose.msra.mxu0 0
    %1772 = vmatprep.subr.bf16.mxu0 0
    %1773 = vmatpush1.bf16.xpose.msra.mxu0 0
    %1774 = vmatprep.subr.bf16.mxu0 0
    %1775 = vmatpush1.bf16.xpose.msra.mxu0 0
    %1776 = vmatprep.subr.bf16.mxu0 0
    %1777 = vmatpush1.bf16.xpose.msra.mxu0 0
    %1778 = vmatprep.subr.bf16.mxu0 0
    %1779 = vmatpush1.bf16.xpose.msra.mxu0 %v448
    %1780 = vmatprep.subr.bf16.mxu0 0
    %1781 = vmatpush2.bf16.xpose.msra.mxu0 0
    %1782 = vmatprep.subr.bf16.mxu0 0
    %1783 = vmatpush2.bf16.xpose.msra.mxu0 0
    %1784 = vmatprep.subr.bf16.mxu0 0
    %1785 = vmatpush2.bf16.xpose.msra.mxu0 0
    %1786 = vmatprep.subr.bf16.mxu0 0
    %1787 = vmatpush2.bf16.xpose.msra.mxu0 0
    %1788 = vmatprep.subr.bf16.mxu0 0
    %1789 = vmatpush2.bf16.xpose.msra.mxu0 0
    %1790 = vmatprep.subr.bf16.mxu0 0
    %1791 = vmatpush2.bf16.xpose.msra.mxu0 0
    %1792 = vmatprep.subr.bf16.mxu0 0
    %1793 = vmatpush2.bf16.xpose.msra.mxu0 0
    %1794 = vmatprep.subr.bf16.mxu0 0
    %1795 = vmatpush2.bf16.xpose.msra.mxu0 0
    %1796 = vmatprep.mubr.bf16.mxu0 0
    %1797 = vmatmul.mubr.bf16.gmra.mxu0 %v1561
    %v1798 = vpop.f32.mrf.mxu0
    %v1799 = vadd.f32 %v464, %v1798
    %v1800 = vpop.f32.mrf.mxu0
    %v1801 = vpop.f32.mrf.mxu0
    %v1802 = vpop.f32.mrf.mxu0
    %1803 = vdwg.mxu0
    %1804 = vmatprep.subr.bf16.mxu0 0
    %1805 = vmatpush1.bf16.xpose.msra.mxu0 0
    %1806 = vmatprep.subr.bf16.mxu0 0
    %1807 = vmatpush1.bf16.xpose.msra.mxu0 0
    %1808 = vmatprep.subr.bf16.mxu0 0
    %1809 = vmatpush1.bf16.xpose.msra.mxu0 0
    %1810 = vmatprep.subr.bf16.mxu0 0
    %1811 = vmatpush1.bf16.xpose.msra.mxu0 0
    %1812 = vmatprep.subr.bf16.mxu0 0
    %1813 = vmatpush1.bf16.xpose.msra.mxu0 0
    %1814 = vmatprep.subr.bf16.mxu0 0
    %1815 = vmatpush1.bf16.xpose.msra.mxu0 0
    %1816 = vmatprep.subr.bf16.mxu0 0
    %1817 = vmatpush1.bf16.xpose.msra.mxu0 0
    %1818 = vmatprep.subr.bf16.mxu0 0
    %1819 = vmatpush1.bf16.xpose.msra.mxu0 %v449
    %1820 = vmatprep.subr.bf16.mxu0 0
    %1821 = vmatpush2.bf16.xpose.msra.mxu0 0
    %1822 = vmatprep.subr.bf16.mxu0 0
    %1823 = vmatpush2.bf16.xpose.msra.mxu0 0
    %1824 = vmatprep.subr.bf16.mxu0 0
    %1825 = vmatpush2.bf16.xpose.msra.mxu0 0
    %1826 = vmatprep.subr.bf16.mxu0 0
    %1827 = vmatpush2.bf16.xpose.msra.mxu0 0
    %1828 = vmatprep.subr.bf16.mxu0 0
    %1829 = vmatpush2.bf16.xpose.msra.mxu0 0
    %1830 = vmatprep.subr.bf16.mxu0 0
    %1831 = vmatpush2.bf16.xpose.msra.mxu0 0
    %1832 = vmatprep.subr.bf16.mxu0 0
    %1833 = vmatpush2.bf16.xpose.msra.mxu0 0
    %1834 = vmatprep.subr.bf16.mxu0 0
    %1835 = vmatpush2.bf16.xpose.msra.mxu0 0
    %1836 = vmatprep.mubr.bf16.mxu0 0
    %1837 = vmatmul.mubr.bf16.gmra.mxu0 %v1562
    %v1838 = vpop.f32.mrf.mxu0
    %v1839 = vadd.f32 %v465, %v1838
    %v1840 = vpop.f32.mrf.mxu0
    %v1841 = vpop.f32.mrf.mxu0
    %v1842 = vpop.f32.mrf.mxu0
    %1843 = vdwg.mxu0
    %1844 = vmatprep.subr.bf16.mxu0 0
    %1845 = vmatpush1.bf16.xpose.msra.mxu0 0
    %1846 = vmatprep.subr.bf16.mxu0 0
    %1847 = vmatpush1.bf16.xpose.msra.mxu0 0
    %1848 = vmatprep.subr.bf16.mxu0 0
    %1849 = vmatpush1.bf16.xpose.msra.mxu0 0
    %1850 = vmatprep.subr.bf16.mxu0 0
    %1851 = vmatpush1.bf16.xpose.msra.mxu0 0
    %1852 = vmatprep.subr.bf16.mxu0 0
    %1853 = vmatpush1.bf16.xpose.msra.mxu0 0
    %1854 = vmatprep.subr.bf16.mxu0 0
    %1855 = vmatpush1.bf16.xpose.msra.mxu0 0
    %1856 = vmatprep.subr.bf16.mxu0 0
    %1857 = vmatpush1.bf16.xpose.msra.mxu0 0
    %1858 = vmatprep.subr.bf16.mxu0 0
    %1859 = vmatpush1.bf16.xpose.msra.mxu0 %v450
    %1860 = vmatprep.subr.bf16.mxu0 0
    %1861 = vmatpush2.bf16.xpose.msra.mxu0 0
    %1862 = vmatprep.subr.bf16.mxu0 0
    %1863 = vmatpush2.bf16.xpose.msra.mxu0 0
    %1864 = vmatprep.subr.bf16.mxu0 0
    %1865 = vmatpush2.bf16.xpose.msra.mxu0 0
    %1866 = vmatprep.subr.bf16.mxu0 0
    %1867 = vmatpush2.bf16.xpose.msra.mxu0 0
    %1868 = vmatprep.subr.bf16.mxu0 0
    %1869 = vmatpush2.bf16.xpose.msra.mxu0 0
    %1870 = vmatprep.subr.bf16.mxu0 0
    %1871 = vmatpush2.bf16.xpose.msra.mxu0 0
    %1872 = vmatprep.subr.bf16.mxu0 0
    %1873 = vmatpush2.bf16.xpose.msra.mxu0 0
    %1874 = vmatprep.subr.bf16.mxu0 0
    %1875 = vmatpush2.bf16.xpose.msra.mxu0 0
    %1876 = vmatprep.mubr.bf16.mxu0 0
    %1877 = vmatmul.mubr.bf16.gmra.mxu0 %v1563
    %v1878 = vpop.f32.mrf.mxu0
    %v1879 = vadd.f32 %v466, %v1878
    %v1880 = vpop.f32.mrf.mxu0
    %v1881 = vpop.f32.mrf.mxu0
    %v1882 = vpop.f32.mrf.mxu0
    %1883 = vdwg.mxu0
    %v1884 = vsel %vm795, %v1599, -inf
    %1885 = vmax.xlane.f32.xlu0 %v1884
    %v1886 = vpop.xlane.xlu0 %1885
    %v1887 = vsel %vm795, %v1639, -inf
    %1888 = vmax.xlane.f32.xlu0 %v1887
    %v1889 = vpop.xlane.xlu0 %1888
    %v1890 = vsel %vm795, %v1679, -inf
    %1891 = vmax.xlane.f32.xlu0 %v1890
    %v1892 = vpop.xlane.xlu0 %1891
    %v1893 = vsel %vm795, %v1719, -inf
    %1894 = vmax.xlane.f32.xlu0 %v1893
    %v1895 = vpop.xlane.xlu0 %1894
    %v1896 = vsel %vm795, %v1759, -inf
    %1897 = vmax.xlane.f32.xlu0 %v1896
    %v1898 = vpop.xlane.xlu0 %1897
    %v1899 = vsel %vm795, %v1799, -inf
    %1900 = vmax.xlane.f32.xlu0 %v1899
    %v1901 = vpop.xlane.xlu0 %1900
    %v1902 = vsel %vm795, %v1839, -inf
    %1903 = vmax.xlane.f32.xlu0 %v1902
    %v1904 = vpop.xlane.xlu0 %1903
    %v1905 = vsel %vm795, %v1879, -inf
    %1906 = vmax.xlane.f32.xlu0 %v1905
    %v1907 = vpop.xlane.xlu0 %1906
    %v1908 = vrot.slane %v1886, 4
    %v1909 = vmax.f32 %v1886, %v1908
    %v1910 = vrot.slane %v1909, 2
    %v1911 = vmax.f32 %v1909, %v1910
    %v1912 = vrot.slane %v1911, 1
    %v1913 = vmax.f32 %v1911, %v1912
    %v1914 = vrot.slane %v1889, 4
    %v1915 = vmax.f32 %v1889, %v1914
    %v1916 = vrot.slane %v1915, 2
    %v1917 = vmax.f32 %v1915, %v1916
    %v1918 = vrot.slane %v1917, 1
    %v1919 = vmax.f32 %v1917, %v1918
    %v1920 = vrot.slane %v1892, 4
    %v1921 = vmax.f32 %v1892, %v1920
    %v1922 = vrot.slane %v1921, 2
    %v1923 = vmax.f32 %v1921, %v1922
    %v1924 = vrot.slane %v1923, 1
    %v1925 = vmax.f32 %v1923, %v1924
    %v1926 = vrot.slane %v1895, 4
    %v1927 = vmax.f32 %v1895, %v1926
    %v1928 = vrot.slane %v1927, 2
    %v1929 = vmax.f32 %v1927, %v1928
    %v1930 = vrot.slane %v1929, 1
    %v1931 = vmax.f32 %v1929, %v1930
    %v1932 = vrot.slane %v1898, 4
    %v1933 = vmax.f32 %v1898, %v1932
    %v1934 = vrot.slane %v1933, 2
    %v1935 = vmax.f32 %v1933, %v1934
    %v1936 = vrot.slane %v1935, 1
    %v1937 = vmax.f32 %v1935, %v1936
    %v1938 = vrot.slane %v1901, 4
    %v1939 = vmax.f32 %v1901, %v1938
    %v1940 = vrot.slane %v1939, 2
    %v1941 = vmax.f32 %v1939, %v1940
    %v1942 = vrot.slane %v1941, 1
    %v1943 = vmax.f32 %v1941, %v1942
    %v1944 = vrot.slane %v1904, 4
    %v1945 = vmax.f32 %v1904, %v1944
    %v1946 = vrot.slane %v1945, 2
    %v1947 = vmax.f32 %v1945, %v1946
    %v1948 = vrot.slane %v1947, 1
    %v1949 = vmax.f32 %v1947, %v1948
    %v1950 = vrot.slane %v1907, 4
    %v1951 = vmax.f32 %v1907, %v1950
    %v1952 = vrot.slane %v1951, 2
    %v1953 = vmax.f32 %v1951, %v1952
    %v1954 = vrot.slane %v1953, 1
    %v1955 = vmax.f32 %v1953, %v1954
    %vm1956 = vweird.f32 %v1913
    %vm1957 = vweird.f32 %v1919
    %vm1958 = vweird.f32 %v1925
    %vm1959 = vweird.f32 %v1931
    %vm1960 = vweird.f32 %v1937
    %vm1961 = vweird.f32 %v1943
    %vm1962 = vweird.f32 %v1949
    %vm1963 = vweird.f32 %v1955
    %vm1964 = vmxor %vm1956, 1
    %vm1965 = vmxor %vm1957, 1
    %vm1966 = vmxor %vm1958, 1
    %vm1967 = vmxor %vm1959, 1
    %vm1968 = vmxor %vm1960, 1
    %vm1969 = vmxor %vm1961, 1
    %vm1970 = vmxor %vm1962, 1
    %vm1971 = vmxor %vm1963, 1
    %v1972 = vsel %vm1964, %v1913, 0.0
    %v1973 = vsel %vm1965, %v1919, 0.0
    %v1974 = vsel %vm1966, %v1925, 0.0
    %v1975 = vsel %vm1967, %v1931, 0.0
    %v1976 = vsel %vm1968, %v1937, 0.0
    %v1977 = vsel %vm1969, %v1943, 0.0
    %v1978 = vsel %vm1970, %v1949, 0.0
    %v1979 = vsel %vm1971, %v1955, 0.0
    %v1980 = vsub.f32 %v1599, %v1972
    %v1981 = vsub.f32 %v1639, %v1973
    %v1982 = vsub.f32 %v1679, %v1974
    %v1983 = vsub.f32 %v1719, %v1975
    %v1984 = vsub.f32 %v1759, %v1976
    %v1985 = vsub.f32 %v1799, %v1977
    %v1986 = vsub.f32 %v1839, %v1978
    %v1987 = vsub.f32 %v1879, %v1979
    %v1988 = vmul.f32 %v1980, 1.442695
    %v1989 = vpow.pop %v1988
    %v1990 = vmul.f32 %v1981, 1.442695
    %v1991 = vpow.pop %v1990
    %v1992 = vmul.f32 %v1982, 1.442695
    %v1993 = vpow.pop %v1992
    %v1994 = vmul.f32 %v1983, 1.442695
    %v1995 = vpow.pop %v1994
    %v1996 = vmul.f32 %v1984, 1.442695
    %v1997 = vpow.pop %v1996
    %v1998 = vmul.f32 %v1985, 1.442695
    %v1999 = vpow.pop %v1998
    %v2000 = vmul.f32 %v1986, 1.442695
    %v2001 = vpow.pop %v2000
    %v2002 = vmul.f32 %v1987, 1.442695
    %v2003 = vpow.pop %v2002
    %v2004 = vsel %vm795, %v1989, 0.0
    %2005 = vadd.xlane.f32.xlu0 %v2004
    %v2006 = vpop.xlane.xlu0 %2005
    %v2007 = vsel %vm795, %v1991, 0.0
    %2008 = vadd.xlane.f32.xlu0 %v2007
    %v2009 = vpop.xlane.xlu0 %2008
    %v2010 = vsel %vm795, %v1993, 0.0
    %2011 = vadd.xlane.f32.xlu0 %v2010
    %v2012 = vpop.xlane.xlu0 %2011
    %v2013 = vsel %vm795, %v1995, 0.0
    %2014 = vadd.xlane.f32.xlu0 %v2013
    %v2015 = vpop.xlane.xlu0 %2014
    %v2016 = vsel %vm795, %v1997, 0.0
    %2017 = vadd.xlane.f32.xlu0 %v2016
    %v2018 = vpop.xlane.xlu0 %2017
    %v2019 = vsel %vm795, %v1999, 0.0
    %2020 = vadd.xlane.f32.xlu0 %v2019
    %v2021 = vpop.xlane.xlu0 %2020
    %v2022 = vsel %vm795, %v2001, 0.0
    %2023 = vadd.xlane.f32.xlu0 %v2022
    %v2024 = vpop.xlane.xlu0 %2023
    %v2025 = vsel %vm795, %v2003, 0.0
    %2026 = vadd.xlane.f32.xlu0 %v2025
    %v2027 = vpop.xlane.xlu0 %2026
    %v2028 = vrot.slane %v2006, 4
    %v2029 = vadd.f32 %v2006, %v2028
    %v2030 = vrot.slane %v2029, 2
    %v2031 = vadd.f32 %v2029, %v2030
    %v2032 = vrot.slane %v2031, 1
    %v2033 = vadd.f32 %v2031, %v2032
    %v2034 = vrot.slane %v2009, 4
    %v2035 = vadd.f32 %v2009, %v2034
    %v2036 = vrot.slane %v2035, 2
    %v2037 = vadd.f32 %v2035, %v2036
    %v2038 = vrot.slane %v2037, 1
    %v2039 = vadd.f32 %v2037, %v2038
    %v2040 = vrot.slane %v2012, 4
    %v2041 = vadd.f32 %v2012, %v2040
    %v2042 = vrot.slane %v2041, 2
    %v2043 = vadd.f32 %v2041, %v2042
    %v2044 = vrot.slane %v2043, 1
    %v2045 = vadd.f32 %v2043, %v2044
    %v2046 = vrot.slane %v2015, 4
    %v2047 = vadd.f32 %v2015, %v2046
    %v2048 = vrot.slane %v2047, 2
    %v2049 = vadd.f32 %v2047, %v2048
    %v2050 = vrot.slane %v2049, 1
    %v2051 = vadd.f32 %v2049, %v2050
    %v2052 = vrot.slane %v2018, 4
    %v2053 = vadd.f32 %v2018, %v2052
    %v2054 = vrot.slane %v2053, 2
    %v2055 = vadd.f32 %v2053, %v2054
    %v2056 = vrot.slane %v2055, 1
    %v2057 = vadd.f32 %v2055, %v2056
    %v2058 = vrot.slane %v2021, 4
    %v2059 = vadd.f32 %v2021, %v2058
    %v2060 = vrot.slane %v2059, 2
    %v2061 = vadd.f32 %v2059, %v2060
    %v2062 = vrot.slane %v2061, 1
    %v2063 = vadd.f32 %v2061, %v2062
    %v2064 = vrot.slane %v2024, 4
    %v2065 = vadd.f32 %v2024, %v2064
    %v2066 = vrot.slane %v2065, 2
    %v2067 = vadd.f32 %v2065, %v2066
    %v2068 = vrot.slane %v2067, 1
    %v2069 = vadd.f32 %v2067, %v2068
    %v2070 = vrot.slane %v2027, 4
    %v2071 = vadd.f32 %v2027, %v2070
    %v2072 = vrot.slane %v2071, 2
    %v2073 = vadd.f32 %v2071, %v2072
    %v2074 = vrot.slane %v2073, 1
    %v2075 = vadd.f32 %v2073, %v2074
    %v2076 = vlog2.pop %v2033
    %v2077 = vmul.f32 %v2076, 0.6931472
    %v2078 = vlog2.pop %v2039
    %v2079 = vmul.f32 %v2078, 0.6931472
    %v2080 = vlog2.pop %v2045
    %v2081 = vmul.f32 %v2080, 0.6931472
    %v2082 = vlog2.pop %v2051
    %v2083 = vmul.f32 %v2082, 0.6931472
    %v2084 = vlog2.pop %v2057
    %v2085 = vmul.f32 %v2084, 0.6931472
    %v2086 = vlog2.pop %v2063
    %v2087 = vmul.f32 %v2086, 0.6931472
    %v2088 = vlog2.pop %v2069
    %v2089 = vmul.f32 %v2088, 0.6931472
    %v2090 = vlog2.pop %v2075
    %v2091 = vmul.f32 %v2090, 0.6931472
    %v2092 = vadd.f32 %v1972, %v2077
    %v2093 = vadd.f32 %v1973, %v2079
    %v2094 = vadd.f32 %v1974, %v2081
    %v2095 = vadd.f32 %v1975, %v2083
    %v2096 = vadd.f32 %v1976, %v2085
    %v2097 = vadd.f32 %v1977, %v2087
    %v2098 = vadd.f32 %v1978, %v2089
    %v2099 = vadd.f32 %v1979, %v2091
    %v2100 = vpack.c.bf16 %v407, %v407
    %v2101 = vpack.c.bf16 %v411, %v411
    %v2102 = vpack.c.bf16 %v417, %v417
    %v2103 = vpack.c.bf16 %v421, %v421
    %v2104 = vpack.c.bf16 %v427, %v427
    %v2105 = vpack.c.bf16 %v431, %v431
    %v2106 = vpack.c.bf16 %v437, %v437
    %v2107 = vpack.c.bf16 %v441, %v441
    %2108 = vmatprep.subr.bf16.mxu0 0
    %2109 = vmatpush1.bf16.xpose.msra.mxu0 0
    %2110 = vmatprep.subr.bf16.mxu0 0
    %2111 = vmatpush1.bf16.xpose.msra.mxu0 0
    %2112 = vmatprep.subr.bf16.mxu0 0
    %2113 = vmatpush1.bf16.xpose.msra.mxu0 0
    %2114 = vmatprep.subr.bf16.mxu0 0
    %2115 = vmatpush1.bf16.xpose.msra.mxu0 0
    %2116 = vmatprep.subr.bf16.mxu0 0
    %2117 = vmatpush1.bf16.xpose.msra.mxu0 0
    %2118 = vmatprep.subr.bf16.mxu0 0
    %2119 = vmatpush1.bf16.xpose.msra.mxu0 0
    %2120 = vmatprep.subr.bf16.mxu0 0
    %2121 = vmatpush1.bf16.xpose.msra.mxu0 0
    %2122 = vmatprep.subr.bf16.mxu0 0
    %2123 = vmatpush1.bf16.xpose.msra.mxu0 %v443
    %2124 = vmatprep.subr.bf16.mxu0 0
    %2125 = vmatpush2.bf16.xpose.msra.mxu0 0
    %2126 = vmatprep.subr.bf16.mxu0 0
    %2127 = vmatpush2.bf16.xpose.msra.mxu0 0
    %2128 = vmatprep.subr.bf16.mxu0 0
    %2129 = vmatpush2.bf16.xpose.msra.mxu0 0
    %2130 = vmatprep.subr.bf16.mxu0 0
    %2131 = vmatpush2.bf16.xpose.msra.mxu0 0
    %2132 = vmatprep.subr.bf16.mxu0 0
    %2133 = vmatpush2.bf16.xpose.msra.mxu0 0
    %2134 = vmatprep.subr.bf16.mxu0 0
    %2135 = vmatpush2.bf16.xpose.msra.mxu0 0
    %2136 = vmatprep.subr.bf16.mxu0 0
    %2137 = vmatpush2.bf16.xpose.msra.mxu0 0
    %2138 = vmatprep.subr.bf16.mxu0 0
    %2139 = vmatpush2.bf16.xpose.msra.mxu0 0
    %2140 = vmatprep.mubr.bf16.mxu0 0
    %2141 = vmatmul.mubr.bf16.gmra.mxu0 %v2100
    %v2142 = vpop.f32.mrf.mxu0
    %v2143 = vadd.f32 %v459, %v2142
    %v2144 = vpop.f32.mrf.mxu0
    %v2145 = vpop.f32.mrf.mxu0
    %v2146 = vpop.f32.mrf.mxu0
    %2147 = vdwg.mxu0
    %2148 = vmatprep.subr.bf16.mxu0 0
    %2149 = vmatpush1.bf16.xpose.msra.mxu0 0
    %2150 = vmatprep.subr.bf16.mxu0 0
    %2151 = vmatpush1.bf16.xpose.msra.mxu0 0
    %2152 = vmatprep.subr.bf16.mxu0 0
    %2153 = vmatpush1.bf16.xpose.msra.mxu0 0
    %2154 = vmatprep.subr.bf16.mxu0 0
    %2155 = vmatpush1.bf16.xpose.msra.mxu0 0
    %2156 = vmatprep.subr.bf16.mxu0 0
    %2157 = vmatpush1.bf16.xpose.msra.mxu0 0
    %2158 = vmatprep.subr.bf16.mxu0 0
    %2159 = vmatpush1.bf16.xpose.msra.mxu0 0
    %2160 = vmatprep.subr.bf16.mxu0 0
    %2161 = vmatpush1.bf16.xpose.msra.mxu0 0
    %2162 = vmatprep.subr.bf16.mxu0 0
    %2163 = vmatpush1.bf16.xpose.msra.mxu0 %v444
    %2164 = vmatprep.subr.bf16.mxu0 0
    %2165 = vmatpush2.bf16.xpose.msra.mxu0 0
    %2166 = vmatprep.subr.bf16.mxu0 0
    %2167 = vmatpush2.bf16.xpose.msra.mxu0 0
    %2168 = vmatprep.subr.bf16.mxu0 0
    %2169 = vmatpush2.bf16.xpose.msra.mxu0 0
    %2170 = vmatprep.subr.bf16.mxu0 0
    %2171 = vmatpush2.bf16.xpose.msra.mxu0 0
    %2172 = vmatprep.subr.bf16.mxu0 0
    %2173 = vmatpush2.bf16.xpose.msra.mxu0 0
    %2174 = vmatprep.subr.bf16.mxu0 0
    %2175 = vmatpush2.bf16.xpose.msra.mxu0 0
    %2176 = vmatprep.subr.bf16.mxu0 0
    %2177 = vmatpush2.bf16.xpose.msra.mxu0 0
    %2178 = vmatprep.subr.bf16.mxu0 0
    %2179 = vmatpush2.bf16.xpose.msra.mxu0 0
    %2180 = vmatprep.mubr.bf16.mxu0 0
    %2181 = vmatmul.mubr.bf16.gmra.mxu0 %v2101
    %v2182 = vpop.f32.mrf.mxu0
    %v2183 = vadd.f32 %v460, %v2182
    %v2184 = vpop.f32.mrf.mxu0
    %v2185 = vpop.f32.mrf.mxu0
    %v2186 = vpop.f32.mrf.mxu0
    %2187 = vdwg.mxu0
    %2188 = vmatprep.subr.bf16.mxu0 0
    %2189 = vmatpush1.bf16.xpose.msra.mxu0 0
    %2190 = vmatprep.subr.bf16.mxu0 0
    %2191 = vmatpush1.bf16.xpose.msra.mxu0 0
    %2192 = vmatprep.subr.bf16.mxu0 0
    %2193 = vmatpush1.bf16.xpose.msra.mxu0 0
    %2194 = vmatprep.subr.bf16.mxu0 0
    %2195 = vmatpush1.bf16.xpose.msra.mxu0 0
    %2196 = vmatprep.subr.bf16.mxu0 0
    %2197 = vmatpush1.bf16.xpose.msra.mxu0 0
    %2198 = vmatprep.subr.bf16.mxu0 0
    %2199 = vmatpush1.bf16.xpose.msra.mxu0 0
    %2200 = vmatprep.subr.bf16.mxu0 0
    %2201 = vmatpush1.bf16.xpose.msra.mxu0 0
    %2202 = vmatprep.subr.bf16.mxu0 0
    %2203 = vmatpush1.bf16.xpose.msra.mxu0 %v445
    %2204 = vmatprep.subr.bf16.mxu0 0
    %2205 = vmatpush2.bf16.xpose.msra.mxu0 0
    %2206 = vmatprep.subr.bf16.mxu0 0
    %2207 = vmatpush2.bf16.xpose.msra.mxu0 0
    %2208 = vmatprep.subr.bf16.mxu0 0
    %2209 = vmatpush2.bf16.xpose.msra.mxu0 0
    %2210 = vmatprep.subr.bf16.mxu0 0
    %2211 = vmatpush2.bf16.xpose.msra.mxu0 0
    %2212 = vmatprep.subr.bf16.mxu0 0
    %2213 = vmatpush2.bf16.xpose.msra.mxu0 0
    %2214 = vmatprep.subr.bf16.mxu0 0
    %2215 = vmatpush2.bf16.xpose.msra.mxu0 0
    %2216 = vmatprep.subr.bf16.mxu0 0
    %2217 = vmatpush2.bf16.xpose.msra.mxu0 0
    %2218 = vmatprep.subr.bf16.mxu0 0
    %2219 = vmatpush2.bf16.xpose.msra.mxu0 0
    %2220 = vmatprep.mubr.bf16.mxu0 0
    %2221 = vmatmul.mubr.bf16.gmra.mxu0 %v2102
    %v2222 = vpop.f32.mrf.mxu0
    %v2223 = vadd.f32 %v461, %v2222
    %v2224 = vpop.f32.mrf.mxu0
    %v2225 = vpop.f32.mrf.mxu0
    %v2226 = vpop.f32.mrf.mxu0
    %2227 = vdwg.mxu0
    %2228 = vmatprep.subr.bf16.mxu0 0
    %2229 = vmatpush1.bf16.xpose.msra.mxu0 0
    %2230 = vmatprep.subr.bf16.mxu0 0
    %2231 = vmatpush1.bf16.xpose.msra.mxu0 0
    %2232 = vmatprep.subr.bf16.mxu0 0
    %2233 = vmatpush1.bf16.xpose.msra.mxu0 0
    %2234 = vmatprep.subr.bf16.mxu0 0
    %2235 = vmatpush1.bf16.xpose.msra.mxu0 0
    %2236 = vmatprep.subr.bf16.mxu0 0
    %2237 = vmatpush1.bf16.xpose.msra.mxu0 0
    %2238 = vmatprep.subr.bf16.mxu0 0
    %2239 = vmatpush1.bf16.xpose.msra.mxu0 0
    %2240 = vmatprep.subr.bf16.mxu0 0
    %2241 = vmatpush1.bf16.xpose.msra.mxu0 0
    %2242 = vmatprep.subr.bf16.mxu0 0
    %2243 = vmatpush1.bf16.xpose.msra.mxu0 %v446
    %2244 = vmatprep.subr.bf16.mxu0 0
    %2245 = vmatpush2.bf16.xpose.msra.mxu0 0
    %2246 = vmatprep.subr.bf16.mxu0 0
    %2247 = vmatpush2.bf16.xpose.msra.mxu0 0
    %2248 = vmatprep.subr.bf16.mxu0 0
    %2249 = vmatpush2.bf16.xpose.msra.mxu0 0
    %2250 = vmatprep.subr.bf16.mxu0 0
    %2251 = vmatpush2.bf16.xpose.msra.mxu0 0
    %2252 = vmatprep.subr.bf16.mxu0 0
    %2253 = vmatpush2.bf16.xpose.msra.mxu0 0
    %2254 = vmatprep.subr.bf16.mxu0 0
    %2255 = vmatpush2.bf16.xpose.msra.mxu0 0
    %2256 = vmatprep.subr.bf16.mxu0 0
    %2257 = vmatpush2.bf16.xpose.msra.mxu0 0
    %2258 = vmatprep.subr.bf16.mxu0 0
    %2259 = vmatpush2.bf16.xpose.msra.mxu0 0
    %2260 = vmatprep.mubr.bf16.mxu0 0
    %2261 = vmatmul.mubr.bf16.gmra.mxu0 %v2103
    %v2262 = vpop.f32.mrf.mxu0
    %v2263 = vadd.f32 %v462, %v2262
    %v2264 = vpop.f32.mrf.mxu0
    %v2265 = vpop.f32.mrf.mxu0
    %v2266 = vpop.f32.mrf.mxu0
    %2267 = vdwg.mxu0
    %2268 = vmatprep.subr.bf16.mxu0 0
    %2269 = vmatpush1.bf16.xpose.msra.mxu0 0
    %2270 = vmatprep.subr.bf16.mxu0 0
    %2271 = vmatpush1.bf16.xpose.msra.mxu0 0
    %2272 = vmatprep.subr.bf16.mxu0 0
    %2273 = vmatpush1.bf16.xpose.msra.mxu0 0
    %2274 = vmatprep.subr.bf16.mxu0 0
    %2275 = vmatpush1.bf16.xpose.msra.mxu0 0
    %2276 = vmatprep.subr.bf16.mxu0 0
    %2277 = vmatpush1.bf16.xpose.msra.mxu0 0
    %2278 = vmatprep.subr.bf16.mxu0 0
    %2279 = vmatpush1.bf16.xpose.msra.mxu0 0
    %2280 = vmatprep.subr.bf16.mxu0 0
    %2281 = vmatpush1.bf16.xpose.msra.mxu0 0
    %2282 = vmatprep.subr.bf16.mxu0 0
    %2283 = vmatpush1.bf16.xpose.msra.mxu0 %v447
    %2284 = vmatprep.subr.bf16.mxu0 0
    %2285 = vmatpush2.bf16.xpose.msra.mxu0 0
    %2286 = vmatprep.subr.bf16.mxu0 0
    %2287 = vmatpush2.bf16.xpose.msra.mxu0 0
    %2288 = vmatprep.subr.bf16.mxu0 0
    %2289 = vmatpush2.bf16.xpose.msra.mxu0 0
    %2290 = vmatprep.subr.bf16.mxu0 0
    %2291 = vmatpush2.bf16.xpose.msra.mxu0 0
    %2292 = vmatprep.subr.bf16.mxu0 0
    %2293 = vmatpush2.bf16.xpose.msra.mxu0 0
    %2294 = vmatprep.subr.bf16.mxu0 0
    %2295 = vmatpush2.bf16.xpose.msra.mxu0 0
    %2296 = vmatprep.subr.bf16.mxu0 0
    %2297 = vmatpush2.bf16.xpose.msra.mxu0 0
    %2298 = vmatprep.subr.bf16.mxu0 0
    %2299 = vmatpush2.bf16.xpose.msra.mxu0 0
    %2300 = vmatprep.mubr.bf16.mxu0 0
    %2301 = vmatmul.mubr.bf16.gmra.mxu0 %v2104
    %v2302 = vpop.f32.mrf.mxu0
    %v2303 = vadd.f32 %v463, %v2302
    %v2304 = vpop.f32.mrf.mxu0
    %v2305 = vpop.f32.mrf.mxu0
    %v2306 = vpop.f32.mrf.mxu0
    %2307 = vdwg.mxu0
    %2308 = vmatprep.subr.bf16.mxu0 0
    %2309 = vmatpush1.bf16.xpose.msra.mxu0 0
    %2310 = vmatprep.subr.bf16.mxu0 0
    %2311 = vmatpush1.bf16.xpose.msra.mxu0 0
    %2312 = vmatprep.subr.bf16.mxu0 0
    %2313 = vmatpush1.bf16.xpose.msra.mxu0 0
    %2314 = vmatprep.subr.bf16.mxu0 0
    %2315 = vmatpush1.bf16.xpose.msra.mxu0 0
    %2316 = vmatprep.subr.bf16.mxu0 0
    %2317 = vmatpush1.bf16.xpose.msra.mxu0 0
    %2318 = vmatprep.subr.bf16.mxu0 0
    %2319 = vmatpush1.bf16.xpose.msra.mxu0 0
    %2320 = vmatprep.subr.bf16.mxu0 0
    %2321 = vmatpush1.bf16.xpose.msra.mxu0 0
    %2322 = vmatprep.subr.bf16.mxu0 0
    %2323 = vmatpush1.bf16.xpose.msra.mxu0 %v448
    %2324 = vmatprep.subr.bf16.mxu0 0
    %2325 = vmatpush2.bf16.xpose.msra.mxu0 0
    %2326 = vmatprep.subr.bf16.mxu0 0
    %2327 = vmatpush2.bf16.xpose.msra.mxu0 0
    %2328 = vmatprep.subr.bf16.mxu0 0
    %2329 = vmatpush2.bf16.xpose.msra.mxu0 0
    %2330 = vmatprep.subr.bf16.mxu0 0
    %2331 = vmatpush2.bf16.xpose.msra.mxu0 0
    %2332 = vmatprep.subr.bf16.mxu0 0
    %2333 = vmatpush2.bf16.xpose.msra.mxu0 0
    %2334 = vmatprep.subr.bf16.mxu0 0
    %2335 = vmatpush2.bf16.xpose.msra.mxu0 0
    %2336 = vmatprep.subr.bf16.mxu0 0
    %2337 = vmatpush2.bf16.xpose.msra.mxu0 0
    %2338 = vmatprep.subr.bf16.mxu0 0
    %2339 = vmatpush2.bf16.xpose.msra.mxu0 0
    %2340 = vmatprep.mubr.bf16.mxu0 0
    %2341 = vmatmul.mubr.bf16.gmra.mxu0 %v2105
    %v2342 = vpop.f32.mrf.mxu0
    %v2343 = vadd.f32 %v464, %v2342
    %v2344 = vpop.f32.mrf.mxu0
    %v2345 = vpop.f32.mrf.mxu0
    %v2346 = vpop.f32.mrf.mxu0
    %2347 = vdwg.mxu0
    %2348 = vmatprep.subr.bf16.mxu0 0
    %2349 = vmatpush1.bf16.xpose.msra.mxu0 0
    %2350 = vmatprep.subr.bf16.mxu0 0
    %2351 = vmatpush1.bf16.xpose.msra.mxu0 0
    %2352 = vmatprep.subr.bf16.mxu0 0
    %2353 = vmatpush1.bf16.xpose.msra.mxu0 0
    %2354 = vmatprep.subr.bf16.mxu0 0
    %2355 = vmatpush1.bf16.xpose.msra.mxu0 0
    %2356 = vmatprep.subr.bf16.mxu0 0
    %2357 = vmatpush1.bf16.xpose.msra.mxu0 0
    %2358 = vmatprep.subr.bf16.mxu0 0
    %2359 = vmatpush1.bf16.xpose.msra.mxu0 0
    %2360 = vmatprep.subr.bf16.mxu0 0
    %2361 = vmatpush1.bf16.xpose.msra.mxu0 0
    %2362 = vmatprep.subr.bf16.mxu0 0
    %2363 = vmatpush1.bf16.xpose.msra.mxu0 %v449
    %2364 = vmatprep.subr.bf16.mxu0 0
    %2365 = vmatpush2.bf16.xpose.msra.mxu0 0
    %2366 = vmatprep.subr.bf16.mxu0 0
    %2367 = vmatpush2.bf16.xpose.msra.mxu0 0
    %2368 = vmatprep.subr.bf16.mxu0 0
    %2369 = vmatpush2.bf16.xpose.msra.mxu0 0
    %2370 = vmatprep.subr.bf16.mxu0 0
    %2371 = vmatpush2.bf16.xpose.msra.mxu0 0
    %2372 = vmatprep.subr.bf16.mxu0 0
    %2373 = vmatpush2.bf16.xpose.msra.mxu0 0
    %2374 = vmatprep.subr.bf16.mxu0 0
    %2375 = vmatpush2.bf16.xpose.msra.mxu0 0
    %2376 = vmatprep.subr.bf16.mxu0 0
    %2377 = vmatpush2.bf16.xpose.msra.mxu0 0
    %2378 = vmatprep.subr.bf16.mxu0 0
    %2379 = vmatpush2.bf16.xpose.msra.mxu0 0
    %2380 = vmatprep.mubr.bf16.mxu0 0
    %2381 = vmatmul.mubr.bf16.gmra.mxu0 %v2106
    %v2382 = vpop.f32.mrf.mxu0
    %v2383 = vadd.f32 %v465, %v2382
    %v2384 = vpop.f32.mrf.mxu0
    %v2385 = vpop.f32.mrf.mxu0
    %v2386 = vpop.f32.mrf.mxu0
    %2387 = vdwg.mxu0
    %2388 = vmatprep.subr.bf16.mxu0 0
    %2389 = vmatpush1.bf16.xpose.msra.mxu0 0
    %2390 = vmatprep.subr.bf16.mxu0 0
    %2391 = vmatpush1.bf16.xpose.msra.mxu0 0
    %2392 = vmatprep.subr.bf16.mxu0 0
    %2393 = vmatpush1.bf16.xpose.msra.mxu0 0
    %2394 = vmatprep.subr.bf16.mxu0 0
    %2395 = vmatpush1.bf16.xpose.msra.mxu0 0
    %2396 = vmatprep.subr.bf16.mxu0 0
    %2397 = vmatpush1.bf16.xpose.msra.mxu0 0
    %2398 = vmatprep.subr.bf16.mxu0 0
    %2399 = vmatpush1.bf16.xpose.msra.mxu0 0
    %2400 = vmatprep.subr.bf16.mxu0 0
    %2401 = vmatpush1.bf16.xpose.msra.mxu0 0
    %2402 = vmatprep.subr.bf16.mxu0 0
    %2403 = vmatpush1.bf16.xpose.msra.mxu0 %v450
    %2404 = vmatprep.subr.bf16.mxu0 0
    %2405 = vmatpush2.bf16.xpose.msra.mxu0 0
    %2406 = vmatprep.subr.bf16.mxu0 0
    %2407 = vmatpush2.bf16.xpose.msra.mxu0 0
    %2408 = vmatprep.subr.bf16.mxu0 0
    %2409 = vmatpush2.bf16.xpose.msra.mxu0 0
    %2410 = vmatprep.subr.bf16.mxu0 0
    %2411 = vmatpush2.bf16.xpose.msra.mxu0 0
    %2412 = vmatprep.subr.bf16.mxu0 0
    %2413 = vmatpush2.bf16.xpose.msra.mxu0 0
    %2414 = vmatprep.subr.bf16.mxu0 0
    %2415 = vmatpush2.bf16.xpose.msra.mxu0 0
    %2416 = vmatprep.subr.bf16.mxu0 0
    %2417 = vmatpush2.bf16.xpose.msra.mxu0 0
    %2418 = vmatprep.subr.bf16.mxu0 0
    %2419 = vmatpush2.bf16.xpose.msra.mxu0 0
    %2420 = vmatprep.mubr.bf16.mxu0 0
    %2421 = vmatmul.mubr.bf16.gmra.mxu0 %v2107
    %v2422 = vpop.f32.mrf.mxu0
    %v2423 = vadd.f32 %v466, %v2422
    %v2424 = vpop.f32.mrf.mxu0
    %v2425 = vpop.f32.mrf.mxu0
    %v2426 = vpop.f32.mrf.mxu0
    %2427 = vdwg.mxu0
    %v2428 = vsel %vm795, %v2143, -inf
    %2429 = vmax.xlane.f32.xlu0 %v2428
    %v2430 = vpop.xlane.xlu0 %2429
    %v2431 = vsel %vm795, %v2183, -inf
    %2432 = vmax.xlane.f32.xlu0 %v2431
    %v2433 = vpop.xlane.xlu0 %2432
    %v2434 = vsel %vm795, %v2223, -inf
    %2435 = vmax.xlane.f32.xlu0 %v2434
    %v2436 = vpop.xlane.xlu0 %2435
    %v2437 = vsel %vm795, %v2263, -inf
    %2438 = vmax.xlane.f32.xlu0 %v2437
    %v2439 = vpop.xlane.xlu0 %2438
    %v2440 = vsel %vm795, %v2303, -inf
    %2441 = vmax.xlane.f32.xlu0 %v2440
    %v2442 = vpop.xlane.xlu0 %2441
    %v2443 = vsel %vm795, %v2343, -inf
    %2444 = vmax.xlane.f32.xlu0 %v2443
    %v2445 = vpop.xlane.xlu0 %2444
    %v2446 = vsel %vm795, %v2383, -inf
    %2447 = vmax.xlane.f32.xlu0 %v2446
    %v2448 = vpop.xlane.xlu0 %2447
    %v2449 = vsel %vm795, %v2423, -inf
    %2450 = vmax.xlane.f32.xlu0 %v2449
    %v2451 = vpop.xlane.xlu0 %2450
    %v2452 = vrot.slane %v2430, 4
    %v2453 = vmax.f32 %v2430, %v2452
    %v2454 = vrot.slane %v2453, 2
    %v2455 = vmax.f32 %v2453, %v2454
    %v2456 = vrot.slane %v2455, 1
    %v2457 = vmax.f32 %v2455, %v2456
    %v2458 = vrot.slane %v2433, 4
    %v2459 = vmax.f32 %v2433, %v2458
    %v2460 = vrot.slane %v2459, 2
    %v2461 = vmax.f32 %v2459, %v2460
    %v2462 = vrot.slane %v2461, 1
    %v2463 = vmax.f32 %v2461, %v2462
    %v2464 = vrot.slane %v2436, 4
    %v2465 = vmax.f32 %v2436, %v2464
    %v2466 = vrot.slane %v2465, 2
    %v2467 = vmax.f32 %v2465, %v2466
    %v2468 = vrot.slane %v2467, 1
    %v2469 = vmax.f32 %v2467, %v2468
    %v2470 = vrot.slane %v2439, 4
    %v2471 = vmax.f32 %v2439, %v2470
    %v2472 = vrot.slane %v2471, 2
    %v2473 = vmax.f32 %v2471, %v2472
    %v2474 = vrot.slane %v2473, 1
    %v2475 = vmax.f32 %v2473, %v2474
    %v2476 = vrot.slane %v2442, 4
    %v2477 = vmax.f32 %v2442, %v2476
    %v2478 = vrot.slane %v2477, 2
    %v2479 = vmax.f32 %v2477, %v2478
    %v2480 = vrot.slane %v2479, 1
    %v2481 = vmax.f32 %v2479, %v2480
    %v2482 = vrot.slane %v2445, 4
    %v2483 = vmax.f32 %v2445, %v2482
    %v2484 = vrot.slane %v2483, 2
    %v2485 = vmax.f32 %v2483, %v2484
    %v2486 = vrot.slane %v2485, 1
    %v2487 = vmax.f32 %v2485, %v2486
    %v2488 = vrot.slane %v2448, 4
    %v2489 = vmax.f32 %v2448, %v2488
    %v2490 = vrot.slane %v2489, 2
    %v2491 = vmax.f32 %v2489, %v2490
    %v2492 = vrot.slane %v2491, 1
    %v2493 = vmax.f32 %v2491, %v2492
    %v2494 = vrot.slane %v2451, 4
    %v2495 = vmax.f32 %v2451, %v2494
    %v2496 = vrot.slane %v2495, 2
    %v2497 = vmax.f32 %v2495, %v2496
    %v2498 = vrot.slane %v2497, 1
    %v2499 = vmax.f32 %v2497, %v2498
    %vm2500 = vweird.f32 %v2457
    %vm2501 = vweird.f32 %v2463
    %vm2502 = vweird.f32 %v2469
    %vm2503 = vweird.f32 %v2475
    %vm2504 = vweird.f32 %v2481
    %vm2505 = vweird.f32 %v2487
    %vm2506 = vweird.f32 %v2493
    %vm2507 = vweird.f32 %v2499
    %vm2508 = vmxor %vm2500, 1
    %vm2509 = vmxor %vm2501, 1
    %vm2510 = vmxor %vm2502, 1
    %vm2511 = vmxor %vm2503, 1
    %vm2512 = vmxor %vm2504, 1
    %vm2513 = vmxor %vm2505, 1
    %vm2514 = vmxor %vm2506, 1
    %vm2515 = vmxor %vm2507, 1
    %v2516 = vsel %vm2508, %v2457, 0.0
    %v2517 = vsel %vm2509, %v2463, 0.0
    %v2518 = vsel %vm2510, %v2469, 0.0
    %v2519 = vsel %vm2511, %v2475, 0.0
    %v2520 = vsel %vm2512, %v2481, 0.0
    %v2521 = vsel %vm2513, %v2487, 0.0
    %v2522 = vsel %vm2514, %v2493, 0.0
    %v2523 = vsel %vm2515, %v2499, 0.0
    %v2524 = vsub.f32 %v2143, %v2516
    %v2525 = vsub.f32 %v2183, %v2517
    %v2526 = vsub.f32 %v2223, %v2518
    %v2527 = vsub.f32 %v2263, %v2519
    %v2528 = vsub.f32 %v2303, %v2520
    %v2529 = vsub.f32 %v2343, %v2521
    %v2530 = vsub.f32 %v2383, %v2522
    %v2531 = vsub.f32 %v2423, %v2523
    %v2532 = vmul.f32 %v2524, 1.442695
    %v2533 = vpow.pop %v2532
    %v2534 = vmul.f32 %v2525, 1.442695
    %v2535 = vpow.pop %v2534
    %v2536 = vmul.f32 %v2526, 1.442695
    %v2537 = vpow.pop %v2536
    %v2538 = vmul.f32 %v2527, 1.442695
    %v2539 = vpow.pop %v2538
    %v2540 = vmul.f32 %v2528, 1.442695
    %v2541 = vpow.pop %v2540
    %v2542 = vmul.f32 %v2529, 1.442695
    %v2543 = vpow.pop %v2542
    %v2544 = vmul.f32 %v2530, 1.442695
    %v2545 = vpow.pop %v2544
    %v2546 = vmul.f32 %v2531, 1.442695
    %v2547 = vpow.pop %v2546
    %v2548 = vsel %vm795, %v2533, 0.0
    %2549 = vadd.xlane.f32.xlu0 %v2548
    %v2550 = vpop.xlane.xlu0 %2549
    %v2551 = vsel %vm795, %v2535, 0.0
    %2552 = vadd.xlane.f32.xlu0 %v2551
    %v2553 = vpop.xlane.xlu0 %2552
    %v2554 = vsel %vm795, %v2537, 0.0
    %2555 = vadd.xlane.f32.xlu0 %v2554
    %v2556 = vpop.xlane.xlu0 %2555
    %v2557 = vsel %vm795, %v2539, 0.0
    %2558 = vadd.xlane.f32.xlu0 %v2557
    %v2559 = vpop.xlane.xlu0 %2558
    %v2560 = vsel %vm795, %v2541, 0.0
    %2561 = vadd.xlane.f32.xlu0 %v2560
    %v2562 = vpop.xlane.xlu0 %2561
    %v2563 = vsel %vm795, %v2543, 0.0
    %2564 = vadd.xlane.f32.xlu0 %v2563
    %v2565 = vpop.xlane.xlu0 %2564
    %v2566 = vsel %vm795, %v2545, 0.0
    %2567 = vadd.xlane.f32.xlu0 %v2566
    %v2568 = vpop.xlane.xlu0 %2567
    %v2569 = vsel %vm795, %v2547, 0.0
    %2570 = vadd.xlane.f32.xlu0 %v2569
    %v2571 = vpop.xlane.xlu0 %2570
    %v2572 = vrot.slane %v2550, 4
    %v2573 = vadd.f32 %v2550, %v2572
    %v2574 = vrot.slane %v2573, 2
    %v2575 = vadd.f32 %v2573, %v2574
    %v2576 = vrot.slane %v2575, 1
    %v2577 = vadd.f32 %v2575, %v2576
    %v2578 = vrot.slane %v2553, 4
    %v2579 = vadd.f32 %v2553, %v2578
    %v2580 = vrot.slane %v2579, 2
    %v2581 = vadd.f32 %v2579, %v2580
    %v2582 = vrot.slane %v2581, 1
    %v2583 = vadd.f32 %v2581, %v2582
    %v2584 = vrot.slane %v2556, 4
    %v2585 = vadd.f32 %v2556, %v2584
    %v2586 = vrot.slane %v2585, 2
    %v2587 = vadd.f32 %v2585, %v2586
    %v2588 = vrot.slane %v2587, 1
    %v2589 = vadd.f32 %v2587, %v2588
    %v2590 = vrot.slane %v2559, 4
    %v2591 = vadd.f32 %v2559, %v2590
    %v2592 = vrot.slane %v2591, 2
    %v2593 = vadd.f32 %v2591, %v2592
    %v2594 = vrot.slane %v2593, 1
    %v2595 = vadd.f32 %v2593, %v2594
    %v2596 = vrot.slane %v2562, 4
    %v2597 = vadd.f32 %v2562, %v2596
    %v2598 = vrot.slane %v2597, 2
    %v2599 = vadd.f32 %v2597, %v2598
    %v2600 = vrot.slane %v2599, 1
    %v2601 = vadd.f32 %v2599, %v2600
    %v2602 = vrot.slane %v2565, 4
    %v2603 = vadd.f32 %v2565, %v2602
    %v2604 = vrot.slane %v2603, 2
    %v2605 = vadd.f32 %v2603, %v2604
    %v2606 = vrot.slane %v2605, 1
    %v2607 = vadd.f32 %v2605, %v2606
    %v2608 = vrot.slane %v2568, 4
    %v2609 = vadd.f32 %v2568, %v2608
    %v2610 = vrot.slane %v2609, 2
    %v2611 = vadd.f32 %v2609, %v2610
    %v2612 = vrot.slane %v2611, 1
    %v2613 = vadd.f32 %v2611, %v2612
    %v2614 = vrot.slane %v2571, 4
    %v2615 = vadd.f32 %v2571, %v2614
    %v2616 = vrot.slane %v2615, 2
    %v2617 = vadd.f32 %v2615, %v2616
    %v2618 = vrot.slane %v2617, 1
    %v2619 = vadd.f32 %v2617, %v2618
    %v2620 = vlog2.pop %v2577
    %v2621 = vmul.f32 %v2620, 0.6931472
    %v2622 = vlog2.pop %v2583
    %v2623 = vmul.f32 %v2622, 0.6931472
    %v2624 = vlog2.pop %v2589
    %v2625 = vmul.f32 %v2624, 0.6931472
    %v2626 = vlog2.pop %v2595
    %v2627 = vmul.f32 %v2626, 0.6931472
    %v2628 = vlog2.pop %v2601
    %v2629 = vmul.f32 %v2628, 0.6931472
    %v2630 = vlog2.pop %v2607
    %v2631 = vmul.f32 %v2630, 0.6931472
    %v2632 = vlog2.pop %v2613
    %v2633 = vmul.f32 %v2632, 0.6931472
    %v2634 = vlog2.pop %v2619
    %v2635 = vmul.f32 %v2634, 0.6931472
    %v2636 = vadd.f32 %v2516, %v2621
    %v2637 = vadd.f32 %v2517, %v2623
    %v2638 = vadd.f32 %v2518, %v2625
    %v2639 = vadd.f32 %v2519, %v2627
    %v2640 = vadd.f32 %v2520, %v2629
    %v2641 = vadd.f32 %v2521, %v2631
    %v2642 = vadd.f32 %v2522, %v2633
    %v2643 = vadd.f32 %v2523, %v2635
    %vm2652 = vcmask 1041409
    %v2653 = vsel %vm2652, %v1005, %v1004
    %vm2654 = vcmask 1042434
    %v2655 = vsel %vm2654, %v1006, %v2653
    %vm2656 = vcmask 1043459
    %v2657 = vsel %vm2656, %v1007, %v2655
    %vm2658 = vcmask 1044484
    %v2659 = vsel %vm2658, %v1008, %v2657
    %vm2660 = vcmask 1045509
    %v2661 = vsel %vm2660, %v1009, %v2659
    %vm2662 = vcmask 1046534
    %v2663 = vsel %vm2662, %v1010, %v2661
    %vm2664 = vcmask 1047559
    %v2665 = vsel %vm2664, %v1011, %v2663
    %v2675 = vsel %vm2652, %v1549, %v1548
    %v2676 = vsel %vm2654, %v1550, %v2675
    %v2677 = vsel %vm2656, %v1551, %v2676
    %v2678 = vsel %vm2658, %v1552, %v2677
    %v2679 = vsel %vm2660, %v1553, %v2678
    %v2680 = vsel %vm2662, %v1554, %v2679
    %v2681 = vsel %vm2664, %v1555, %v2680
    %v2691 = vsel %vm2652, %v2093, %v2092
    %v2692 = vsel %vm2654, %v2094, %v2691
    %v2693 = vsel %vm2656, %v2095, %v2692
    %v2694 = vsel %vm2658, %v2096, %v2693
    %v2695 = vsel %vm2660, %v2097, %v2694
    %v2696 = vsel %vm2662, %v2098, %v2695
    %v2697 = vsel %vm2664, %v2099, %v2696
    %v2707 = vsel %vm2652, %v2637, %v2636
    %v2708 = vsel %vm2654, %v2638, %v2707
    %v2709 = vsel %vm2656, %v2639, %v2708
    %v2710 = vsel %vm2658, %v2640, %v2709
    %v2711 = vsel %vm2660, %v2641, %v2710
    %v2712 = vsel %vm2662, %v2642, %v2711
    %v2713 = vsel %vm2664, %v2643, %v2712
    %vm2715 = vcmask 7168
    %v2716 = vsel %vm2715, %v2665, %v2681
    %vm2717 = vcmask 15360
    %v2718 = vsel %vm2717, %v2716, %v2697
    %vm2719 = vcmask 23552
    %v2720 = vsel %vm2719, %v2718, %v2713
    %vm2721 = vcmask 31744
    %2722 = vst.msk [vmem:[%s4] sm:$0xff] %vm2721, %v2720
    // Predicated region
    $region34: #{tpu_custom_call.1} parent=1 // pred_check
      _
    $region35: #{tpu_custom_call.1} parent=1 // pred_check_branch
      %2724 = sbr.rel (0) target = $region37
    $region36: #{tpu_custom_call.1} parent=1 // pred_region
      _
    $region37: #{tpu_custom_call.1} parent=1 // pred_fallthru
      _
    // Predicated region
    $region38: #{tpu_custom_call.1} parent=1 // pred_check
      _
    $region39: #{tpu_custom_call.1} parent=1 // pred_check_branch
      %2726 = sbr.rel (0) target = $region41
    $region40: #{tpu_custom_call.1} parent=1 // pred_region
      _
    $region41: #{tpu_custom_call.1} parent=1 // pred_fallthru
      _
    %2727 = vsyncpa [#allocation3], 1
    %2728 = vsyncpa [#allocation5], 1
    %2729 = vsyncpa [#allocation8], 1

// kernel: tpu_custom_call.1
$region0: #{tpu_custom_call.1}
  #allocation0 [shape = 'u32[]', space=smem, size = 0x4, offset = 0x4, fixed_abs, tag = 'smem constant byte address 0x4 - core index']
  #allocation1 [shape = 'u32[144,128]{1,0:T(1,128)}', space=vmem, size = 0x12000, scoped, tag = 'internal scratch']
  %s0 = inlined_call_operand.hbm [shape: bf16[8,8,128], index: 0, kind: input, shape index: {}]
  %s1 = inlined_call_operand.hbm [shape: bf16[8,8,128], index: 1, kind: input, shape index: {}]
  %s2 = inlined_call_operand.hbm [shape: bf16[128,512], index: 2, kind: input, shape index: {}]
  %s3 = inlined_call_operand.hbm [shape: bf16[8,8,8], index: 3, kind: input, shape index: {}]
  %s4 = inlined_call_operand.vmem [shape: f32[8,4], index: 4, kind: output, shape index: {}]
  %s5 = sld [smem:[#allocation0]]
  $region42: #{tpu_custom_call.1} parent=0
    _
  %s7 = ssub.s32 1, %s5
  %s8 = scalar_select 0, %s7, %s5
  $region1: #{tpu_custom_call.1} parent=0
    #allocation2 [shape = 'u8[16384]{0}', space=vmem, size = 0x4000, scoped, tag = 'input window, operand 0, single buffered']
    #allocation3 [shape = 's32[1]{0}', space=sflag, size = 0x4, scoped, tag = 'scoped memory for tpu_custom_call.1']
    #allocation4 [shape = 'u8[16384]{0}', space=vmem, size = 0x4000, scoped, tag = 'input window, operand 1, single buffered']
    #allocation5 [shape = 's32[1]{0}', space=sflag, size = 0x4, scoped, tag = 'scoped memory for tpu_custom_call.1']
    #allocation6 [shape = 'u8[131072]{0}', space=vmem, size = 0x20000, scoped, tag = 'input window, operand 2, single buffered']
    #allocation7 [shape = 'u8[16384]{0}', space=vmem, size = 0x4000, scoped, tag = 'input window, operand 3, single buffered']
    #allocation8 [shape = 's32[1]{0}', space=sflag, size = 0x4, scoped, tag = 'scoped memory for tpu_custom_call.1']
    %9 = vsyncpa [#allocation3], 0
    %10 = vsyncpa [#allocation5], 0
    %11 = vsyncpa [#allocation8], 0
    // Predicated region
    $region2: #{tpu_custom_call.1} parent=1 // pred_check
      _
    $region3: #{tpu_custom_call.1} parent=1 // pred_check_branch
      %13 = sbr.rel (0) target = $region5
    $region4: #{tpu_custom_call.1} parent=1 // pred_region
      %s15 = ssub.s32 512, 512
      %16 = vsyncadd [#allocation3], %s15
      %s17 = sshll.u32 [#allocation2], 4
      %s18 = int_to_ptr.vmem [resolvable:$true] %s17
      %23 = dma.hbm_to_vmem [thread:$0]  %s0, 512, %s18, [#allocation3], 64, 64, 4
    $region5: #{tpu_custom_call.1} parent=1 // pred_fallthru
      _
    // Predicated region
    $region6: #{tpu_custom_call.1} parent=1 // pred_check
      _
    $region7: #{tpu_custom_call.1} parent=1 // pred_check_branch
      %25 = sbr.rel (0) target = $region9
    $region8: #{tpu_custom_call.1} parent=1 // pred_region
      %s27 = ssub.s32 512, 512
      %28 = vsyncadd [#allocation5], %s27
      %s29 = sshll.u32 [#allocation4], 4
      %s30 = int_to_ptr.vmem [resolvable:$true] %s29
      %35 = dma.hbm_to_vmem [thread:$0]  %s1, 512, %s30, [#allocation5], 64, 64, 4
    $region9: #{tpu_custom_call.1} parent=1 // pred_fallthru
      _
    // Predicated region
    $region10: #{tpu_custom_call.1} parent=1 // pred_check
      _
    $region11: #{tpu_custom_call.1} parent=1 // pred_check_branch
      %37 = sbr.rel (0) target = $region13
    $region12: #{tpu_custom_call.1} parent=1 // pred_region
      %s39 = ssub.s32 4096, 4096
      %40 = vsyncadd [#allocation5], %s39
      %s41 = sshll.u32 [#allocation6], 4
      %s42 = int_to_ptr.vmem [resolvable:$true] %s41
      %47 = dma.hbm_to_vmem [thread:$0]  %s2, 4096, %s42, [#allocation5], 256, 256, 16
    $region13: #{tpu_custom_call.1} parent=1 // pred_fallthru
      _
    // Predicated region
    $region14: #{tpu_custom_call.1} parent=1 // pred_check
      _
    $region15: #{tpu_custom_call.1} parent=1 // pred_check_branch
      %49 = sbr.rel (0) target = $region17
    $region16: #{tpu_custom_call.1} parent=1 // pred_region
      %s51 = ssub.s32 512, 512
      %52 = vsyncadd [#allocation8], %s51
      %s53 = sshll.u32 [#allocation7], 4
      %s54 = int_to_ptr.vmem [resolvable:$true] %s53
      %59 = dma.hbm_to_vmem [thread:$0]  %s3, 512, %s54, [#allocation8], 64, 64, 4
    $region17: #{tpu_custom_call.1} parent=1 // pred_fallthru
      _
    // Predicated region
    $region18: #{tpu_custom_call.1} parent=1 // pred_check
      _
    $region19: #{tpu_custom_call.1} parent=1 // pred_check_branch
      %61 = sbr.rel (0) target = $region21
    $region20: #{tpu_custom_call.1} parent=1 // pred_region
      %62 = dma.done [#allocation3], 512
    $region21: #{tpu_custom_call.1} parent=1 // pred_fallthru
      _
    // Predicated region
    $region22: #{tpu_custom_call.1} parent=1 // pred_check
      _
    $region23: #{tpu_custom_call.1} parent=1 // pred_check_branch
      %64 = sbr.rel (0) target = $region25
    $region24: #{tpu_custom_call.1} parent=1 // pred_region
      %65 = dma.done [#allocation5], 512
    $region25: #{tpu_custom_call.1} parent=1 // pred_fallthru
      _
    // Predicated region
    $region26: #{tpu_custom_call.1} parent=1 // pred_check
      _
    $region27: #{tpu_custom_call.1} parent=1 // pred_check_branch
      %67 = sbr.rel (0) target = $region29
    $region28: #{tpu_custom_call.1} parent=1 // pred_region
      %68 = dma.done [#allocation5], 4096
    $region29: #{tpu_custom_call.1} parent=1 // pred_fallthru
      _
    // Predicated region
    $region30: #{tpu_custom_call.1} parent=1 // pred_check
      _
    $region31: #{tpu_custom_call.1} parent=1 // pred_check_branch
      %70 = sbr.rel (0) target = $region33
    $region32: #{tpu_custom_call.1} parent=1 // pred_region
      %71 = dma.done [#allocation8], 512
    $region33: #{tpu_custom_call.1} parent=1 // pred_fallthru
      _
    %v73 = vld [vmem:[#allocation2] sm:$0xf]
    %v74 = vld [vmem:[#allocation2 + $0x4] sm:$0xf]
    %v75 = vld [vmem:[#allocation2 + $0x8] sm:$0xf]
    %v76 = vld [vmem:[#allocation2 + $0xc] sm:$0xf]
    %v77 = vld [vmem:[#allocation2 + $0x10] sm:$0xf]
    %v78 = vld [vmem:[#allocation2 + $0x14] sm:$0xf]
    %v79 = vld [vmem:[#allocation2 + $0x18] sm:$0xf]
    %v80 = vld [vmem:[#allocation2 + $0x1c] sm:$0xf]
    %v81 = vld [vmem:[#allocation6] sm:$0xff]
    %v82 = vld [vmem:[#allocation6 + $0x8] sm:$0xff]
    %v83 = vld [vmem:[#allocation6 + $0x10] sm:$0xff]
    %v84 = vld [vmem:[#allocation6 + $0x18] sm:$0xff]
    %v85 = vld [vmem:[#allocation6 + $0x20] sm:$0xff]
    %v86 = vld [vmem:[#allocation6 + $0x28] sm:$0xff]
    %v87 = vld [vmem:[#allocation6 + $0x30] sm:$0xff]
    %v88 = vld [vmem:[#allocation6 + $0x38] sm:$0xff]
    %v89 = vld [vmem:[#allocation6 + $0x40] sm:$0xff]
    %v90 = vld [vmem:[#allocation6 + $0x48] sm:$0xff]
    %v91 = vld [vmem:[#allocation6 + $0x50] sm:$0xff]
    %v92 = vld [vmem:[#allocation6 + $0x58] sm:$0xff]
    %v93 = vld [vmem:[#allocation6 + $0x60] sm:$0xff]
    %v94 = vld [vmem:[#allocation6 + $0x68] sm:$0xff]
    %v95 = vld [vmem:[#allocation6 + $0x70] sm:$0xff]
    %v96 = vld [vmem:[#allocation6 + $0x78] sm:$0xff]
    %v97 = vld [vmem:[#allocation6 + $0x80] sm:$0xff]
    %v98 = vld [vmem:[#allocation6 + $0x88] sm:$0xff]
    %v99 = vld [vmem:[#allocation6 + $0x90] sm:$0xff]
    %v100 = vld [vmem:[#allocation6 + $0x98] sm:$0xff]
    %v101 = vld [vmem:[#allocation6 + $0xa0] sm:$0xff]
    %v102 = vld [vmem:[#allocation6 + $0xa8] sm:$0xff]
    %v103 = vld [vmem:[#allocation6 + $0xb0] sm:$0xff]
    %v104 = vld [vmem:[#allocation6 + $0xb8] sm:$0xff]
    %v105 = vld [vmem:[#allocation6 + $0xc0] sm:$0xff]
    %v106 = vld [vmem:[#allocation6 + $0xc8] sm:$0xff]
    %v107 = vld [vmem:[#allocation6 + $0xd0] sm:$0xff]
    %v108 = vld [vmem:[#allocation6 + $0xd8] sm:$0xff]
    %v109 = vld [vmem:[#allocation6 + $0xe0] sm:$0xff]
    %v110 = vld [vmem:[#allocation6 + $0xe8] sm:$0xff]
    %v111 = vld [vmem:[#allocation6 + $0xf0] sm:$0xff]
    %v112 = vld [vmem:[#allocation6 + $0xf8] sm:$0xff]
    %v121 = vunpack.c.l.b16 %v73
    %v122 = vunpack.c.l.b16 %v74
    %v123 = vunpack.c.l.b16 %v75
    %v124 = vunpack.c.l.b16 %v76
    %v125 = vunpack.c.l.b16 %v77
    %v126 = vunpack.c.l.b16 %v78
    %v127 = vunpack.c.l.b16 %v79
    %v128 = vunpack.c.l.b16 %v80
    %v129 = vpack.c.b16 %v122, %v121
    %v130 = vpack.c.b16 %v124, %v123
    %v131 = vpack.c.b16 %v126, %v125
    %v132 = vpack.c.b16 %v128, %v127
    %v169 = vunpack.c.l.b16 %v81
    %v170 = vunpack.c.h.b16 %v81
    %v171 = vunpack.c.l.b16 %v82
    %v172 = vunpack.c.h.b16 %v82
    %v173 = vunpack.c.l.b16 %v83
    %v174 = vunpack.c.h.b16 %v83
    %v175 = vunpack.c.l.b16 %v84
    %v176 = vunpack.c.h.b16 %v84
    %v177 = vunpack.c.l.b16 %v85
    %v178 = vunpack.c.h.b16 %v85
    %v179 = vunpack.c.l.b16 %v86
    %v180 = vunpack.c.h.b16 %v86
    %v181 = vunpack.c.l.b16 %v87
    %v182 = vunpack.c.h.b16 %v87
    %v183 = vunpack.c.l.b16 %v88
    %v184 = vunpack.c.h.b16 %v88
    %v185 = vunpack.c.l.b16 %v89
    %v186 = vunpack.c.h.b16 %v89
    %v187 = vunpack.c.l.b16 %v90
    %v188 = vunpack.c.h.b16 %v90
    %v189 = vunpack.c.l.b16 %v91
    %v190 = vunpack.c.h.b16 %v91
    %v191 = vunpack.c.l.b16 %v92
    %v192 = vunpack.c.h.b16 %v92
    %v193 = vunpack.c.l.b16 %v93
    %v194 = vunpack.c.h.b16 %v93
    %v195 = vunpack.c.l.b16 %v94
    %v196 = vunpack.c.h.b16 %v94
    %v197 = vunpack.c.l.b16 %v95
    %v198 = vunpack.c.h.b16 %v95
    %v199 = vunpack.c.l.b16 %v96
    %v200 = vunpack.c.h.b16 %v96
    %v201 = vunpack.c.l.b16 %v97
    %v202 = vunpack.c.h.b16 %v97
    %v203 = vunpack.c.l.b16 %v98
    %v204 = vunpack.c.h.b16 %v98
    %v205 = vunpack.c.l.b16 %v99
    %v206 = vunpack.c.h.b16 %v99
    %v207 = vunpack.c.l.b16 %v100
    %v208 = vunpack.c.h.b16 %v100
    %v209 = vunpack.c.l.b16 %v101
    %v210 = vunpack.c.h.b16 %v101
    %v211 = vunpack.c.l.b16 %v102
    %v212 = vunpack.c.h.b16 %v102
    %v213 = vunpack.c.l.b16 %v103
    %v214 = vunpack.c.h.b16 %v103
    %v215 = vunpack.c.l.b16 %v104
    %v216 = vunpack.c.h.b16 %v104
    %v217 = vunpack.c.l.b16 %v105
    %v218 = vunpack.c.h.b16 %v105
    %v219 = vunpack.c.l.b16 %v106
    %v220 = vunpack.c.h.b16 %v106
    %v221 = vunpack.c.l.b16 %v107
    %v222 = vunpack.c.h.b16 %v107
    %v223 = vunpack.c.l.b16 %v108
    %v224 = vunpack.c.h.b16 %v108
    %v225 = vunpack.c.l.b16 %v109
    %v226 = vunpack.c.h.b16 %v109
    %v227 = vunpack.c.l.b16 %v110
    %v228 = vunpack.c.h.b16 %v110
    %v229 = vunpack.c.l.b16 %v111
    %v230 = vunpack.c.h.b16 %v111
    %v231 = vunpack.c.l.b16 %v112
    %v232 = vunpack.c.h.b16 %v112
    %v233 = vpack.c.b16 %v173, %v169
    %v234 = vpack.c.b16 %v174, %v170
    %v235 = vpack.c.b16 %v175, %v171
    %v236 = vpack.c.b16 %v176, %v172
    %v237 = vpack.c.b16 %v181, %v177
    %v238 = vpack.c.b16 %v182, %v178
    %v239 = vpack.c.b16 %v183, %v179
    %v240 = vpack.c.b16 %v184, %v180
    %v241 = vpack.c.b16 %v189, %v185
    %v242 = vpack.c.b16 %v190, %v186
    %v243 = vpack.c.b16 %v191, %v187
    %v244 = vpack.c.b16 %v192, %v188
    %v245 = vpack.c.b16 %v197, %v193
    %v246 = vpack.c.b16 %v198, %v194
    %v247 = vpack.c.b16 %v199, %v195
    %v248 = vpack.c.b16 %v200, %v196
    %v249 = vpack.c.b16 %v205, %v201
    %v250 = vpack.c.b16 %v206, %v202
    %v251 = vpack.c.b16 %v207, %v203
    %v252 = vpack.c.b16 %v208, %v204
    %v253 = vpack.c.b16 %v213, %v209
    %v254 = vpack.c.b16 %v214, %v210
    %v255 = vpack.c.b16 %v215, %v211
    %v256 = vpack.c.b16 %v216, %v212
    %v257 = vpack.c.b16 %v221, %v217
    %v258 = vpack.c.b16 %v222, %v218
    %v259 = vpack.c.b16 %v223, %v219
    %v260 = vpack.c.b16 %v224, %v220
    %v261 = vpack.c.b16 %v229, %v225
    %v262 = vpack.c.b16 %v230, %v226
    %v263 = vpack.c.b16 %v231, %v227
    %v264 = vpack.c.b16 %v232, %v228
    %297 = vmatprep.subr.bf16.mxu0 %v262
    %298 = vmatpush1.bf16.msra.mxu0 %v261
    %299 = vmatprep.subr.bf16.mxu0 %v258
    %300 = vmatpush1.bf16.msra.mxu0 %v257
    %301 = vmatprep.subr.bf16.mxu0 %v254
    %302 = vmatpush1.bf16.msra.mxu0 %v253
    %303 = vmatprep.subr.bf16.mxu0 %v250
    %304 = vmatpush1.bf16.msra.mxu0 %v249
    %305 = vmatprep.subr.bf16.mxu0 %v246
    %306 = vmatpush1.bf16.msra.mxu0 %v245
    %307 = vmatprep.subr.bf16.mxu0 %v242
    %308 = vmatpush1.bf16.msra.mxu0 %v241
    %309 = vmatprep.subr.bf16.mxu0 %v238
    %310 = vmatpush1.bf16.msra.mxu0 %v237
    %311 = vmatprep.subr.bf16.mxu0 %v234
    %312 = vmatpush1.bf16.msra.mxu0 %v233
    %313 = vmatprep.subr.bf16.mxu0 0
    %314 = vmatpush2.bf16.msra.mxu0 0
    %315 = vmatprep.subr.bf16.mxu0 0
    %316 = vmatpush2.bf16.msra.mxu0 0
    %317 = vmatprep.subr.bf16.mxu0 0
    %318 = vmatpush2.bf16.msra.mxu0 0
    %319 = vmatprep.subr.bf16.mxu0 0
    %320 = vmatpush2.bf16.msra.mxu0 0
    %321 = vmatprep.subr.bf16.mxu0 0
    %322 = vmatpush2.bf16.msra.mxu0 0
    %323 = vmatprep.subr.bf16.mxu0 0
    %324 = vmatpush2.bf16.msra.mxu0 0
    %325 = vmatprep.subr.bf16.mxu0 0
    %326 = vmatpush2.bf16.msra.mxu0 0
    %327 = vmatprep.subr.bf16.mxu0 0
    %328 = vmatpush2.bf16.msra.mxu0 0
    %329 = vmatprep.mubr.bf16.mxu0 0
    %330 = vmatmul.mubr.bf16.gmra.mxu0 %v129
    %v331 = vpop.f32.mrf.mxu0
    %v332 = vadd.f32 0.0, %v331
    %v333 = vpop.f32.mrf.mxu0
    %v334 = vadd.f32 0.0, %v333
    %v335 = vpop.f32.mrf.mxu0
    %v336 = vadd.f32 0.0, %v335
    %v337 = vpop.f32.mrf.mxu0
    %v338 = vadd.f32 0.0, %v337
    %339 = vmatprep.mubr.bf16.mxu0 0
    %340 = vmatmul.mubr.bf16.gmra.mxu0 %v130
    %v341 = vpop.f32.mrf.mxu0
    %v342 = vadd.f32 0.0, %v341
    %v343 = vpop.f32.mrf.mxu0
    %v344 = vadd.f32 0.0, %v343
    %v345 = vpop.f32.mrf.mxu0
    %v346 = vadd.f32 0.0, %v345
    %v347 = vpop.f32.mrf.mxu0
    %v348 = vadd.f32 0.0, %v347
    %349 = vmatprep.mubr.bf16.mxu0 0
    %350 = vmatmul.mubr.bf16.gmra.mxu0 %v131
    %v351 = vpop.f32.mrf.mxu0
    %v352 = vadd.f32 0.0, %v351
    %v353 = vpop.f32.mrf.mxu0
    %v354 = vadd.f32 0.0, %v353
    %v355 = vpop.f32.mrf.mxu0
    %v356 = vadd.f32 0.0, %v355
    %v357 = vpop.f32.mrf.mxu0
    %v358 = vadd.f32 0.0, %v357
    %359 = vmatprep.mubr.bf16.mxu0 0
    %360 = vmatmul.mubr.bf16.gmra.mxu0 %v132
    %v361 = vpop.f32.mrf.mxu0
    %v362 = vadd.f32 0.0, %v361
    %v363 = vpop.f32.mrf.mxu0
    %v364 = vadd.f32 0.0, %v363
    %v365 = vpop.f32.mrf.mxu0
    %v366 = vadd.f32 0.0, %v365
    %v367 = vpop.f32.mrf.mxu0
    %v368 = vadd.f32 0.0, %v367
    %369 = vdwg.mxu0
    %370 = vmatprep.subr.bf16.mxu0 %v264
    %371 = vmatpush1.bf16.msra.mxu0 %v263
    %372 = vmatprep.subr.bf16.mxu0 %v260
    %373 = vmatpush1.bf16.msra.mxu0 %v259
    %374 = vmatprep.subr.bf16.mxu0 %v256
    %375 = vmatpush1.bf16.msra.mxu0 %v255
    %376 = vmatprep.subr.bf16.mxu0 %v252
    %377 = vmatpush1.bf16.msra.mxu0 %v251
    %378 = vmatprep.subr.bf16.mxu0 %v248
    %379 = vmatpush1.bf16.msra.mxu0 %v247
    %380 = vmatprep.subr.bf16.mxu0 %v244
    %381 = vmatpush1.bf16.msra.mxu0 %v243
    %382 = vmatprep.subr.bf16.mxu0 %v240
    %383 = vmatpush1.bf16.msra.mxu0 %v239
    %384 = vmatprep.subr.bf16.mxu0 %v236
    %385 = vmatpush1.bf16.msra.mxu0 %v235
    %386 = vmatprep.subr.bf16.mxu0 0
    %387 = vmatpush2.bf16.msra.mxu0 0
    %388 = vmatprep.subr.bf16.mxu0 0
    %389 = vmatpush2.bf16.msra.mxu0 0
    %390 = vmatprep.subr.bf16.mxu0 0
    %391 = vmatpush2.bf16.msra.mxu0 0
    %392 = vmatprep.subr.bf16.mxu0 0
    %393 = vmatpush2.bf16.msra.mxu0 0
    %394 = vmatprep.subr.bf16.mxu0 0
    %395 = vmatpush2.bf16.msra.mxu0 0
    %396 = vmatprep.subr.bf16.mxu0 0
    %397 = vmatpush2.bf16.msra.mxu0 0
    %398 = vmatprep.subr.bf16.mxu0 0
    %399 = vmatpush2.bf16.msra.mxu0 0
    %400 = vmatprep.subr.bf16.mxu0 0
    %401 = vmatpush2.bf16.msra.mxu0 0
    %402 = vmatprep.mubr.bf16.mxu0 0
    %403 = vmatmul.mubr.bf16.gmra.mxu0 %v129
    %v404 = vpop.f32.mrf.mxu0
    %v405 = vadd.f32 0.0, %v404
    %v406 = vpop.f32.mrf.mxu0
    %v407 = vadd.f32 0.0, %v406
    %v408 = vpop.f32.mrf.mxu0
    %v409 = vadd.f32 0.0, %v408
    %v410 = vpop.f32.mrf.mxu0
    %v411 = vadd.f32 0.0, %v410
    %412 = vmatprep.mubr.bf16.mxu0 0
    %413 = vmatmul.mubr.bf16.gmra.mxu0 %v130
    %v414 = vpop.f32.mrf.mxu0
    %v415 = vadd.f32 0.0, %v414
    %v416 = vpop.f32.mrf.mxu0
    %v417 = vadd.f32 0.0, %v416
    %v418 = vpop.f32.mrf.mxu0
    %v419 = vadd.f32 0.0, %v418
    %v420 = vpop.f32.mrf.mxu0
    %v421 = vadd.f32 0.0, %v420
    %422 = vmatprep.mubr.bf16.mxu0 0
    %423 = vmatmul.mubr.bf16.gmra.mxu0 %v131
    %v424 = vpop.f32.mrf.mxu0
    %v425 = vadd.f32 0.0, %v424
    %v426 = vpop.f32.mrf.mxu0
    %v427 = vadd.f32 0.0, %v426
    %v428 = vpop.f32.mrf.mxu0
    %v429 = vadd.f32 0.0, %v428
    %v430 = vpop.f32.mrf.mxu0
    %v431 = vadd.f32 0.0, %v430
    %432 = vmatprep.mubr.bf16.mxu0 0
    %433 = vmatmul.mubr.bf16.gmra.mxu0 %v132
    %v434 = vpop.f32.mrf.mxu0
    %v435 = vadd.f32 0.0, %v434
    %v436 = vpop.f32.mrf.mxu0
    %v437 = vadd.f32 0.0, %v436
    %v438 = vpop.f32.mrf.mxu0
    %v439 = vadd.f32 0.0, %v438
    %v440 = vpop.f32.mrf.mxu0
    %v441 = vadd.f32 0.0, %v440
    %442 = vdwg.mxu0
    %v443 = vld [vmem:[#allocation4] sm:$0xf]
    %v444 = vld [vmem:[#allocation4 + $0x4] sm:$0xf]
    %v445 = vld [vmem:[#allocation4 + $0x8] sm:$0xf]
    %v446 = vld [vmem:[#allocation4 + $0xc] sm:$0xf]
    %v447 = vld [vmem:[#allocation4 + $0x10] sm:$0xf]
    %v448 = vld [vmem:[#allocation4 + $0x14] sm:$0xf]
    %v449 = vld [vmem:[#allocation4 + $0x18] sm:$0xf]
    %v450 = vld [vmem:[#allocation4 + $0x1c] sm:$0xf]
    %v451 = vld [vmem:[#allocation7] sm:$0xf]
    %v452 = vld [vmem:[#allocation7 + $0x4] sm:$0xf]
    %v453 = vld [vmem:[#allocation7 + $0x8] sm:$0xf]
    %v454 = vld [vmem:[#allocation7 + $0xc] sm:$0xf]
    %v455 = vld [vmem:[#allocation7 + $0x10] sm:$0xf]
    %v456 = vld [vmem:[#allocation7 + $0x14] sm:$0xf]
    %v457 = vld [vmem:[#allocation7 + $0x18] sm:$0xf]
    %v458 = vld [vmem:[#allocation7 + $0x1c] sm:$0xf]
    %v459 = vunpack.c.l.bf16 %v451
    %v460 = vunpack.c.l.bf16 %v452
    %v461 = vunpack.c.l.bf16 %v453
    %v462 = vunpack.c.l.bf16 %v454
    %v463 = vunpack.c.l.bf16 %v455
    %v464 = vunpack.c.l.bf16 %v456
    %v465 = vunpack.c.l.bf16 %v457
    %v466 = vunpack.c.l.bf16 %v458
    %v467 = vpack.c.bf16 %v332, %v332
    %v468 = vpack.c.bf16 %v336, %v336
    %v469 = vpack.c.bf16 %v342, %v342
    %v470 = vpack.c.bf16 %v346, %v346
    %v471 = vpack.c.bf16 %v352, %v352
    %v472 = vpack.c.bf16 %v356, %v356
    %v473 = vpack.c.bf16 %v362, %v362
    %v474 = vpack.c.bf16 %v366, %v366
    %475 = vmatprep.subr.bf16.mxu0 0
    %476 = vmatpush1.bf16.xpose.msra.mxu0 0
    %477 = vmatprep.subr.bf16.mxu0 0
    %478 = vmatpush1.bf16.xpose.msra.mxu0 0
    %479 = vmatprep.subr.bf16.mxu0 0
    %480 = vmatpush1.bf16.xpose.msra.mxu0 0
    %481 = vmatprep.subr.bf16.mxu0 0
    %482 = vmatpush1.bf16.xpose.msra.mxu0 0
    %483 = vmatprep.subr.bf16.mxu0 0
    %484 = vmatpush1.bf16.xpose.msra.mxu0 0
    %485 = vmatprep.subr.bf16.mxu0 0
    %486 = vmatpush1.bf16.xpose.msra.mxu0 0
    %487 = vmatprep.subr.bf16.mxu0 0
    %488 = vmatpush1.bf16.xpose.msra.mxu0 0
    %489 = vmatprep.subr.bf16.mxu0 0
    %490 = vmatpush1.bf16.xpose.msra.mxu0 %v443
    %491 = vmatprep.subr.bf16.mxu0 0
    %492 = vmatpush2.bf16.xpose.msra.mxu0 0
    %493 = vmatprep.subr.bf16.mxu0 0
    %494 = vmatpush2.bf16.xpose.msra.mxu0 0
    %495 = vmatprep.subr.bf16.mxu0 0
    %496 = vmatpush2.bf16.xpose.msra.mxu0 0
    %497 = vmatprep.subr.bf16.mxu0 0
    %498 = vmatpush2.bf16.xpose.msra.mxu0 0
    %499 = vmatprep.subr.bf16.mxu0 0
    %500 = vmatpush2.bf16.xpose.msra.mxu0 0
    %501 = vmatprep.subr.bf16.mxu0 0
    %502 = vmatpush2.bf16.xpose.msra.mxu0 0
    %503 = vmatprep.subr.bf16.mxu0 0
    %504 = vmatpush2.bf16.xpose.msra.mxu0 0
    %505 = vmatprep.subr.bf16.mxu0 0
    %506 = vmatpush2.bf16.xpose.msra.mxu0 0
    %507 = vmatprep.mubr.bf16.mxu0 0
    %508 = vmatmul.mubr.bf16.gmra.mxu0 %v467
    %v509 = vpop.f32.mrf.mxu0
    %v510 = vadd.f32 %v459, %v509
    %v511 = vpop.f32.mrf.mxu0
    %v512 = vpop.f32.mrf.mxu0
    %v513 = vpop.f32.mrf.mxu0
    %514 = vdwg.mxu0
    %515 = vmatprep.subr.bf16.mxu0 0
    %516 = vmatpush1.bf16.xpose.msra.mxu0 0
    %517 = vmatprep.subr.bf16.mxu0 0
    %518 = vmatpush1.bf16.xpose.msra.mxu0 0
    %519 = vmatprep.subr.bf16.mxu0 0
    %520 = vmatpush1.bf16.xpose.msra.mxu0 0
    %521 = vmatprep.subr.bf16.mxu0 0
    %522 = vmatpush1.bf16.xpose.msra.mxu0 0
    %523 = vmatprep.subr.bf16.mxu0 0
    %524 = vmatpush1.bf16.xpose.msra.mxu0 0
    %525 = vmatprep.subr.bf16.mxu0 0
    %526 = vmatpush1.bf16.xpose.msra.mxu0 0
    %527 = vmatprep.subr.bf16.mxu0 0
    %528 = vmatpush1.bf16.xpose.msra.mxu0 0
    %529 = vmatprep.subr.bf16.mxu0 0
    %530 = vmatpush1.bf16.xpose.msra.mxu0 %v444
    %531 = vmatprep.subr.bf16.mxu0 0
    %532 = vmatpush2.bf16.xpose.msra.mxu0 0
    %533 = vmatprep.subr.bf16.mxu0 0
    %534 = vmatpush2.bf16.xpose.msra.mxu0 0
    %535 = vmatprep.subr.bf16.mxu0 0
    %536 = vmatpush2.bf16.xpose.msra.mxu0 0
    %537 = vmatprep.subr.bf16.mxu0 0
    %538 = vmatpush2.bf16.xpose.msra.mxu0 0
    %539 = vmatprep.subr.bf16.mxu0 0
    %540 = vmatpush2.bf16.xpose.msra.mxu0 0
    %541 = vmatprep.subr.bf16.mxu0 0
    %542 = vmatpush2.bf16.xpose.msra.mxu0 0
    %543 = vmatprep.subr.bf16.mxu0 0
    %544 = vmatpush2.bf16.xpose.msra.mxu0 0
    %545 = vmatprep.subr.bf16.mxu0 0
    %546 = vmatpush2.bf16.xpose.msra.mxu0 0
    %547 = vmatprep.mubr.bf16.mxu0 0
    %548 = vmatmul.mubr.bf16.gmra.mxu0 %v468
    %v549 = vpop.f32.mrf.mxu0
    %v550 = vadd.f32 %v460, %v549
    %v551 = vpop.f32.mrf.mxu0
    %v552 = vpop.f32.mrf.mxu0
    %v553 = vpop.f32.mrf.mxu0
    %554 = vdwg.mxu0
    %555 = vmatprep.subr.bf16.mxu0 0
    %556 = vmatpush1.bf16.xpose.msra.mxu0 0
    %557 = vmatprep.subr.bf16.mxu0 0
    %558 = vmatpush1.bf16.xpose.msra.mxu0 0
    %559 = vmatprep.subr.bf16.mxu0 0
    %560 = vmatpush1.bf16.xpose.msra.mxu0 0
    %561 = vmatprep.subr.bf16.mxu0 0
    %562 = vmatpush1.bf16.xpose.msra.mxu0 0
    %563 = vmatprep.subr.bf16.mxu0 0
    %564 = vmatpush1.bf16.xpose.msra.mxu0 0
    %565 = vmatprep.subr.bf16.mxu0 0
    %566 = vmatpush1.bf16.xpose.msra.mxu0 0
    %567 = vmatprep.subr.bf16.mxu0 0
    %568 = vmatpush1.bf16.xpose.msra.mxu0 0
    %569 = vmatprep.subr.bf16.mxu0 0
    %570 = vmatpush1.bf16.xpose.msra.mxu0 %v445
    %571 = vmatprep.subr.bf16.mxu0 0
    %572 = vmatpush2.bf16.xpose.msra.mxu0 0
    %573 = vmatprep.subr.bf16.mxu0 0
    %574 = vmatpush2.bf16.xpose.msra.mxu0 0
    %575 = vmatprep.subr.bf16.mxu0 0
    %576 = vmatpush2.bf16.xpose.msra.mxu0 0
    %577 = vmatprep.subr.bf16.mxu0 0
    %578 = vmatpush2.bf16.xpose.msra.mxu0 0
    %579 = vmatprep.subr.bf16.mxu0 0
    %580 = vmatpush2.bf16.xpose.msra.mxu0 0
    %581 = vmatprep.subr.bf16.mxu0 0
    %582 = vmatpush2.bf16.xpose.msra.mxu0 0
    %583 = vmatprep.subr.bf16.mxu0 0
    %584 = vmatpush2.bf16.xpose.msra.mxu0 0
    %585 = vmatprep.subr.bf16.mxu0 0
    %586 = vmatpush2.bf16.xpose.msra.mxu0 0
    %587 = vmatprep.mubr.bf16.mxu0 0
    %588 = vmatmul.mubr.bf16.gmra.mxu0 %v469
    %v589 = vpop.f32.mrf.mxu0
    %v590 = vadd.f32 %v461, %v589
    %v591 = vpop.f32.mrf.mxu0
    %v592 = vpop.f32.mrf.mxu0
    %v593 = vpop.f32.mrf.mxu0
    %594 = vdwg.mxu0
    %595 = vmatprep.subr.bf16.mxu0 0
    %596 = vmatpush1.bf16.xpose.msra.mxu0 0
    %597 = vmatprep.subr.bf16.mxu0 0
    %598 = vmatpush1.bf16.xpose.msra.mxu0 0
    %599 = vmatprep.subr.bf16.mxu0 0
    %600 = vmatpush1.bf16.xpose.msra.mxu0 0
    %601 = vmatprep.subr.bf16.mxu0 0
    %602 = vmatpush1.bf16.xpose.msra.mxu0 0
    %603 = vmatprep.subr.bf16.mxu0 0
    %604 = vmatpush1.bf16.xpose.msra.mxu0 0
    %605 = vmatprep.subr.bf16.mxu0 0
    %606 = vmatpush1.bf16.xpose.msra.mxu0 0
    %607 = vmatprep.subr.bf16.mxu0 0
    %608 = vmatpush1.bf16.xpose.msra.mxu0 0
    %609 = vmatprep.subr.bf16.mxu0 0
    %610 = vmatpush1.bf16.xpose.msra.mxu0 %v446
    %611 = vmatprep.subr.bf16.mxu0 0
    %612 = vmatpush2.bf16.xpose.msra.mxu0 0
    %613 = vmatprep.subr.bf16.mxu0 0
    %614 = vmatpush2.bf16.xpose.msra.mxu0 0
    %615 = vmatprep.subr.bf16.mxu0 0
    %616 = vmatpush2.bf16.xpose.msra.mxu0 0
    %617 = vmatprep.subr.bf16.mxu0 0
    %618 = vmatpush2.bf16.xpose.msra.mxu0 0
    %619 = vmatprep.subr.bf16.mxu0 0
    %620 = vmatpush2.bf16.xpose.msra.mxu0 0
    %621 = vmatprep.subr.bf16.mxu0 0
    %622 = vmatpush2.bf16.xpose.msra.mxu0 0
    %623 = vmatprep.subr.bf16.mxu0 0
    %624 = vmatpush2.bf16.xpose.msra.mxu0 0
    %625 = vmatprep.subr.bf16.mxu0 0
    %626 = vmatpush2.bf16.xpose.msra.mxu0 0
    %627 = vmatprep.mubr.bf16.mxu0 0
    %628 = vmatmul.mubr.bf16.gmra.mxu0 %v470
    %v629 = vpop.f32.mrf.mxu0
    %v630 = vadd.f32 %v462, %v629
    %v631 = vpop.f32.mrf.mxu0
    %v632 = vpop.f32.mrf.mxu0
    %v633 = vpop.f32.mrf.mxu0
    %634 = vdwg.mxu0
    %635 = vmatprep.subr.bf16.mxu0 0
    %636 = vmatpush1.bf16.xpose.msra.mxu0 0
    %637 = vmatprep.subr.bf16.mxu0 0
    %638 = vmatpush1.bf16.xpose.msra.mxu0 0
    %639 = vmatprep.subr.bf16.mxu0 0
    %640 = vmatpush1.bf16.xpose.msra.mxu0 0
    %641 = vmatprep.subr.bf16.mxu0 0
    %642 = vmatpush1.bf16.xpose.msra.mxu0 0
    %643 = vmatprep.subr.bf16.mxu0 0
    %644 = vmatpush1.bf16.xpose.msra.mxu0 0
    %645 = vmatprep.subr.bf16.mxu0 0
    %646 = vmatpush1.bf16.xpose.msra.mxu0 0
    %647 = vmatprep.subr.bf16.mxu0 0
    %648 = vmatpush1.bf16.xpose.msra.mxu0 0
    %649 = vmatprep.subr.bf16.mxu0 0
    %650 = vmatpush1.bf16.xpose.msra.mxu0 %v447
    %651 = vmatprep.subr.bf16.mxu0 0
    %652 = vmatpush2.bf16.xpose.msra.mxu0 0
    %653 = vmatprep.subr.bf16.mxu0 0
    %654 = vmatpush2.bf16.xpose.msra.mxu0 0
    %655 = vmatprep.subr.bf16.mxu0 0
    %656 = vmatpush2.bf16.xpose.msra.mxu0 0
    %657 = vmatprep.subr.bf16.mxu0 0
    %658 = vmatpush2.bf16.xpose.msra.mxu0 0
    %659 = vmatprep.subr.bf16.mxu0 0
    %660 = vmatpush2.bf16.xpose.msra.mxu0 0
    %661 = vmatprep.subr.bf16.mxu0 0
    %662 = vmatpush2.bf16.xpose.msra.mxu0 0
    %663 = vmatprep.subr.bf16.mxu0 0
    %664 = vmatpush2.bf16.xpose.msra.mxu0 0
    %665 = vmatprep.subr.bf16.mxu0 0
    %666 = vmatpush2.bf16.xpose.msra.mxu0 0
    %667 = vmatprep.mubr.bf16.mxu0 0
    %668 = vmatmul.mubr.bf16.gmra.mxu0 %v471
    %v669 = vpop.f32.mrf.mxu0
    %v670 = vadd.f32 %v463, %v669
    %v671 = vpop.f32.mrf.mxu0
    %v672 = vpop.f32.mrf.mxu0
    %v673 = vpop.f32.mrf.mxu0
    %674 = vdwg.mxu0
    %675 = vmatprep.subr.bf16.mxu0 0
    %676 = vmatpush1.bf16.xpose.msra.mxu0 0
    %677 = vmatprep.subr.bf16.mxu0 0
    %678 = vmatpush1.bf16.xpose.msra.mxu0 0
    %679 = vmatprep.subr.bf16.mxu0 0
    %680 = vmatpush1.bf16.xpose.msra.mxu0 0
    %681 = vmatprep.subr.bf16.mxu0 0
    %682 = vmatpush1.bf16.xpose.msra.mxu0 0
    %683 = vmatprep.subr.bf16.mxu0 0
    %684 = vmatpush1.bf16.xpose.msra.mxu0 0
    %685 = vmatprep.subr.bf16.mxu0 0
    %686 = vmatpush1.bf16.xpose.msra.mxu0 0
    %687 = vmatprep.subr.bf16.mxu0 0
    %688 = vmatpush1.bf16.xpose.msra.mxu0 0
    %689 = vmatprep.subr.bf16.mxu0 0
    %690 = vmatpush1.bf16.xpose.msra.mxu0 %v448
    %691 = vmatprep.subr.bf16.mxu0 0
    %692 = vmatpush2.bf16.xpose.msra.mxu0 0
    %693 = vmatprep.subr.bf16.mxu0 0
    %694 = vmatpush2.bf16.xpose.msra.mxu0 0
    %695 = vmatprep.subr.bf16.mxu0 0
    %696 = vmatpush2.bf16.xpose.msra.mxu0 0
    %697 = vmatprep.subr.bf16.mxu0 0
    %698 = vmatpush2.bf16.xpose.msra.mxu0 0
    %699 = vmatprep.subr.bf16.mxu0 0
    %700 = vmatpush2.bf16.xpose.msra.mxu0 0
    %701 = vmatprep.subr.bf16.mxu0 0
    %702 = vmatpush2.bf16.xpose.msra.mxu0 0
    %703 = vmatprep.subr.bf16.mxu0 0
    %704 = vmatpush2.bf16.xpose.msra.mxu0 0
    %705 = vmatprep.subr.bf16.mxu0 0
    %706 = vmatpush2.bf16.xpose.msra.mxu0 0
    %707 = vmatprep.mubr.bf16.mxu0 0
    %708 = vmatmul.mubr.bf16.gmra.mxu0 %v472
    %v709 = vpop.f32.mrf.mxu0
    %v710 = vadd.f32 %v464, %v709
    %v711 = vpop.f32.mrf.mxu0
    %v712 = vpop.f32.mrf.mxu0
    %v713 = vpop.f32.mrf.mxu0
    %714 = vdwg.mxu0
    %715 = vmatprep.subr.bf16.mxu0 0
    %716 = vmatpush1.bf16.xpose.msra.mxu0 0
    %717 = vmatprep.subr.bf16.mxu0 0
    %718 = vmatpush1.bf16.xpose.msra.mxu0 0
    %719 = vmatprep.subr.bf16.mxu0 0
    %720 = vmatpush1.bf16.xpose.msra.mxu0 0
    %721 = vmatprep.subr.bf16.mxu0 0
    %722 = vmatpush1.bf16.xpose.msra.mxu0 0
    %723 = vmatprep.subr.bf16.mxu0 0
    %724 = vmatpush1.bf16.xpose.msra.mxu0 0
    %725 = vmatprep.subr.bf16.mxu0 0
    %726 = vmatpush1.bf16.xpose.msra.mxu0 0
    %727 = vmatprep.subr.bf16.mxu0 0
    %728 = vmatpush1.bf16.xpose.msra.mxu0 0
    %729 = vmatprep.subr.bf16.mxu0 0
    %730 = vmatpush1.bf16.xpose.msra.mxu0 %v449
    %731 = vmatprep.subr.bf16.mxu0 0
    %732 = vmatpush2.bf16.xpose.msra.mxu0 0
    %733 = vmatprep.subr.bf16.mxu0 0
    %734 = vmatpush2.bf16.xpose.msra.mxu0 0
    %735 = vmatprep.subr.bf16.mxu0 0
    %736 = vmatpush2.bf16.xpose.msra.mxu0 0
    %737 = vmatprep.subr.bf16.mxu0 0
    %738 = vmatpush2.bf16.xpose.msra.mxu0 0
    %739 = vmatprep.subr.bf16.mxu0 0
    %740 = vmatpush2.bf16.xpose.msra.mxu0 0
    %741 = vmatprep.subr.bf16.mxu0 0
    %742 = vmatpush2.bf16.xpose.msra.mxu0 0
    %743 = vmatprep.subr.bf16.mxu0 0
    %744 = vmatpush2.bf16.xpose.msra.mxu0 0
    %745 = vmatprep.subr.bf16.mxu0 0
    %746 = vmatpush2.bf16.xpose.msra.mxu0 0
    %747 = vmatprep.mubr.bf16.mxu0 0
    %748 = vmatmul.mubr.bf16.gmra.mxu0 %v473
    %v749 = vpop.f32.mrf.mxu0
    %v750 = vadd.f32 %v465, %v749
    %v751 = vpop.f32.mrf.mxu0
    %v752 = vpop.f32.mrf.mxu0
    %v753 = vpop.f32.mrf.mxu0
    %754 = vdwg.mxu0
    %755 = vmatprep.subr.bf16.mxu0 0
    %756 = vmatpush1.bf16.xpose.msra.mxu0 0
    %757 = vmatprep.subr.bf16.mxu0 0
    %758 = vmatpush1.bf16.xpose.msra.mxu0 0
    %759 = vmatprep.subr.bf16.mxu0 0
    %760 = vmatpush1.bf16.xpose.msra.mxu0 0
    %761 = vmatprep.subr.bf16.mxu0 0
    %762 = vmatpush1.bf16.xpose.msra.mxu0 0
    %763 = vmatprep.subr.bf16.mxu0 0
    %764 = vmatpush1.bf16.xpose.msra.mxu0 0
    %765 = vmatprep.subr.bf16.mxu0 0
    %766 = vmatpush1.bf16.xpose.msra.mxu0 0
    %767 = vmatprep.subr.bf16.mxu0 0
    %768 = vmatpush1.bf16.xpose.msra.mxu0 0
    %769 = vmatprep.subr.bf16.mxu0 0
    %770 = vmatpush1.bf16.xpose.msra.mxu0 %v450
    %771 = vmatprep.subr.bf16.mxu0 0
    %772 = vmatpush2.bf16.xpose.msra.mxu0 0
    %773 = vmatprep.subr.bf16.mxu0 0
    %774 = vmatpush2.bf16.xpose.msra.mxu0 0
    %775 = vmatprep.subr.bf16.mxu0 0
    %776 = vmatpush2.bf16.xpose.msra.mxu0 0
    %777 = vmatprep.subr.bf16.mxu0 0
    %778 = vmatpush2.bf16.xpose.msra.mxu0 0
    %779 = vmatprep.subr.bf16.mxu0 0
    %780 = vmatpush2.bf16.xpose.msra.mxu0 0
    %781 = vmatprep.subr.bf16.mxu0 0
    %782 = vmatpush2.bf16.xpose.msra.mxu0 0
    %783 = vmatprep.subr.bf16.mxu0 0
    %784 = vmatpush2.bf16.xpose.msra.mxu0 0
    %785 = vmatprep.subr.bf16.mxu0 0
    %786 = vmatpush2.bf16.xpose.msra.mxu0 0
    %787 = vmatprep.mubr.bf16.mxu0 0
    %788 = vmatmul.mubr.bf16.gmra.mxu0 %v474
    %v789 = vpop.f32.mrf.mxu0
    %v790 = vadd.f32 %v466, %v789
    %v791 = vpop.f32.mrf.mxu0
    %v792 = vpop.f32.mrf.mxu0
    %v793 = vpop.f32.mrf.mxu0
    %794 = vdwg.mxu0
    %vm795 = vcmask 64512
    %v796 = vsel %vm795, %v510, -inf
    %797 = vmax.xlane.f32.xlu0 %v796
    %v798 = vpop.xlane.xlu0 %797
    %v799 = vsel %vm795, %v550, -inf
    %800 = vmax.xlane.f32.xlu0 %v799
    %v801 = vpop.xlane.xlu0 %800
    %v802 = vsel %vm795, %v590, -inf
    %803 = vmax.xlane.f32.xlu0 %v802
    %v804 = vpop.xlane.xlu0 %803
    %v805 = vsel %vm795, %v630, -inf
    %806 = vmax.xlane.f32.xlu0 %v805
    %v807 = vpop.xlane.xlu0 %806
    %v808 = vsel %vm795, %v670, -inf
    %809 = vmax.xlane.f32.xlu0 %v808
    %v810 = vpop.xlane.xlu0 %809
    %v811 = vsel %vm795, %v710, -inf
    %812 = vmax.xlane.f32.xlu0 %v811
    %v813 = vpop.xlane.xlu0 %812
    %v814 = vsel %vm795, %v750, -inf
    %815 = vmax.xlane.f32.xlu0 %v814
    %v816 = vpop.xlane.xlu0 %815
    %v817 = vsel %vm795, %v790, -inf
    %818 = vmax.xlane.f32.xlu0 %v817
    %v819 = vpop.xlane.xlu0 %818
    %v820 = vrot.slane %v798, 4
    %v821 = vmax.f32 %v798, %v820
    %v822 = vrot.slane %v821, 2
    %v823 = vmax.f32 %v821, %v822
    %v824 = vrot.slane %v823, 1
    %v825 = vmax.f32 %v823, %v824
    %v826 = vrot.slane %v801, 4
    %v827 = vmax.f32 %v801, %v826
    %v828 = vrot.slane %v827, 2
    %v829 = vmax.f32 %v827, %v828
    %v830 = vrot.slane %v829, 1
    %v831 = vmax.f32 %v829, %v830
    %v832 = vrot.slane %v804, 4
    %v833 = vmax.f32 %v804, %v832
    %v834 = vrot.slane %v833, 2
    %v835 = vmax.f32 %v833, %v834
    %v836 = vrot.slane %v835, 1
    %v837 = vmax.f32 %v835, %v836
    %v838 = vrot.slane %v807, 4
    %v839 = vmax.f32 %v807, %v838
    %v840 = vrot.slane %v839, 2
    %v841 = vmax.f32 %v839, %v840
    %v842 = vrot.slane %v841, 1
    %v843 = vmax.f32 %v841, %v842
    %v844 = vrot.slane %v810, 4
    %v845 = vmax.f32 %v810, %v844
    %v846 = vrot.slane %v845, 2
    %v847 = vmax.f32 %v845, %v846
    %v848 = vrot.slane %v847, 1
    %v849 = vmax.f32 %v847, %v848
    %v850 = vrot.slane %v813, 4
    %v851 = vmax.f32 %v813, %v850
    %v852 = vrot.slane %v851, 2
    %v853 = vmax.f32 %v851, %v852
    %v854 = vrot.slane %v853, 1
    %v855 = vmax.f32 %v853, %v854
    %v856 = vrot.slane %v816, 4
    %v857 = vmax.f32 %v816, %v856
    %v858 = vrot.slane %v857, 2
    %v859 = vmax.f32 %v857, %v858
    %v860 = vrot.slane %v859, 1
    %v861 = vmax.f32 %v859, %v860
    %v862 = vrot.slane %v819, 4
    %v863 = vmax.f32 %v819, %v862
    %v864 = vrot.slane %v863, 2
    %v865 = vmax.f32 %v863, %v864
    %v866 = vrot.slane %v865, 1
    %v867 = vmax.f32 %v865, %v866
    %vm868 = vweird.f32 %v825
    %vm869 = vweird.f32 %v831
    %vm870 = vweird.f32 %v837
    %vm871 = vweird.f32 %v843
    %vm872 = vweird.f32 %v849
    %vm873 = vweird.f32 %v855
    %vm874 = vweird.f32 %v861
    %vm875 = vweird.f32 %v867
    %vm876 = vmxor %vm868, 1
    %vm877 = vmxor %vm869, 1
    %vm878 = vmxor %vm870, 1
    %vm879 = vmxor %vm871, 1
    %vm880 = vmxor %vm872, 1
    %vm881 = vmxor %vm873, 1
    %vm882 = vmxor %vm874, 1
    %vm883 = vmxor %vm875, 1
    %v884 = vsel %vm876, %v825, 0.0
    %v885 = vsel %vm877, %v831, 0.0
    %v886 = vsel %vm878, %v837, 0.0
    %v887 = vsel %vm879, %v843, 0.0
    %v888 = vsel %vm880, %v849, 0.0
    %v889 = vsel %vm881, %v855, 0.0
    %v890 = vsel %vm882, %v861, 0.0
    %v891 = vsel %vm883, %v867, 0.0
    %v892 = vsub.f32 %v510, %v884
    %v893 = vsub.f32 %v550, %v885
    %v894 = vsub.f32 %v590, %v886
    %v895 = vsub.f32 %v630, %v887
    %v896 = vsub.f32 %v670, %v888
    %v897 = vsub.f32 %v710, %v889
    %v898 = vsub.f32 %v750, %v890
    %v899 = vsub.f32 %v790, %v891
    %v900 = vmul.f32 %v892, 1.442695
    %v901 = vpow.pop %v900
    %v902 = vmul.f32 %v893, 1.442695
    %v903 = vpow.pop %v902
    %v904 = vmul.f32 %v894, 1.442695
    %v905 = vpow.pop %v904
    %v906 = vmul.f32 %v895, 1.442695
    %v907 = vpow.pop %v906
    %v908 = vmul.f32 %v896, 1.442695
    %v909 = vpow.pop %v908
    %v910 = vmul.f32 %v897, 1.442695
    %v911 = vpow.pop %v910
    %v912 = vmul.f32 %v898, 1.442695
    %v913 = vpow.pop %v912
    %v914 = vmul.f32 %v899, 1.442695
    %v915 = vpow.pop %v914
    %v916 = vsel %vm795, %v901, 0.0
    %917 = vadd.xlane.f32.xlu0 %v916
    %v918 = vpop.xlane.xlu0 %917
    %v919 = vsel %vm795, %v903, 0.0
    %920 = vadd.xlane.f32.xlu0 %v919
    %v921 = vpop.xlane.xlu0 %920
    %v922 = vsel %vm795, %v905, 0.0
    %923 = vadd.xlane.f32.xlu0 %v922
    %v924 = vpop.xlane.xlu0 %923
    %v925 = vsel %vm795, %v907, 0.0
    %926 = vadd.xlane.f32.xlu0 %v925
    %v927 = vpop.xlane.xlu0 %926
    %v928 = vsel %vm795, %v909, 0.0
    %929 = vadd.xlane.f32.xlu0 %v928
    %v930 = vpop.xlane.xlu0 %929
    %v931 = vsel %vm795, %v911, 0.0
    %932 = vadd.xlane.f32.xlu0 %v931
    %v933 = vpop.xlane.xlu0 %932
    %v934 = vsel %vm795, %v913, 0.0
    %935 = vadd.xlane.f32.xlu0 %v934
    %v936 = vpop.xlane.xlu0 %935
    %v937 = vsel %vm795, %v915, 0.0
    %938 = vadd.xlane.f32.xlu0 %v937
    %v939 = vpop.xlane.xlu0 %938
    %v940 = vrot.slane %v918, 4
    %v941 = vadd.f32 %v918, %v940
    %v942 = vrot.slane %v941, 2
    %v943 = vadd.f32 %v941, %v942
    %v944 = vrot.slane %v943, 1
    %v945 = vadd.f32 %v943, %v944
    %v946 = vrot.slane %v921, 4
    %v947 = vadd.f32 %v921, %v946
    %v948 = vrot.slane %v947, 2
    %v949 = vadd.f32 %v947, %v948
    %v950 = vrot.slane %v949, 1
    %v951 = vadd.f32 %v949, %v950
    %v952 = vrot.slane %v924, 4
    %v953 = vadd.f32 %v924, %v952
    %v954 = vrot.slane %v953, 2
    %v955 = vadd.f32 %v953, %v954
    %v956 = vrot.slane %v955, 1
    %v957 = vadd.f32 %v955, %v956
    %v958 = vrot.slane %v927, 4
    %v959 = vadd.f32 %v927, %v958
    %v960 = vrot.slane %v959, 2
    %v961 = vadd.f32 %v959, %v960
    %v962 = vrot.slane %v961, 1
    %v963 = vadd.f32 %v961, %v962
    %v964 = vrot.slane %v930, 4
    %v965 = vadd.f32 %v930, %v964
    %v966 = vrot.slane %v965, 2
    %v967 = vadd.f32 %v965, %v966
    %v968 = vrot.slane %v967, 1
    %v969 = vadd.f32 %v967, %v968
    %v970 = vrot.slane %v933, 4
    %v971 = vadd.f32 %v933, %v970
    %v972 = vrot.slane %v971, 2
    %v973 = vadd.f32 %v971, %v972
    %v974 = vrot.slane %v973, 1
    %v975 = vadd.f32 %v973, %v974
    %v976 = vrot.slane %v936, 4
    %v977 = vadd.f32 %v936, %v976
    %v978 = vrot.slane %v977, 2
    %v979 = vadd.f32 %v977, %v978
    %v980 = vrot.slane %v979, 1
    %v981 = vadd.f32 %v979, %v980
    %v982 = vrot.slane %v939, 4
    %v983 = vadd.f32 %v939, %v982
    %v984 = vrot.slane %v983, 2
    %v985 = vadd.f32 %v983, %v984
    %v986 = vrot.slane %v985, 1
    %v987 = vadd.f32 %v985, %v986
    %v988 = vlog2.pop %v945
    %v989 = vmul.f32 %v988, 0.6931472
    %v990 = vlog2.pop %v951
    %v991 = vmul.f32 %v990, 0.6931472
    %v992 = vlog2.pop %v957
    %v993 = vmul.f32 %v992, 0.6931472
    %v994 = vlog2.pop %v963
    %v995 = vmul.f32 %v994, 0.6931472
    %v996 = vlog2.pop %v969
    %v997 = vmul.f32 %v996, 0.6931472
    %v998 = vlog2.pop %v975
    %v999 = vmul.f32 %v998, 0.6931472
    %v1000 = vlog2.pop %v981
    %v1001 = vmul.f32 %v1000, 0.6931472
    %v1002 = vlog2.pop %v987
    %v1003 = vmul.f32 %v1002, 0.6931472
    %v1004 = vadd.f32 %v884, %v989
    %v1005 = vadd.f32 %v885, %v991
    %v1006 = vadd.f32 %v886, %v993
    %v1007 = vadd.f32 %v887, %v995
    %v1008 = vadd.f32 %v888, %v997
    %v1009 = vadd.f32 %v889, %v999
    %v1010 = vadd.f32 %v890, %v1001
    %v1011 = vadd.f32 %v891, %v1003
    %v1012 = vpack.c.bf16 %v334, %v334
    %v1013 = vpack.c.bf16 %v338, %v338
    %v1014 = vpack.c.bf16 %v344, %v344
    %v1015 = vpack.c.bf16 %v348, %v348
    %v1016 = vpack.c.bf16 %v354, %v354
    %v1017 = vpack.c.bf16 %v358, %v358
    %v1018 = vpack.c.bf16 %v364, %v364
    %v1019 = vpack.c.bf16 %v368, %v368
    %1020 = vmatprep.subr.bf16.mxu0 0
    %1021 = vmatpush1.bf16.xpose.msra.mxu0 0
    %1022 = vmatprep.subr.bf16.mxu0 0
    %1023 = vmatpush1.bf16.xpose.msra.mxu0 0
    %1024 = vmatprep.subr.bf16.mxu0 0
    %1025 = vmatpush1.bf16.xpose.msra.mxu0 0
    %1026 = vmatprep.subr.bf16.mxu0 0
    %1027 = vmatpush1.bf16.xpose.msra.mxu0 0
    %1028 = vmatprep.subr.bf16.mxu0 0
    %1029 = vmatpush1.bf16.xpose.msra.mxu0 0
    %1030 = vmatprep.subr.bf16.mxu0 0
    %1031 = vmatpush1.bf16.xpose.msra.mxu0 0
    %1032 = vmatprep.subr.bf16.mxu0 0
    %1033 = vmatpush1.bf16.xpose.msra.mxu0 0
    %1034 = vmatprep.subr.bf16.mxu0 0
    %1035 = vmatpush1.bf16.xpose.msra.mxu0 %v443
    %1036 = vmatprep.subr.bf16.mxu0 0
    %1037 = vmatpush2.bf16.xpose.msra.mxu0 0
    %1038 = vmatprep.subr.bf16.mxu0 0
    %1039 = vmatpush2.bf16.xpose.msra.mxu0 0
    %1040 = vmatprep.subr.bf16.mxu0 0
    %1041 = vmatpush2.bf16.xpose.msra.mxu0 0
    %1042 = vmatprep.subr.bf16.mxu0 0
    %1043 = vmatpush2.bf16.xpose.msra.mxu0 0
    %1044 = vmatprep.subr.bf16.mxu0 0
    %1045 = vmatpush2.bf16.xpose.msra.mxu0 0
    %1046 = vmatprep.subr.bf16.mxu0 0
    %1047 = vmatpush2.bf16.xpose.msra.mxu0 0
    %1048 = vmatprep.subr.bf16.mxu0 0
    %1049 = vmatpush2.bf16.xpose.msra.mxu0 0
    %1050 = vmatprep.subr.bf16.mxu0 0
    %1051 = vmatpush2.bf16.xpose.msra.mxu0 0
    %1052 = vmatprep.mubr.bf16.mxu0 0
    %1053 = vmatmul.mubr.bf16.gmra.mxu0 %v1012
    %v1054 = vpop.f32.mrf.mxu0
    %v1055 = vadd.f32 %v459, %v1054
    %v1056 = vpop.f32.mrf.mxu0
    %v1057 = vpop.f32.mrf.mxu0
    %v1058 = vpop.f32.mrf.mxu0
    %1059 = vdwg.mxu0
    %1060 = vmatprep.subr.bf16.mxu0 0
    %1061 = vmatpush1.bf16.xpose.msra.mxu0 0
    %1062 = vmatprep.subr.bf16.mxu0 0
    %1063 = vmatpush1.bf16.xpose.msra.mxu0 0
    %1064 = vmatprep.subr.bf16.mxu0 0
    %1065 = vmatpush1.bf16.xpose.msra.mxu0 0
    %1066 = vmatprep.subr.bf16.mxu0 0
    %1067 = vmatpush1.bf16.xpose.msra.mxu0 0
    %1068 = vmatprep.subr.bf16.mxu0 0
    %1069 = vmatpush1.bf16.xpose.msra.mxu0 0
    %1070 = vmatprep.subr.bf16.mxu0 0
    %1071 = vmatpush1.bf16.xpose.msra.mxu0 0
    %1072 = vmatprep.subr.bf16.mxu0 0
    %1073 = vmatpush1.bf16.xpose.msra.mxu0 0
    %1074 = vmatprep.subr.bf16.mxu0 0
    %1075 = vmatpush1.bf16.xpose.msra.mxu0 %v444
    %1076 = vmatprep.subr.bf16.mxu0 0
    %1077 = vmatpush2.bf16.xpose.msra.mxu0 0
    %1078 = vmatprep.subr.bf16.mxu0 0
    %1079 = vmatpush2.bf16.xpose.msra.mxu0 0
    %1080 = vmatprep.subr.bf16.mxu0 0
    %1081 = vmatpush2.bf16.xpose.msra.mxu0 0
    %1082 = vmatprep.subr.bf16.mxu0 0
    %1083 = vmatpush2.bf16.xpose.msra.mxu0 0
    %1084 = vmatprep.subr.bf16.mxu0 0
    %1085 = vmatpush2.bf16.xpose.msra.mxu0 0
    %1086 = vmatprep.subr.bf16.mxu0 0
    %1087 = vmatpush2.bf16.xpose.msra.mxu0 0
    %1088 = vmatprep.subr.bf16.mxu0 0
    %1089 = vmatpush2.bf16.xpose.msra.mxu0 0
    %1090 = vmatprep.subr.bf16.mxu0 0
    %1091 = vmatpush2.bf16.xpose.msra.mxu0 0
    %1092 = vmatprep.mubr.bf16.mxu0 0
    %1093 = vmatmul.mubr.bf16.gmra.mxu0 %v1013
    %v1094 = vpop.f32.mrf.mxu0
    %v1095 = vadd.f32 %v460, %v1094
    %v1096 = vpop.f32.mrf.mxu0
    %v1097 = vpop.f32.mrf.mxu0
    %v1098 = vpop.f32.mrf.mxu0
    %1099 = vdwg.mxu0
    %1100 = vmatprep.subr.bf16.mxu0 0
    %1101 = vmatpush1.bf16.xpose.msra.mxu0 0
    %1102 = vmatprep.subr.bf16.mxu0 0
    %1103 = vmatpush1.bf16.xpose.msra.mxu0 0
    %1104 = vmatprep.subr.bf16.mxu0 0
    %1105 = vmatpush1.bf16.xpose.msra.mxu0 0
    %1106 = vmatprep.subr.bf16.mxu0 0
    %1107 = vmatpush1.bf16.xpose.msra.mxu0 0
    %1108 = vmatprep.subr.bf16.mxu0 0
    %1109 = vmatpush1.bf16.xpose.msra.mxu0 0
    %1110 = vmatprep.subr.bf16.mxu0 0
    %1111 = vmatpush1.bf16.xpose.msra.mxu0 0
    %1112 = vmatprep.subr.bf16.mxu0 0
    %1113 = vmatpush1.bf16.xpose.msra.mxu0 0
    %1114 = vmatprep.subr.bf16.mxu0 0
    %1115 = vmatpush1.bf16.xpose.msra.mxu0 %v445
    %1116 = vmatprep.subr.bf16.mxu0 0
    %1117 = vmatpush2.bf16.xpose.msra.mxu0 0
    %1118 = vmatprep.subr.bf16.mxu0 0
    %1119 = vmatpush2.bf16.xpose.msra.mxu0 0
    %1120 = vmatprep.subr.bf16.mxu0 0
    %1121 = vmatpush2.bf16.xpose.msra.mxu0 0
    %1122 = vmatprep.subr.bf16.mxu0 0
    %1123 = vmatpush2.bf16.xpose.msra.mxu0 0
    %1124 = vmatprep.subr.bf16.mxu0 0
    %1125 = vmatpush2.bf16.xpose.msra.mxu0 0
    %1126 = vmatprep.subr.bf16.mxu0 0
    %1127 = vmatpush2.bf16.xpose.msra.mxu0 0
    %1128 = vmatprep.subr.bf16.mxu0 0
    %1129 = vmatpush2.bf16.xpose.msra.mxu0 0
    %1130 = vmatprep.subr.bf16.mxu0 0
    %1131 = vmatpush2.bf16.xpose.msra.mxu0 0
    %1132 = vmatprep.mubr.bf16.mxu0 0
    %1133 = vmatmul.mubr.bf16.gmra.mxu0 %v1014
    %v1134 = vpop.f32.mrf.mxu0
    %v1135 = vadd.f32 %v461, %v1134
    %v1136 = vpop.f32.mrf.mxu0
    %v1137 = vpop.f32.mrf.mxu0
    %v1138 = vpop.f32.mrf.mxu0
    %1139 = vdwg.mxu0
    %1140 = vmatprep.subr.bf16.mxu0 0
    %1141 = vmatpush1.bf16.xpose.msra.mxu0 0
    %1142 = vmatprep.subr.bf16.mxu0 0
    %1143 = vmatpush1.bf16.xpose.msra.mxu0 0
    %1144 = vmatprep.subr.bf16.mxu0 0
    %1145 = vmatpush1.bf16.xpose.msra.mxu0 0
    %1146 = vmatprep.subr.bf16.mxu0 0
    %1147 = vmatpush1.bf16.xpose.msra.mxu0 0
    %1148 = vmatprep.subr.bf16.mxu0 0
    %1149 = vmatpush1.bf16.xpose.msra.mxu0 0
    %1150 = vmatprep.subr.bf16.mxu0 0
    %1151 = vmatpush1.bf16.xpose.msra.mxu0 0
    %1152 = vmatprep.subr.bf16.mxu0 0
    %1153 = vmatpush1.bf16.xpose.msra.mxu0 0
    %1154 = vmatprep.subr.bf16.mxu0 0
    %1155 = vmatpush1.bf16.xpose.msra.mxu0 %v446
    %1156 = vmatprep.subr.bf16.mxu0 0
    %1157 = vmatpush2.bf16.xpose.msra.mxu0 0
    %1158 = vmatprep.subr.bf16.mxu0 0
    %1159 = vmatpush2.bf16.xpose.msra.mxu0 0
    %1160 = vmatprep.subr.bf16.mxu0 0
    %1161 = vmatpush2.bf16.xpose.msra.mxu0 0
    %1162 = vmatprep.subr.bf16.mxu0 0
    %1163 = vmatpush2.bf16.xpose.msra.mxu0 0
    %1164 = vmatprep.subr.bf16.mxu0 0
    %1165 = vmatpush2.bf16.xpose.msra.mxu0 0
    %1166 = vmatprep.subr.bf16.mxu0 0
    %1167 = vmatpush2.bf16.xpose.msra.mxu0 0
    %1168 = vmatprep.subr.bf16.mxu0 0
    %1169 = vmatpush2.bf16.xpose.msra.mxu0 0
    %1170 = vmatprep.subr.bf16.mxu0 0
    %1171 = vmatpush2.bf16.xpose.msra.mxu0 0
    %1172 = vmatprep.mubr.bf16.mxu0 0
    %1173 = vmatmul.mubr.bf16.gmra.mxu0 %v1015
    %v1174 = vpop.f32.mrf.mxu0
    %v1175 = vadd.f32 %v462, %v1174
    %v1176 = vpop.f32.mrf.mxu0
    %v1177 = vpop.f32.mrf.mxu0
    %v1178 = vpop.f32.mrf.mxu0
    %1179 = vdwg.mxu0
    %1180 = vmatprep.subr.bf16.mxu0 0
    %1181 = vmatpush1.bf16.xpose.msra.mxu0 0
    %1182 = vmatprep.subr.bf16.mxu0 0
    %1183 = vmatpush1.bf16.xpose.msra.mxu0 0
    %1184 = vmatprep.subr.bf16.mxu0 0
    %1185 = vmatpush1.bf16.xpose.msra.mxu0 0
    %1186 = vmatprep.subr.bf16.mxu0 0
    %1187 = vmatpush1.bf16.xpose.msra.mxu0 0
    %1188 = vmatprep.subr.bf16.mxu0 0
    %1189 = vmatpush1.bf16.xpose.msra.mxu0 0
    %1190 = vmatprep.subr.bf16.mxu0 0
    %1191 = vmatpush1.bf16.xpose.msra.mxu0 0
    %1192 = vmatprep.subr.bf16.mxu0 0
    %1193 = vmatpush1.bf16.xpose.msra.mxu0 0
    %1194 = vmatprep.subr.bf16.mxu0 0
    %1195 = vmatpush1.bf16.xpose.msra.mxu0 %v447
    %1196 = vmatprep.subr.bf16.mxu0 0
    %1197 = vmatpush2.bf16.xpose.msra.mxu0 0
    %1198 = vmatprep.subr.bf16.mxu0 0
    %1199 = vmatpush2.bf16.xpose.msra.mxu0 0
    %1200 = vmatprep.subr.bf16.mxu0 0
    %1201 = vmatpush2.bf16.xpose.msra.mxu0 0
    %1202 = vmatprep.subr.bf16.mxu0 0
    %1203 = vmatpush2.bf16.xpose.msra.mxu0 0
    %1204 = vmatprep.subr.bf16.mxu0 0
    %1205 = vmatpush2.bf16.xpose.msra.mxu0 0
    %1206 = vmatprep.subr.bf16.mxu0 0
    %1207 = vmatpush2.bf16.xpose.msra.mxu0 0
    %1208 = vmatprep.subr.bf16.mxu0 0
    %1209 = vmatpush2.bf16.xpose.msra.mxu0 0
    %1210 = vmatprep.subr.bf16.mxu0 0
    %1211 = vmatpush2.bf16.xpose.msra.mxu0 0
    %1212 = vmatprep.mubr.bf16.mxu0 0
    %1213 = vmatmul.mubr.bf16.gmra.mxu0 %v1016
    %v1214 = vpop.f32.mrf.mxu0
    %v1215 = vadd.f32 %v463, %v1214
    %v1216 = vpop.f32.mrf.mxu0
    %v1217 = vpop.f32.mrf.mxu0
    %v1218 = vpop.f32.mrf.mxu0
    %1219 = vdwg.mxu0
    %1220 = vmatprep.subr.bf16.mxu0 0
    %1221 = vmatpush1.bf16.xpose.msra.mxu0 0
    %1222 = vmatprep.subr.bf16.mxu0 0
    %1223 = vmatpush1.bf16.xpose.msra.mxu0 0
    %1224 = vmatprep.subr.bf16.mxu0 0
    %1225 = vmatpush1.bf16.xpose.msra.mxu0 0
    %1226 = vmatprep.subr.bf16.mxu0 0
    %1227 = vmatpush1.bf16.xpose.msra.mxu0 0
    %1228 = vmatprep.subr.bf16.mxu0 0
    %1229 = vmatpush1.bf16.xpose.msra.mxu0 0
    %1230 = vmatprep.subr.bf16.mxu0 0
    %1231 = vmatpush1.bf16.xpose.msra.mxu0 0
    %1232 = vmatprep.subr.bf16.mxu0 0
    %1233 = vmatpush1.bf16.xpose.msra.mxu0 0
    %1234 = vmatprep.subr.bf16.mxu0 0
    %1235 = vmatpush1.bf16.xpose.msra.mxu0 %v448
    %1236 = vmatprep.subr.bf16.mxu0 0
    %1237 = vmatpush2.bf16.xpose.msra.mxu0 0
    %1238 = vmatprep.subr.bf16.mxu0 0
    %1239 = vmatpush2.bf16.xpose.msra.mxu0 0
    %1240 = vmatprep.subr.bf16.mxu0 0
    %1241 = vmatpush2.bf16.xpose.msra.mxu0 0
    %1242 = vmatprep.subr.bf16.mxu0 0
    %1243 = vmatpush2.bf16.xpose.msra.mxu0 0
    %1244 = vmatprep.subr.bf16.mxu0 0
    %1245 = vmatpush2.bf16.xpose.msra.mxu0 0
    %1246 = vmatprep.subr.bf16.mxu0 0
    %1247 = vmatpush2.bf16.xpose.msra.mxu0 0
    %1248 = vmatprep.subr.bf16.mxu0 0
    %1249 = vmatpush2.bf16.xpose.msra.mxu0 0
    %1250 = vmatprep.subr.bf16.mxu0 0
    %1251 = vmatpush2.bf16.xpose.msra.mxu0 0
    %1252 = vmatprep.mubr.bf16.mxu0 0
    %1253 = vmatmul.mubr.bf16.gmra.mxu0 %v1017
    %v1254 = vpop.f32.mrf.mxu0
    %v1255 = vadd.f32 %v464, %v1254
    %v1256 = vpop.f32.mrf.mxu0
    %v1257 = vpop.f32.mrf.mxu0
    %v1258 = vpop.f32.mrf.mxu0
    %1259 = vdwg.mxu0
    %1260 = vmatprep.subr.bf16.mxu0 0
    %1261 = vmatpush1.bf16.xpose.msra.mxu0 0
    %1262 = vmatprep.subr.bf16.mxu0 0
    %1263 = vmatpush1.bf16.xpose.msra.mxu0 0
    %1264 = vmatprep.subr.bf16.mxu0 0
    %1265 = vmatpush1.bf16.xpose.msra.mxu0 0
    %1266 = vmatprep.subr.bf16.mxu0 0
    %1267 = vmatpush1.bf16.xpose.msra.mxu0 0
    %1268 = vmatprep.subr.bf16.mxu0 0
    %1269 = vmatpush1.bf16.xpose.msra.mxu0 0
    %1270 = vmatprep.subr.bf16.mxu0 0
    %1271 = vmatpush1.bf16.xpose.msra.mxu0 0
    %1272 = vmatprep.subr.bf16.mxu0 0
    %1273 = vmatpush1.bf16.xpose.msra.mxu0 0
    %1274 = vmatprep.subr.bf16.mxu0 0
    %1275 = vmatpush1.bf16.xpose.msra.mxu0 %v449
    %1276 = vmatprep.subr.bf16.mxu0 0
    %1277 = vmatpush2.bf16.xpose.msra.mxu0 0
    %1278 = vmatprep.subr.bf16.mxu0 0
    %1279 = vmatpush2.bf16.xpose.msra.mxu0 0
    %1280 = vmatprep.subr.bf16.mxu0 0
    %1281 = vmatpush2.bf16.xpose.msra.mxu0 0
    %1282 = vmatprep.subr.bf16.mxu0 0
    %1283 = vmatpush2.bf16.xpose.msra.mxu0 0
    %1284 = vmatprep.subr.bf16.mxu0 0
    %1285 = vmatpush2.bf16.xpose.msra.mxu0 0
    %1286 = vmatprep.subr.bf16.mxu0 0
    %1287 = vmatpush2.bf16.xpose.msra.mxu0 0
    %1288 = vmatprep.subr.bf16.mxu0 0
    %1289 = vmatpush2.bf16.xpose.msra.mxu0 0
    %1290 = vmatprep.subr.bf16.mxu0 0
    %1291 = vmatpush2.bf16.xpose.msra.mxu0 0
    %1292 = vmatprep.mubr.bf16.mxu0 0
    %1293 = vmatmul.mubr.bf16.gmra.mxu0 %v1018
    %v1294 = vpop.f32.mrf.mxu0
    %v1295 = vadd.f32 %v465, %v1294
    %v1296 = vpop.f32.mrf.mxu0
    %v1297 = vpop.f32.mrf.mxu0
    %v1298 = vpop.f32.mrf.mxu0
    %1299 = vdwg.mxu0
    %1300 = vmatprep.subr.bf16.mxu0 0
    %1301 = vmatpush1.bf16.xpose.msra.mxu0 0
    %1302 = vmatprep.subr.bf16.mxu0 0
    %1303 = vmatpush1.bf16.xpose.msra.mxu0 0
    %1304 = vmatprep.subr.bf16.mxu0 0
    %1305 = vmatpush1.bf16.xpose.msra.mxu0 0
    %1306 = vmatprep.subr.bf16.mxu0 0
    %1307 = vmatpush1.bf16.xpose.msra.mxu0 0
    %1308 = vmatprep.subr.bf16.mxu0 0
    %1309 = vmatpush1.bf16.xpose.msra.mxu0 0
    %1310 = vmatprep.subr.bf16.mxu0 0
    %1311 = vmatpush1.bf16.xpose.msra.mxu0 0
    %1312 = vmatprep.subr.bf16.mxu0 0
    %1313 = vmatpush1.bf16.xpose.msra.mxu0 0
    %1314 = vmatprep.subr.bf16.mxu0 0
    %1315 = vmatpush1.bf16.xpose.msra.mxu0 %v450
    %1316 = vmatprep.subr.bf16.mxu0 0
    %1317 = vmatpush2.bf16.xpose.msra.mxu0 0
    %1318 = vmatprep.subr.bf16.mxu0 0
    %1319 = vmatpush2.bf16.xpose.msra.mxu0 0
    %1320 = vmatprep.subr.bf16.mxu0 0
    %1321 = vmatpush2.bf16.xpose.msra.mxu0 0
    %1322 = vmatprep.subr.bf16.mxu0 0
    %1323 = vmatpush2.bf16.xpose.msra.mxu0 0
    %1324 = vmatprep.subr.bf16.mxu0 0
    %1325 = vmatpush2.bf16.xpose.msra.mxu0 0
    %1326 = vmatprep.subr.bf16.mxu0 0
    %1327 = vmatpush2.bf16.xpose.msra.mxu0 0
    %1328 = vmatprep.subr.bf16.mxu0 0
    %1329 = vmatpush2.bf16.xpose.msra.mxu0 0
    %1330 = vmatprep.subr.bf16.mxu0 0
    %1331 = vmatpush2.bf16.xpose.msra.mxu0 0
    %1332 = vmatprep.mubr.bf16.mxu0 0
    %1333 = vmatmul.mubr.bf16.gmra.mxu0 %v1019
    %v1334 = vpop.f32.mrf.mxu0
    %v1335 = vadd.f32 %v466, %v1334
    %v1336 = vpop.f32.mrf.mxu0
    %v1337 = vpop.f32.mrf.mxu0
    %v1338 = vpop.f32.mrf.mxu0
    %1339 = vdwg.mxu0
    %v1340 = vsel %vm795, %v1055, -inf
    %1341 = vmax.xlane.f32.xlu0 %v1340
    %v1342 = vpop.xlane.xlu0 %1341
    %v1343 = vsel %vm795, %v1095, -inf
    %1344 = vmax.xlane.f32.xlu0 %v1343
    %v1345 = vpop.xlane.xlu0 %1344
    %v1346 = vsel %vm795, %v1135, -inf
    %1347 = vmax.xlane.f32.xlu0 %v1346
    %v1348 = vpop.xlane.xlu0 %1347
    %v1349 = vsel %vm795, %v1175, -inf
    %1350 = vmax.xlane.f32.xlu0 %v1349
    %v1351 = vpop.xlane.xlu0 %1350
    %v1352 = vsel %vm795, %v1215, -inf
    %1353 = vmax.xlane.f32.xlu0 %v1352
    %v1354 = vpop.xlane.xlu0 %1353
    %v1355 = vsel %vm795, %v1255, -inf
    %1356 = vmax.xlane.f32.xlu0 %v1355
    %v1357 = vpop.xlane.xlu0 %1356
    %v1358 = vsel %vm795, %v1295, -inf
    %1359 = vmax.xlane.f32.xlu0 %v1358
    %v1360 = vpop.xlane.xlu0 %1359
    %v1361 = vsel %vm795, %v1335, -inf
    %1362 = vmax.xlane.f32.xlu0 %v1361
    %v1363 = vpop.xlane.xlu0 %1362
    %v1364 = vrot.slane %v1342, 4
    %v1365 = vmax.f32 %v1342, %v1364
    %v1366 = vrot.slane %v1365, 2
    %v1367 = vmax.f32 %v1365, %v1366
    %v1368 = vrot.slane %v1367, 1
    %v1369 = vmax.f32 %v1367, %v1368
    %v1370 = vrot.slane %v1345, 4
    %v1371 = vmax.f32 %v1345, %v1370
    %v1372 = vrot.slane %v1371, 2
    %v1373 = vmax.f32 %v1371, %v1372
    %v1374 = vrot.slane %v1373, 1
    %v1375 = vmax.f32 %v1373, %v1374
    %v1376 = vrot.slane %v1348, 4
    %v1377 = vmax.f32 %v1348, %v1376
    %v1378 = vrot.slane %v1377, 2
    %v1379 = vmax.f32 %v1377, %v1378
    %v1380 = vrot.slane %v1379, 1
    %v1381 = vmax.f32 %v1379, %v1380
    %v1382 = vrot.slane %v1351, 4
    %v1383 = vmax.f32 %v1351, %v1382
    %v1384 = vrot.slane %v1383, 2
    %v1385 = vmax.f32 %v1383, %v1384
    %v1386 = vrot.slane %v1385, 1
    %v1387 = vmax.f32 %v1385, %v1386
    %v1388 = vrot.slane %v1354, 4
    %v1389 = vmax.f32 %v1354, %v1388
    %v1390 = vrot.slane %v1389, 2
    %v1391 = vmax.f32 %v1389, %v1390
    %v1392 = vrot.slane %v1391, 1
    %v1393 = vmax.f32 %v1391, %v1392
    %v1394 = vrot.slane %v1357, 4
    %v1395 = vmax.f32 %v1357, %v1394
    %v1396 = vrot.slane %v1395, 2
    %v1397 = vmax.f32 %v1395, %v1396
    %v1398 = vrot.slane %v1397, 1
    %v1399 = vmax.f32 %v1397, %v1398
    %v1400 = vrot.slane %v1360, 4
    %v1401 = vmax.f32 %v1360, %v1400
    %v1402 = vrot.slane %v1401, 2
    %v1403 = vmax.f32 %v1401, %v1402
    %v1404 = vrot.slane %v1403, 1
    %v1405 = vmax.f32 %v1403, %v1404
    %v1406 = vrot.slane %v1363, 4
    %v1407 = vmax.f32 %v1363, %v1406
    %v1408 = vrot.slane %v1407, 2
    %v1409 = vmax.f32 %v1407, %v1408
    %v1410 = vrot.slane %v1409, 1
    %v1411 = vmax.f32 %v1409, %v1410
    %vm1412 = vweird.f32 %v1369
    %vm1413 = vweird.f32 %v1375
    %vm1414 = vweird.f32 %v1381
    %vm1415 = vweird.f32 %v1387
    %vm1416 = vweird.f32 %v1393
    %vm1417 = vweird.f32 %v1399
    %vm1418 = vweird.f32 %v1405
    %vm1419 = vweird.f32 %v1411
    %vm1420 = vmxor %vm1412, 1
    %vm1421 = vmxor %vm1413, 1
    %vm1422 = vmxor %vm1414, 1
    %vm1423 = vmxor %vm1415, 1
    %vm1424 = vmxor %vm1416, 1
    %vm1425 = vmxor %vm1417, 1
    %vm1426 = vmxor %vm1418, 1
    %vm1427 = vmxor %vm1419, 1
    %v1428 = vsel %vm1420, %v1369, 0.0
    %v1429 = vsel %vm1421, %v1375, 0.0
    %v1430 = vsel %vm1422, %v1381, 0.0
    %v1431 = vsel %vm1423, %v1387, 0.0
    %v1432 = vsel %vm1424, %v1393, 0.0
    %v1433 = vsel %vm1425, %v1399, 0.0
    %v1434 = vsel %vm1426, %v1405, 0.0
    %v1435 = vsel %vm1427, %v1411, 0.0
    %v1436 = vsub.f32 %v1055, %v1428
    %v1437 = vsub.f32 %v1095, %v1429
    %v1438 = vsub.f32 %v1135, %v1430
    %v1439 = vsub.f32 %v1175, %v1431
    %v1440 = vsub.f32 %v1215, %v1432
    %v1441 = vsub.f32 %v1255, %v1433
    %v1442 = vsub.f32 %v1295, %v1434
    %v1443 = vsub.f32 %v1335, %v1435
    %v1444 = vmul.f32 %v1436, 1.442695
    %v1445 = vpow.pop %v1444
    %v1446 = vmul.f32 %v1437, 1.442695
    %v1447 = vpow.pop %v1446
    %v1448 = vmul.f32 %v1438, 1.442695
    %v1449 = vpow.pop %v1448
    %v1450 = vmul.f32 %v1439, 1.442695
    %v1451 = vpow.pop %v1450
    %v1452 = vmul.f32 %v1440, 1.442695
    %v1453 = vpow.pop %v1452
    %v1454 = vmul.f32 %v1441, 1.442695
    %v1455 = vpow.pop %v1454
    %v1456 = vmul.f32 %v1442, 1.442695
    %v1457 = vpow.pop %v1456
    %v1458 = vmul.f32 %v1443, 1.442695
    %v1459 = vpow.pop %v1458
    %v1460 = vsel %vm795, %v1445, 0.0
    %1461 = vadd.xlane.f32.xlu0 %v1460
    %v1462 = vpop.xlane.xlu0 %1461
    %v1463 = vsel %vm795, %v1447, 0.0
    %1464 = vadd.xlane.f32.xlu0 %v1463
    %v1465 = vpop.xlane.xlu0 %1464
    %v1466 = vsel %vm795, %v1449, 0.0
    %1467 = vadd.xlane.f32.xlu0 %v1466
    %v1468 = vpop.xlane.xlu0 %1467
    %v1469 = vsel %vm795, %v1451, 0.0
    %1470 = vadd.xlane.f32.xlu0 %v1469
    %v1471 = vpop.xlane.xlu0 %1470
    %v1472 = vsel %vm795, %v1453, 0.0
    %1473 = vadd.xlane.f32.xlu0 %v1472
    %v1474 = vpop.xlane.xlu0 %1473
    %v1475 = vsel %vm795, %v1455, 0.0
    %1476 = vadd.xlane.f32.xlu0 %v1475
    %v1477 = vpop.xlane.xlu0 %1476
    %v1478 = vsel %vm795, %v1457, 0.0
    %1479 = vadd.xlane.f32.xlu0 %v1478
    %v1480 = vpop.xlane.xlu0 %1479
    %v1481 = vsel %vm795, %v1459, 0.0
    %1482 = vadd.xlane.f32.xlu0 %v1481
    %v1483 = vpop.xlane.xlu0 %1482
    %v1484 = vrot.slane %v1462, 4
    %v1485 = vadd.f32 %v1462, %v1484
    %v1486 = vrot.slane %v1485, 2
    %v1487 = vadd.f32 %v1485, %v1486
    %v1488 = vrot.slane %v1487, 1
    %v1489 = vadd.f32 %v1487, %v1488
    %v1490 = vrot.slane %v1465, 4
    %v1491 = vadd.f32 %v1465, %v1490
    %v1492 = vrot.slane %v1491, 2
    %v1493 = vadd.f32 %v1491, %v1492
    %v1494 = vrot.slane %v1493, 1
    %v1495 = vadd.f32 %v1493, %v1494
    %v1496 = vrot.slane %v1468, 4
    %v1497 = vadd.f32 %v1468, %v1496
    %v1498 = vrot.slane %v1497, 2
    %v1499 = vadd.f32 %v1497, %v1498
    %v1500 = vrot.slane %v1499, 1
    %v1501 = vadd.f32 %v1499, %v1500
    %v1502 = vrot.slane %v1471, 4
    %v1503 = vadd.f32 %v1471, %v1502
    %v1504 = vrot.slane %v1503, 2
    %v1505 = vadd.f32 %v1503, %v1504
    %v1506 = vrot.slane %v1505, 1
    %v1507 = vadd.f32 %v1505, %v1506
    %v1508 = vrot.slane %v1474, 4
    %v1509 = vadd.f32 %v1474, %v1508
    %v1510 = vrot.slane %v1509, 2
    %v1511 = vadd.f32 %v1509, %v1510
    %v1512 = vrot.slane %v1511, 1
    %v1513 = vadd.f32 %v1511, %v1512
    %v1514 = vrot.slane %v1477, 4
    %v1515 = vadd.f32 %v1477, %v1514
    %v1516 = vrot.slane %v1515, 2
    %v1517 = vadd.f32 %v1515, %v1516
    %v1518 = vrot.slane %v1517, 1
    %v1519 = vadd.f32 %v1517, %v1518
    %v1520 = vrot.slane %v1480, 4
    %v1521 = vadd.f32 %v1480, %v1520
    %v1522 = vrot.slane %v1521, 2
    %v1523 = vadd.f32 %v1521, %v1522
    %v1524 = vrot.slane %v1523, 1
    %v1525 = vadd.f32 %v1523, %v1524
    %v1526 = vrot.slane %v1483, 4
    %v1527 = vadd.f32 %v1483, %v1526
    %v1528 = vrot.slane %v1527, 2
    %v1529 = vadd.f32 %v1527, %v1528
    %v1530 = vrot.slane %v1529, 1
    %v1531 = vadd.f32 %v1529, %v1530
    %v1532 = vlog2.pop %v1489
    %v1533 = vmul.f32 %v1532, 0.6931472
    %v1534 = vlog2.pop %v1495
    %v1535 = vmul.f32 %v1534, 0.6931472
    %v1536 = vlog2.pop %v1501
    %v1537 = vmul.f32 %v1536, 0.6931472
    %v1538 = vlog2.pop %v1507
    %v1539 = vmul.f32 %v1538, 0.6931472
    %v1540 = vlog2.pop %v1513
    %v1541 = vmul.f32 %v1540, 0.6931472
    %v1542 = vlog2.pop %v1519
    %v1543 = vmul.f32 %v1542, 0.6931472
    %v1544 = vlog2.pop %v1525
    %v1545 = vmul.f32 %v1544, 0.6931472
    %v1546 = vlog2.pop %v1531
    %v1547 = vmul.f32 %v1546, 0.6931472
    %v1548 = vadd.f32 %v1428, %v1533
    %v1549 = vadd.f32 %v1429, %v1535
    %v1550 = vadd.f32 %v1430, %v1537
    %v1551 = vadd.f32 %v1431, %v1539
    %v1552 = vadd.f32 %v1432, %v1541
    %v1553 = vadd.f32 %v1433, %v1543
    %v1554 = vadd.f32 %v1434, %v1545
    %v1555 = vadd.f32 %v1435, %v1547
    %v1556 = vpack.c.bf16 %v405, %v405
    %v1557 = vpack.c.bf16 %v409, %v409
    %v1558 = vpack.c.bf16 %v415, %v415
    %v1559 = vpack.c.bf16 %v419, %v419
    %v1560 = vpack.c.bf16 %v425, %v425
    %v1561 = vpack.c.bf16 %v429, %v429
    %v1562 = vpack.c.bf16 %v435, %v435
    %v1563 = vpack.c.bf16 %v439, %v439
    %1564 = vmatprep.subr.bf16.mxu0 0
    %1565 = vmatpush1.bf16.xpose.msra.mxu0 0
    %1566 = vmatprep.subr.bf16.mxu0 0
    %1567 = vmatpush1.bf16.xpose.msra.mxu0 0
    %1568 = vmatprep.subr.bf16.mxu0 0
    %1569 = vmatpush1.bf16.xpose.msra.mxu0 0
    %1570 = vmatprep.subr.bf16.mxu0 0
    %1571 = vmatpush1.bf16.xpose.msra.mxu0 0
    %1572 = vmatprep.subr.bf16.mxu0 0
    %1573 = vmatpush1.bf16.xpose.msra.mxu0 0
    %1574 = vmatprep.subr.bf16.mxu0 0
    %1575 = vmatpush1.bf16.xpose.msra.mxu0 0
    %1576 = vmatprep.subr.bf16.mxu0 0
    %1577 = vmatpush1.bf16.xpose.msra.mxu0 0
    %1578 = vmatprep.subr.bf16.mxu0 0
    %1579 = vmatpush1.bf16.xpose.msra.mxu0 %v443
    %1580 = vmatprep.subr.bf16.mxu0 0
    %1581 = vmatpush2.bf16.xpose.msra.mxu0 0
    %1582 = vmatprep.subr.bf16.mxu0 0
    %1583 = vmatpush2.bf16.xpose.msra.mxu0 0
    %1584 = vmatprep.subr.bf16.mxu0 0
    %1585 = vmatpush2.bf16.xpose.msra.mxu0 0
    %1586 = vmatprep.subr.bf16.mxu0 0
    %1587 = vmatpush2.bf16.xpose.msra.mxu0 0
    %1588 = vmatprep.subr.bf16.mxu0 0
    %1589 = vmatpush2.bf16.xpose.msra.mxu0 0
    %1590 = vmatprep.subr.bf16.mxu0 0
    %1591 = vmatpush2.bf16.xpose.msra.mxu0 0
    %1592 = vmatprep.subr.bf16.mxu0 0
    %1593 = vmatpush2.bf16.xpose.msra.mxu0 0
    %1594 = vmatprep.subr.bf16.mxu0 0
    %1595 = vmatpush2.bf16.xpose.msra.mxu0 0
    %1596 = vmatprep.mubr.bf16.mxu0 0
    %1597 = vmatmul.mubr.bf16.gmra.mxu0 %v1556
    %v1598 = vpop.f32.mrf.mxu0
    %v1599 = vadd.f32 %v459, %v1598
    %v1600 = vpop.f32.mrf.mxu0
    %v1601 = vpop.f32.mrf.mxu0
    %v1602 = vpop.f32.mrf.mxu0
    %1603 = vdwg.mxu0
    %1604 = vmatprep.subr.bf16.mxu0 0
    %1605 = vmatpush1.bf16.xpose.msra.mxu0 0
    %1606 = vmatprep.subr.bf16.mxu0 0
    %1607 = vmatpush1.bf16.xpose.msra.mxu0 0
    %1608 = vmatprep.subr.bf16.mxu0 0
    %1609 = vmatpush1.bf16.xpose.msra.mxu0 0
    %1610 = vmatprep.subr.bf16.mxu0 0
    %1611 = vmatpush1.bf16.xpose.msra.mxu0 0
    %1612 = vmatprep.subr.bf16.mxu0 0
    %1613 = vmatpush1.bf16.xpose.msra.mxu0 0
    %1614 = vmatprep.subr.bf16.mxu0 0
    %1615 = vmatpush1.bf16.xpose.msra.mxu0 0
    %1616 = vmatprep.subr.bf16.mxu0 0
    %1617 = vmatpush1.bf16.xpose.msra.mxu0 0
    %1618 = vmatprep.subr.bf16.mxu0 0
    %1619 = vmatpush1.bf16.xpose.msra.mxu0 %v444
    %1620 = vmatprep.subr.bf16.mxu0 0
    %1621 = vmatpush2.bf16.xpose.msra.mxu0 0
    %1622 = vmatprep.subr.bf16.mxu0 0
    %1623 = vmatpush2.bf16.xpose.msra.mxu0 0
    %1624 = vmatprep.subr.bf16.mxu0 0
    %1625 = vmatpush2.bf16.xpose.msra.mxu0 0
    %1626 = vmatprep.subr.bf16.mxu0 0
    %1627 = vmatpush2.bf16.xpose.msra.mxu0 0
    %1628 = vmatprep.subr.bf16.mxu0 0
    %1629 = vmatpush2.bf16.xpose.msra.mxu0 0
    %1630 = vmatprep.subr.bf16.mxu0 0
    %1631 = vmatpush2.bf16.xpose.msra.mxu0 0
    %1632 = vmatprep.subr.bf16.mxu0 0
    %1633 = vmatpush2.bf16.xpose.msra.mxu0 0
    %1634 = vmatprep.subr.bf16.mxu0 0
    %1635 = vmatpush2.bf16.xpose.msra.mxu0 0
    %1636 = vmatprep.mubr.bf16.mxu0 0
    %1637 = vmatmul.mubr.bf16.gmra.mxu0 %v1557
    %v1638 = vpop.f32.mrf.mxu0
    %v1639 = vadd.f32 %v460, %v1638
    %v1640 = vpop.f32.mrf.mxu0
    %v1641 = vpop.f32.mrf.mxu0
    %v1642 = vpop.f32.mrf.mxu0
    %1643 = vdwg.mxu0
    %1644 = vmatprep.subr.bf16.mxu0 0
    %1645 = vmatpush1.bf16.xpose.msra.mxu0 0
    %1646 = vmatprep.subr.bf16.mxu0 0
    %1647 = vmatpush1.bf16.xpose.msra.mxu0 0
    %1648 = vmatprep.subr.bf16.mxu0 0
    %1649 = vmatpush1.bf16.xpose.msra.mxu0 0
    %1650 = vmatprep.subr.bf16.mxu0 0
    %1651 = vmatpush1.bf16.xpose.msra.mxu0 0
    %1652 = vmatprep.subr.bf16.mxu0 0
    %1653 = vmatpush1.bf16.xpose.msra.mxu0 0
    %1654 = vmatprep.subr.bf16.mxu0 0
    %1655 = vmatpush1.bf16.xpose.msra.mxu0 0
    %1656 = vmatprep.subr.bf16.mxu0 0
    %1657 = vmatpush1.bf16.xpose.msra.mxu0 0
    %1658 = vmatprep.subr.bf16.mxu0 0
    %1659 = vmatpush1.bf16.xpose.msra.mxu0 %v445
    %1660 = vmatprep.subr.bf16.mxu0 0
    %1661 = vmatpush2.bf16.xpose.msra.mxu0 0
    %1662 = vmatprep.subr.bf16.mxu0 0
    %1663 = vmatpush2.bf16.xpose.msra.mxu0 0
    %1664 = vmatprep.subr.bf16.mxu0 0
    %1665 = vmatpush2.bf16.xpose.msra.mxu0 0
    %1666 = vmatprep.subr.bf16.mxu0 0
    %1667 = vmatpush2.bf16.xpose.msra.mxu0 0
    %1668 = vmatprep.subr.bf16.mxu0 0
    %1669 = vmatpush2.bf16.xpose.msra.mxu0 0
    %1670 = vmatprep.subr.bf16.mxu0 0
    %1671 = vmatpush2.bf16.xpose.msra.mxu0 0
    %1672 = vmatprep.subr.bf16.mxu0 0
    %1673 = vmatpush2.bf16.xpose.msra.mxu0 0
    %1674 = vmatprep.subr.bf16.mxu0 0
    %1675 = vmatpush2.bf16.xpose.msra.mxu0 0
    %1676 = vmatprep.mubr.bf16.mxu0 0
    %1677 = vmatmul.mubr.bf16.gmra.mxu0 %v1558
    %v1678 = vpop.f32.mrf.mxu0
    %v1679 = vadd.f32 %v461, %v1678
    %v1680 = vpop.f32.mrf.mxu0
    %v1681 = vpop.f32.mrf.mxu0
    %v1682 = vpop.f32.mrf.mxu0
    %1683 = vdwg.mxu0
    %1684 = vmatprep.subr.bf16.mxu0 0
    %1685 = vmatpush1.bf16.xpose.msra.mxu0 0
    %1686 = vmatprep.subr.bf16.mxu0 0
    %1687 = vmatpush1.bf16.xpose.msra.mxu0 0
    %1688 = vmatprep.subr.bf16.mxu0 0
    %1689 = vmatpush1.bf16.xpose.msra.mxu0 0
    %1690 = vmatprep.subr.bf16.mxu0 0
    %1691 = vmatpush1.bf16.xpose.msra.mxu0 0
    %1692 = vmatprep.subr.bf16.mxu0 0
    %1693 = vmatpush1.bf16.xpose.msra.mxu0 0
    %1694 = vmatprep.subr.bf16.mxu0 0
    %1695 = vmatpush1.bf16.xpose.msra.mxu0 0
    %1696 = vmatprep.subr.bf16.mxu0 0
    %1697 = vmatpush1.bf16.xpose.msra.mxu0 0
    %1698 = vmatprep.subr.bf16.mxu0 0
    %1699 = vmatpush1.bf16.xpose.msra.mxu0 %v446
    %1700 = vmatprep.subr.bf16.mxu0 0
    %1701 = vmatpush2.bf16.xpose.msra.mxu0 0
    %1702 = vmatprep.subr.bf16.mxu0 0
    %1703 = vmatpush2.bf16.xpose.msra.mxu0 0
    %1704 = vmatprep.subr.bf16.mxu0 0
    %1705 = vmatpush2.bf16.xpose.msra.mxu0 0
    %1706 = vmatprep.subr.bf16.mxu0 0
    %1707 = vmatpush2.bf16.xpose.msra.mxu0 0
    %1708 = vmatprep.subr.bf16.mxu0 0
    %1709 = vmatpush2.bf16.xpose.msra.mxu0 0
    %1710 = vmatprep.subr.bf16.mxu0 0
    %1711 = vmatpush2.bf16.xpose.msra.mxu0 0
    %1712 = vmatprep.subr.bf16.mxu0 0
    %1713 = vmatpush2.bf16.xpose.msra.mxu0 0
    %1714 = vmatprep.subr.bf16.mxu0 0
    %1715 = vmatpush2.bf16.xpose.msra.mxu0 0
    %1716 = vmatprep.mubr.bf16.mxu0 0
    %1717 = vmatmul.mubr.bf16.gmra.mxu0 %v1559
    %v1718 = vpop.f32.mrf.mxu0
    %v1719 = vadd.f32 %v462, %v1718
    %v1720 = vpop.f32.mrf.mxu0
    %v1721 = vpop.f32.mrf.mxu0
    %v1722 = vpop.f32.mrf.mxu0
    %1723 = vdwg.mxu0
    %1724 = vmatprep.subr.bf16.mxu0 0
    %1725 = vmatpush1.bf16.xpose.msra.mxu0 0
    %1726 = vmatprep.subr.bf16.mxu0 0
    %1727 = vmatpush1.bf16.xpose.msra.mxu0 0
    %1728 = vmatprep.subr.bf16.mxu0 0
    %1729 = vmatpush1.bf16.xpose.msra.mxu0 0
    %1730 = vmatprep.subr.bf16.mxu0 0
    %1731 = vmatpush1.bf16.xpose.msra.mxu0 0
    %1732 = vmatprep.subr.bf16.mxu0 0
    %1733 = vmatpush1.bf16.xpose.msra.mxu0 0
    %1734 = vmatprep.subr.bf16.mxu0 0
    %1735 = vmatpush1.bf16.xpose.msra.mxu0 0
    %1736 = vmatprep.subr.bf16.mxu0 0
    %1737 = vmatpush1.bf16.xpose.msra.mxu0 0
    %1738 = vmatprep.subr.bf16.mxu0 0
    %1739 = vmatpush1.bf16.xpose.msra.mxu0 %v447
    %1740 = vmatprep.subr.bf16.mxu0 0
    %1741 = vmatpush2.bf16.xpose.msra.mxu0 0
    %1742 = vmatprep.subr.bf16.mxu0 0
    %1743 = vmatpush2.bf16.xpose.msra.mxu0 0
    %1744 = vmatprep.subr.bf16.mxu0 0
    %1745 = vmatpush2.bf16.xpose.msra.mxu0 0
    %1746 = vmatprep.subr.bf16.mxu0 0
    %1747 = vmatpush2.bf16.xpose.msra.mxu0 0
    %1748 = vmatprep.subr.bf16.mxu0 0
    %1749 = vmatpush2.bf16.xpose.msra.mxu0 0
    %1750 = vmatprep.subr.bf16.mxu0 0
    %1751 = vmatpush2.bf16.xpose.msra.mxu0 0
    %1752 = vmatprep.subr.bf16.mxu0 0
    %1753 = vmatpush2.bf16.xpose.msra.mxu0 0
    %1754 = vmatprep.subr.bf16.mxu0 0
    %1755 = vmatpush2.bf16.xpose.msra.mxu0 0
    %1756 = vmatprep.mubr.bf16.mxu0 0
    %1757 = vmatmul.mubr.bf16.gmra.mxu0 %v1560
    %v1758 = vpop.f32.mrf.mxu0
    %v1759 = vadd.f32 %v463, %v1758
    %v1760 = vpop.f32.mrf.mxu0
    %v1761 = vpop.f32.mrf.mxu0
    %v1762 = vpop.f32.mrf.mxu0
    %1763 = vdwg.mxu0
    %1764 = vmatprep.subr.bf16.mxu0 0
    %1765 = vmatpush1.bf16.xpose.msra.mxu0 0
    %1766 = vmatprep.subr.bf16.mxu0 0
    %1767 = vmatpush1.bf16.xpose.msra.mxu0 0
    %1768 = vmatprep.subr.bf16.mxu0 0
    %1769 = vmatpush1.bf16.xpose.msra.mxu0 0
    %1770 = vmatprep.subr.bf16.mxu0 0
    %1771 = vmatpush1.bf16.xpose.msra.mxu0 0
    %1772 = vmatprep.subr.bf16.mxu0 0
    %1773 = vmatpush1.bf16.xpose.msra.mxu0 0
    %1774 = vmatprep.subr.bf16.mxu0 0
    %1775 = vmatpush1.bf16.xpose.msra.mxu0 0
    %1776 = vmatprep.subr.bf16.mxu0 0
    %1777 = vmatpush1.bf16.xpose.msra.mxu0 0
    %1778 = vmatprep.subr.bf16.mxu0 0
    %1779 = vmatpush1.bf16.xpose.msra.mxu0 %v448
    %1780 = vmatprep.subr.bf16.mxu0 0
    %1781 = vmatpush2.bf16.xpose.msra.mxu0 0
    %1782 = vmatprep.subr.bf16.mxu0 0
    %1783 = vmatpush2.bf16.xpose.msra.mxu0 0
    %1784 = vmatprep.subr.bf16.mxu0 0
    %1785 = vmatpush2.bf16.xpose.msra.mxu0 0
    %1786 = vmatprep.subr.bf16.mxu0 0
    %1787 = vmatpush2.bf16.xpose.msra.mxu0 0
    %1788 = vmatprep.subr.bf16.mxu0 0
    %1789 = vmatpush2.bf16.xpose.msra.mxu0 0
    %1790 = vmatprep.subr.bf16.mxu0 0
    %1791 = vmatpush2.bf16.xpose.msra.mxu0 0
    %1792 = vmatprep.subr.bf16.mxu0 0
    %1793 = vmatpush2.bf16.xpose.msra.mxu0 0
    %1794 = vmatprep.subr.bf16.mxu0 0
    %1795 = vmatpush2.bf16.xpose.msra.mxu0 0
    %1796 = vmatprep.mubr.bf16.mxu0 0
    %1797 = vmatmul.mubr.bf16.gmra.mxu0 %v1561
    %v1798 = vpop.f32.mrf.mxu0
    %v1799 = vadd.f32 %v464, %v1798
    %v1800 = vpop.f32.mrf.mxu0
    %v1801 = vpop.f32.mrf.mxu0
    %v1802 = vpop.f32.mrf.mxu0
    %1803 = vdwg.mxu0
    %1804 = vmatprep.subr.bf16.mxu0 0
    %1805 = vmatpush1.bf16.xpose.msra.mxu0 0
    %1806 = vmatprep.subr.bf16.mxu0 0
    %1807 = vmatpush1.bf16.xpose.msra.mxu0 0
    %1808 = vmatprep.subr.bf16.mxu0 0
    %1809 = vmatpush1.bf16.xpose.msra.mxu0 0
    %1810 = vmatprep.subr.bf16.mxu0 0
    %1811 = vmatpush1.bf16.xpose.msra.mxu0 0
    %1812 = vmatprep.subr.bf16.mxu0 0
    %1813 = vmatpush1.bf16.xpose.msra.mxu0 0
    %1814 = vmatprep.subr.bf16.mxu0 0
    %1815 = vmatpush1.bf16.xpose.msra.mxu0 0
    %1816 = vmatprep.subr.bf16.mxu0 0
    %1817 = vmatpush1.bf16.xpose.msra.mxu0 0
    %1818 = vmatprep.subr.bf16.mxu0 0
    %1819 = vmatpush1.bf16.xpose.msra.mxu0 %v449
    %1820 = vmatprep.subr.bf16.mxu0 0
    %1821 = vmatpush2.bf16.xpose.msra.mxu0 0
    %1822 = vmatprep.subr.bf16.mxu0 0
    %1823 = vmatpush2.bf16.xpose.msra.mxu0 0
    %1824 = vmatprep.subr.bf16.mxu0 0
    %1825 = vmatpush2.bf16.xpose.msra.mxu0 0
    %1826 = vmatprep.subr.bf16.mxu0 0
    %1827 = vmatpush2.bf16.xpose.msra.mxu0 0
    %1828 = vmatprep.subr.bf16.mxu0 0
    %1829 = vmatpush2.bf16.xpose.msra.mxu0 0
    %1830 = vmatprep.subr.bf16.mxu0 0
    %1831 = vmatpush2.bf16.xpose.msra.mxu0 0
    %1832 = vmatprep.subr.bf16.mxu0 0
    %1833 = vmatpush2.bf16.xpose.msra.mxu0 0
    %1834 = vmatprep.subr.bf16.mxu0 0
    %1835 = vmatpush2.bf16.xpose.msra.mxu0 0
    %1836 = vmatprep.mubr.bf16.mxu0 0
    %1837 = vmatmul.mubr.bf16.gmra.mxu0 %v1562
    %v1838 = vpop.f32.mrf.mxu0
    %v1839 = vadd.f32 %v465, %v1838
    %v1840 = vpop.f32.mrf.mxu0
    %v1841 = vpop.f32.mrf.mxu0
    %v1842 = vpop.f32.mrf.mxu0
    %1843 = vdwg.mxu0
    %1844 = vmatprep.subr.bf16.mxu0 0
    %1845 = vmatpush1.bf16.xpose.msra.mxu0 0
    %1846 = vmatprep.subr.bf16.mxu0 0
    %1847 = vmatpush1.bf16.xpose.msra.mxu0 0
    %1848 = vmatprep.subr.bf16.mxu0 0
    %1849 = vmatpush1.bf16.xpose.msra.mxu0 0
    %1850 = vmatprep.subr.bf16.mxu0 0
    %1851 = vmatpush1.bf16.xpose.msra.mxu0 0
    %1852 = vmatprep.subr.bf16.mxu0 0
    %1853 = vmatpush1.bf16.xpose.msra.mxu0 0
    %1854 = vmatprep.subr.bf16.mxu0 0
    %1855 = vmatpush1.bf16.xpose.msra.mxu0 0
    %1856 = vmatprep.subr.bf16.mxu0 0
    %1857 = vmatpush1.bf16.xpose.msra.mxu0 0
    %1858 = vmatprep.subr.bf16.mxu0 0
    %1859 = vmatpush1.bf16.xpose.msra.mxu0 %v450
    %1860 = vmatprep.subr.bf16.mxu0 0
    %1861 = vmatpush2.bf16.xpose.msra.mxu0 0
    %1862 = vmatprep.subr.bf16.mxu0 0
    %1863 = vmatpush2.bf16.xpose.msra.mxu0 0
    %1864 = vmatprep.subr.bf16.mxu0 0
    %1865 = vmatpush2.bf16.xpose.msra.mxu0 0
    %1866 = vmatprep.subr.bf16.mxu0 0
    %1867 = vmatpush2.bf16.xpose.msra.mxu0 0
    %1868 = vmatprep.subr.bf16.mxu0 0
    %1869 = vmatpush2.bf16.xpose.msra.mxu0 0
    %1870 = vmatprep.subr.bf16.mxu0 0
    %1871 = vmatpush2.bf16.xpose.msra.mxu0 0
    %1872 = vmatprep.subr.bf16.mxu0 0
    %1873 = vmatpush2.bf16.xpose.msra.mxu0 0
    %1874 = vmatprep.subr.bf16.mxu0 0
    %1875 = vmatpush2.bf16.xpose.msra.mxu0 0
    %1876 = vmatprep.mubr.bf16.mxu0 0
    %1877 = vmatmul.mubr.bf16.gmra.mxu0 %v1563
    %v1878 = vpop.f32.mrf.mxu0
    %v1879 = vadd.f32 %v466, %v1878
    %v1880 = vpop.f32.mrf.mxu0
    %v1881 = vpop.f32.mrf.mxu0
    %v1882 = vpop.f32.mrf.mxu0
    %1883 = vdwg.mxu0
    %v1884 = vsel %vm795, %v1599, -inf
    %1885 = vmax.xlane.f32.xlu0 %v1884
    %v1886 = vpop.xlane.xlu0 %1885
    %v1887 = vsel %vm795, %v1639, -inf
    %1888 = vmax.xlane.f32.xlu0 %v1887
    %v1889 = vpop.xlane.xlu0 %1888
    %v1890 = vsel %vm795, %v1679, -inf
    %1891 = vmax.xlane.f32.xlu0 %v1890
    %v1892 = vpop.xlane.xlu0 %1891
    %v1893 = vsel %vm795, %v1719, -inf
    %1894 = vmax.xlane.f32.xlu0 %v1893
    %v1895 = vpop.xlane.xlu0 %1894
    %v1896 = vsel %vm795, %v1759, -inf
    %1897 = vmax.xlane.f32.xlu0 %v1896
    %v1898 = vpop.xlane.xlu0 %1897
    %v1899 = vsel %vm795, %v1799, -inf
    %1900 = vmax.xlane.f32.xlu0 %v1899
    %v1901 = vpop.xlane.xlu0 %1900
    %v1902 = vsel %vm795, %v1839, -inf
    %1903 = vmax.xlane.f32.xlu0 %v1902
    %v1904 = vpop.xlane.xlu0 %1903
    %v1905 = vsel %vm795, %v1879, -inf
    %1906 = vmax.xlane.f32.xlu0 %v1905
    %v1907 = vpop.xlane.xlu0 %1906
    %v1908 = vrot.slane %v1886, 4
    %v1909 = vmax.f32 %v1886, %v1908
    %v1910 = vrot.slane %v1909, 2
    %v1911 = vmax.f32 %v1909, %v1910
    %v1912 = vrot.slane %v1911, 1
    %v1913 = vmax.f32 %v1911, %v1912
    %v1914 = vrot.slane %v1889, 4
    %v1915 = vmax.f32 %v1889, %v1914
    %v1916 = vrot.slane %v1915, 2
    %v1917 = vmax.f32 %v1915, %v1916
    %v1918 = vrot.slane %v1917, 1
    %v1919 = vmax.f32 %v1917, %v1918
    %v1920 = vrot.slane %v1892, 4
    %v1921 = vmax.f32 %v1892, %v1920
    %v1922 = vrot.slane %v1921, 2
    %v1923 = vmax.f32 %v1921, %v1922
    %v1924 = vrot.slane %v1923, 1
    %v1925 = vmax.f32 %v1923, %v1924
    %v1926 = vrot.slane %v1895, 4
    %v1927 = vmax.f32 %v1895, %v1926
    %v1928 = vrot.slane %v1927, 2
    %v1929 = vmax.f32 %v1927, %v1928
    %v1930 = vrot.slane %v1929, 1
    %v1931 = vmax.f32 %v1929, %v1930
    %v1932 = vrot.slane %v1898, 4
    %v1933 = vmax.f32 %v1898, %v1932
    %v1934 = vrot.slane %v1933, 2
    %v1935 = vmax.f32 %v1933, %v1934
    %v1936 = vrot.slane %v1935, 1
    %v1937 = vmax.f32 %v1935, %v1936
    %v1938 = vrot.slane %v1901, 4
    %v1939 = vmax.f32 %v1901, %v1938
    %v1940 = vrot.slane %v1939, 2
    %v1941 = vmax.f32 %v1939, %v1940
    %v1942 = vrot.slane %v1941, 1
    %v1943 = vmax.f32 %v1941, %v1942
    %v1944 = vrot.slane %v1904, 4
    %v1945 = vmax.f32 %v1904, %v1944
    %v1946 = vrot.slane %v1945, 2
    %v1947 = vmax.f32 %v1945, %v1946
    %v1948 = vrot.slane %v1947, 1
    %v1949 = vmax.f32 %v1947, %v1948
    %v1950 = vrot.slane %v1907, 4
    %v1951 = vmax.f32 %v1907, %v1950
    %v1952 = vrot.slane %v1951, 2
    %v1953 = vmax.f32 %v1951, %v1952
    %v1954 = vrot.slane %v1953, 1
    %v1955 = vmax.f32 %v1953, %v1954
    %vm1956 = vweird.f32 %v1913
    %vm1957 = vweird.f32 %v1919
    %vm1958 = vweird.f32 %v1925
    %vm1959 = vweird.f32 %v1931
    %vm1960 = vweird.f32 %v1937
    %vm1961 = vweird.f32 %v1943
    %vm1962 = vweird.f32 %v1949
    %vm1963 = vweird.f32 %v1955
    %vm1964 = vmxor %vm1956, 1
    %vm1965 = vmxor %vm1957, 1
    %vm1966 = vmxor %vm1958, 1
    %vm1967 = vmxor %vm1959, 1
    %vm1968 = vmxor %vm1960, 1
    %vm1969 = vmxor %vm1961, 1
    %vm1970 = vmxor %vm1962, 1
    %vm1971 = vmxor %vm1963, 1
    %v1972 = vsel %vm1964, %v1913, 0.0
    %v1973 = vsel %vm1965, %v1919, 0.0
    %v1974 = vsel %vm1966, %v1925, 0.0
    %v1975 = vsel %vm1967, %v1931, 0.0
    %v1976 = vsel %vm1968, %v1937, 0.0
    %v1977 = vsel %vm1969, %v1943, 0.0
    %v1978 = vsel %vm1970, %v1949, 0.0
    %v1979 = vsel %vm1971, %v1955, 0.0
    %v1980 = vsub.f32 %v1599, %v1972
    %v1981 = vsub.f32 %v1639, %v1973
    %v1982 = vsub.f32 %v1679, %v1974
    %v1983 = vsub.f32 %v1719, %v1975
    %v1984 = vsub.f32 %v1759, %v1976
    %v1985 = vsub.f32 %v1799, %v1977
    %v1986 = vsub.f32 %v1839, %v1978
    %v1987 = vsub.f32 %v1879, %v1979
    %v1988 = vmul.f32 %v1980, 1.442695
    %v1989 = vpow.pop %v1988
    %v1990 = vmul.f32 %v1981, 1.442695
    %v1991 = vpow.pop %v1990
    %v1992 = vmul.f32 %v1982, 1.442695
    %v1993 = vpow.pop %v1992
    %v1994 = vmul.f32 %v1983, 1.442695
    %v1995 = vpow.pop %v1994
    %v1996 = vmul.f32 %v1984, 1.442695
    %v1997 = vpow.pop %v1996
    %v1998 = vmul.f32 %v1985, 1.442695
    %v1999 = vpow.pop %v1998
    %v2000 = vmul.f32 %v1986, 1.442695
    %v2001 = vpow.pop %v2000
    %v2002 = vmul.f32 %v1987, 1.442695
    %v2003 = vpow.pop %v2002
    %v2004 = vsel %vm795, %v1989, 0.0
    %2005 = vadd.xlane.f32.xlu0 %v2004
    %v2006 = vpop.xlane.xlu0 %2005
    %v2007 = vsel %vm795, %v1991, 0.0
    %2008 = vadd.xlane.f32.xlu0 %v2007
    %v2009 = vpop.xlane.xlu0 %2008
    %v2010 = vsel %vm795, %v1993, 0.0
    %2011 = vadd.xlane.f32.xlu0 %v2010
    %v2012 = vpop.xlane.xlu0 %2011
    %v2013 = vsel %vm795, %v1995, 0.0
    %2014 = vadd.xlane.f32.xlu0 %v2013
    %v2015 = vpop.xlane.xlu0 %2014
    %v2016 = vsel %vm795, %v1997, 0.0
    %2017 = vadd.xlane.f32.xlu0 %v2016
    %v2018 = vpop.xlane.xlu0 %2017
    %v2019 = vsel %vm795, %v1999, 0.0
    %2020 = vadd.xlane.f32.xlu0 %v2019
    %v2021 = vpop.xlane.xlu0 %2020
    %v2022 = vsel %vm795, %v2001, 0.0
    %2023 = vadd.xlane.f32.xlu0 %v2022
    %v2024 = vpop.xlane.xlu0 %2023
    %v2025 = vsel %vm795, %v2003, 0.0
    %2026 = vadd.xlane.f32.xlu0 %v2025
    %v2027 = vpop.xlane.xlu0 %2026
    %v2028 = vrot.slane %v2006, 4
    %v2029 = vadd.f32 %v2006, %v2028
    %v2030 = vrot.slane %v2029, 2
    %v2031 = vadd.f32 %v2029, %v2030
    %v2032 = vrot.slane %v2031, 1
    %v2033 = vadd.f32 %v2031, %v2032
    %v2034 = vrot.slane %v2009, 4
    %v2035 = vadd.f32 %v2009, %v2034
    %v2036 = vrot.slane %v2035, 2
    %v2037 = vadd.f32 %v2035, %v2036
    %v2038 = vrot.slane %v2037, 1
    %v2039 = vadd.f32 %v2037, %v2038
    %v2040 = vrot.slane %v2012, 4
    %v2041 = vadd.f32 %v2012, %v2040
    %v2042 = vrot.slane %v2041, 2
    %v2043 = vadd.f32 %v2041, %v2042
    %v2044 = vrot.slane %v2043, 1
    %v2045 = vadd.f32 %v2043, %v2044
    %v2046 = vrot.slane %v2015, 4
    %v2047 = vadd.f32 %v2015, %v2046
    %v2048 = vrot.slane %v2047, 2
    %v2049 = vadd.f32 %v2047, %v2048
    %v2050 = vrot.slane %v2049, 1
    %v2051 = vadd.f32 %v2049, %v2050
    %v2052 = vrot.slane %v2018, 4
    %v2053 = vadd.f32 %v2018, %v2052
    %v2054 = vrot.slane %v2053, 2
    %v2055 = vadd.f32 %v2053, %v2054
    %v2056 = vrot.slane %v2055, 1
    %v2057 = vadd.f32 %v2055, %v2056
    %v2058 = vrot.slane %v2021, 4
    %v2059 = vadd.f32 %v2021, %v2058
    %v2060 = vrot.slane %v2059, 2
    %v2061 = vadd.f32 %v2059, %v2060
    %v2062 = vrot.slane %v2061, 1
    %v2063 = vadd.f32 %v2061, %v2062
    %v2064 = vrot.slane %v2024, 4
    %v2065 = vadd.f32 %v2024, %v2064
    %v2066 = vrot.slane %v2065, 2
    %v2067 = vadd.f32 %v2065, %v2066
    %v2068 = vrot.slane %v2067, 1
    %v2069 = vadd.f32 %v2067, %v2068
    %v2070 = vrot.slane %v2027, 4
    %v2071 = vadd.f32 %v2027, %v2070
    %v2072 = vrot.slane %v2071, 2
    %v2073 = vadd.f32 %v2071, %v2072
    %v2074 = vrot.slane %v2073, 1
    %v2075 = vadd.f32 %v2073, %v2074
    %v2076 = vlog2.pop %v2033
    %v2077 = vmul.f32 %v2076, 0.6931472
    %v2078 = vlog2.pop %v2039
    %v2079 = vmul.f32 %v2078, 0.6931472
    %v2080 = vlog2.pop %v2045
    %v2081 = vmul.f32 %v2080, 0.6931472
    %v2082 = vlog2.pop %v2051
    %v2083 = vmul.f32 %v2082, 0.6931472
    %v2084 = vlog2.pop %v2057
    %v2085 = vmul.f32 %v2084, 0.6931472
    %v2086 = vlog2.pop %v2063
    %v2087 = vmul.f32 %v2086, 0.6931472
    %v2088 = vlog2.pop %v2069
    %v2089 = vmul.f32 %v2088, 0.6931472
    %v2090 = vlog2.pop %v2075
    %v2091 = vmul.f32 %v2090, 0.6931472
    %v2092 = vadd.f32 %v1972, %v2077
    %v2093 = vadd.f32 %v1973, %v2079
    %v2094 = vadd.f32 %v1974, %v2081
    %v2095 = vadd.f32 %v1975, %v2083
    %v2096 = vadd.f32 %v1976, %v2085
    %v2097 = vadd.f32 %v1977, %v2087
    %v2098 = vadd.f32 %v1978, %v2089
    %v2099 = vadd.f32 %v1979, %v2091
    %v2100 = vpack.c.bf16 %v407, %v407
    %v2101 = vpack.c.bf16 %v411, %v411
    %v2102 = vpack.c.bf16 %v417, %v417
    %v2103 = vpack.c.bf16 %v421, %v421
    %v2104 = vpack.c.bf16 %v427, %v427
    %v2105 = vpack.c.bf16 %v431, %v431
    %v2106 = vpack.c.bf16 %v437, %v437
    %v2107 = vpack.c.bf16 %v441, %v441
    %2108 = vmatprep.subr.bf16.mxu0 0
    %2109 = vmatpush1.bf16.xpose.msra.mxu0 0
    %2110 = vmatprep.subr.bf16.mxu0 0
    %2111 = vmatpush1.bf16.xpose.msra.mxu0 0
    %2112 = vmatprep.subr.bf16.mxu0 0
    %2113 = vmatpush1.bf16.xpose.msra.mxu0 0
    %2114 = vmatprep.subr.bf16.mxu0 0
    %2115 = vmatpush1.bf16.xpose.msra.mxu0 0
    %2116 = vmatprep.subr.bf16.mxu0 0
    %2117 = vmatpush1.bf16.xpose.msra.mxu0 0
    %2118 = vmatprep.subr.bf16.mxu0 0
    %2119 = vmatpush1.bf16.xpose.msra.mxu0 0
    %2120 = vmatprep.subr.bf16.mxu0 0
    %2121 = vmatpush1.bf16.xpose.msra.mxu0 0
    %2122 = vmatprep.subr.bf16.mxu0 0
    %2123 = vmatpush1.bf16.xpose.msra.mxu0 %v443
    %2124 = vmatprep.subr.bf16.mxu0 0
    %2125 = vmatpush2.bf16.xpose.msra.mxu0 0
    %2126 = vmatprep.subr.bf16.mxu0 0
    %2127 = vmatpush2.bf16.xpose.msra.mxu0 0
    %2128 = vmatprep.subr.bf16.mxu0 0
    %2129 = vmatpush2.bf16.xpose.msra.mxu0 0
    %2130 = vmatprep.subr.bf16.mxu0 0
    %2131 = vmatpush2.bf16.xpose.msra.mxu0 0
    %2132 = vmatprep.subr.bf16.mxu0 0
    %2133 = vmatpush2.bf16.xpose.msra.mxu0 0
    %2134 = vmatprep.subr.bf16.mxu0 0
    %2135 = vmatpush2.bf16.xpose.msra.mxu0 0
    %2136 = vmatprep.subr.bf16.mxu0 0
    %2137 = vmatpush2.bf16.xpose.msra.mxu0 0
    %2138 = vmatprep.subr.bf16.mxu0 0
    %2139 = vmatpush2.bf16.xpose.msra.mxu0 0
    %2140 = vmatprep.mubr.bf16.mxu0 0
    %2141 = vmatmul.mubr.bf16.gmra.mxu0 %v2100
    %v2142 = vpop.f32.mrf.mxu0
    %v2143 = vadd.f32 %v459, %v2142
    %v2144 = vpop.f32.mrf.mxu0
    %v2145 = vpop.f32.mrf.mxu0
    %v2146 = vpop.f32.mrf.mxu0
    %2147 = vdwg.mxu0
    %2148 = vmatprep.subr.bf16.mxu0 0
    %2149 = vmatpush1.bf16.xpose.msra.mxu0 0
    %2150 = vmatprep.subr.bf16.mxu0 0
    %2151 = vmatpush1.bf16.xpose.msra.mxu0 0
    %2152 = vmatprep.subr.bf16.mxu0 0
    %2153 = vmatpush1.bf16.xpose.msra.mxu0 0
    %2154 = vmatprep.subr.bf16.mxu0 0
    %2155 = vmatpush1.bf16.xpose.msra.mxu0 0
    %2156 = vmatprep.subr.bf16.mxu0 0
    %2157 = vmatpush1.bf16.xpose.msra.mxu0 0
    %2158 = vmatprep.subr.bf16.mxu0 0
    %2159 = vmatpush1.bf16.xpose.msra.mxu0 0
    %2160 = vmatprep.subr.bf16.mxu0 0
    %2161 = vmatpush1.bf16.xpose.msra.mxu0 0
    %2162 = vmatprep.subr.bf16.mxu0 0
    %2163 = vmatpush1.bf16.xpose.msra.mxu0 %v444
    %2164 = vmatprep.subr.bf16.mxu0 0
    %2165 = vmatpush2.bf16.xpose.msra.mxu0 0
    %2166 = vmatprep.subr.bf16.mxu0 0
    %2167 = vmatpush2.bf16.xpose.msra.mxu0 0
    %2168 = vmatprep.subr.bf16.mxu0 0
    %2169 = vmatpush2.bf16.xpose.msra.mxu0 0
    %2170 = vmatprep.subr.bf16.mxu0 0
    %2171 = vmatpush2.bf16.xpose.msra.mxu0 0
    %2172 = vmatprep.subr.bf16.mxu0 0
    %2173 = vmatpush2.bf16.xpose.msra.mxu0 0
    %2174 = vmatprep.subr.bf16.mxu0 0
    %2175 = vmatpush2.bf16.xpose.msra.mxu0 0
    %2176 = vmatprep.subr.bf16.mxu0 0
    %2177 = vmatpush2.bf16.xpose.msra.mxu0 0
    %2178 = vmatprep.subr.bf16.mxu0 0
    %2179 = vmatpush2.bf16.xpose.msra.mxu0 0
    %2180 = vmatprep.mubr.bf16.mxu0 0
    %2181 = vmatmul.mubr.bf16.gmra.mxu0 %v2101
    %v2182 = vpop.f32.mrf.mxu0
    %v2183 = vadd.f32 %v460, %v2182
    %v2184 = vpop.f32.mrf.mxu0
    %v2185 = vpop.f32.mrf.mxu0
    %v2186 = vpop.f32.mrf.mxu0
    %2187 = vdwg.mxu0
    %2188 = vmatprep.subr.bf16.mxu0 0
    %2189 = vmatpush1.bf16.xpose.msra.mxu0 0
    %2190 = vmatprep.subr.bf16.mxu0 0
    %2191 = vmatpush1.bf16.xpose.msra.mxu0 0
    %2192 = vmatprep.subr.bf16.mxu0 0
    %2193 = vmatpush1.bf16.xpose.msra.mxu0 0
    %2194 = vmatprep.subr.bf16.mxu0 0
    %2195 = vmatpush1.bf16.xpose.msra.mxu0 0
    %2196 = vmatprep.subr.bf16.mxu0 0
    %2197 = vmatpush1.bf16.xpose.msra.mxu0 0
    %2198 = vmatprep.subr.bf16.mxu0 0
    %2199 = vmatpush1.bf16.xpose.msra.mxu0 0
    %2200 = vmatprep.subr.bf16.mxu0 0
    %2201 = vmatpush1.bf16.xpose.msra.mxu0 0
    %2202 = vmatprep.subr.bf16.mxu0 0
    %2203 = vmatpush1.bf16.xpose.msra.mxu0 %v445
    %2204 = vmatprep.subr.bf16.mxu0 0
    %2205 = vmatpush2.bf16.xpose.msra.mxu0 0
    %2206 = vmatprep.subr.bf16.mxu0 0
    %2207 = vmatpush2.bf16.xpose.msra.mxu0 0
    %2208 = vmatprep.subr.bf16.mxu0 0
    %2209 = vmatpush2.bf16.xpose.msra.mxu0 0
    %2210 = vmatprep.subr.bf16.mxu0 0
    %2211 = vmatpush2.bf16.xpose.msra.mxu0 0
    %2212 = vmatprep.subr.bf16.mxu0 0
    %2213 = vmatpush2.bf16.xpose.msra.mxu0 0
    %2214 = vmatprep.subr.bf16.mxu0 0
    %2215 = vmatpush2.bf16.xpose.msra.mxu0 0
    %2216 = vmatprep.subr.bf16.mxu0 0
    %2217 = vmatpush2.bf16.xpose.msra.mxu0 0
    %2218 = vmatprep.subr.bf16.mxu0 0
    %2219 = vmatpush2.bf16.xpose.msra.mxu0 0
    %2220 = vmatprep.mubr.bf16.mxu0 0
    %2221 = vmatmul.mubr.bf16.gmra.mxu0 %v2102
    %v2222 = vpop.f32.mrf.mxu0
    %v2223 = vadd.f32 %v461, %v2222
    %v2224 = vpop.f32.mrf.mxu0
    %v2225 = vpop.f32.mrf.mxu0
    %v2226 = vpop.f32.mrf.mxu0
    %2227 = vdwg.mxu0
    %2228 = vmatprep.subr.bf16.mxu0 0
    %2229 = vmatpush1.bf16.xpose.msra.mxu0 0
    %2230 = vmatprep.subr.bf16.mxu0 0
    %2231 = vmatpush1.bf16.xpose.msra.mxu0 0
    %2232 = vmatprep.subr.bf16.mxu0 0
    %2233 = vmatpush1.bf16.xpose.msra.mxu0 0
    %2234 = vmatprep.subr.bf16.mxu0 0
    %2235 = vmatpush1.bf16.xpose.msra.mxu0 0
    %2236 = vmatprep.subr.bf16.mxu0 0
    %2237 = vmatpush1.bf16.xpose.msra.mxu0 0
    %2238 = vmatprep.subr.bf16.mxu0 0
    %2239 = vmatpush1.bf16.xpose.msra.mxu0 0
    %2240 = vmatprep.subr.bf16.mxu0 0
    %2241 = vmatpush1.bf16.xpose.msra.mxu0 0
    %2242 = vmatprep.subr.bf16.mxu0 0
    %2243 = vmatpush1.bf16.xpose.msra.mxu0 %v446
    %2244 = vmatprep.subr.bf16.mxu0 0
    %2245 = vmatpush2.bf16.xpose.msra.mxu0 0
    %2246 = vmatprep.subr.bf16.mxu0 0
    %2247 = vmatpush2.bf16.xpose.msra.mxu0 0
    %2248 = vmatprep.subr.bf16.mxu0 0
    %2249 = vmatpush2.bf16.xpose.msra.mxu0 0
    %2250 = vmatprep.subr.bf16.mxu0 0
    %2251 = vmatpush2.bf16.xpose.msra.mxu0 0
    %2252 = vmatprep.subr.bf16.mxu0 0
    %2253 = vmatpush2.bf16.xpose.msra.mxu0 0
    %2254 = vmatprep.subr.bf16.mxu0 0
    %2255 = vmatpush2.bf16.xpose.msra.mxu0 0
    %2256 = vmatprep.subr.bf16.mxu0 0
    %2257 = vmatpush2.bf16.xpose.msra.mxu0 0
    %2258 = vmatprep.subr.bf16.mxu0 0
    %2259 = vmatpush2.bf16.xpose.msra.mxu0 0
    %2260 = vmatprep.mubr.bf16.mxu0 0
    %2261 = vmatmul.mubr.bf16.gmra.mxu0 %v2103
    %v2262 = vpop.f32.mrf.mxu0
    %v2263 = vadd.f32 %v462, %v2262
    %v2264 = vpop.f32.mrf.mxu0
    %v2265 = vpop.f32.mrf.mxu0
    %v2266 = vpop.f32.mrf.mxu0
    %2267 = vdwg.mxu0
    %2268 = vmatprep.subr.bf16.mxu0 0
    %2269 = vmatpush1.bf16.xpose.msra.mxu0 0
    %2270 = vmatprep.subr.bf16.mxu0 0
    %2271 = vmatpush1.bf16.xpose.msra.mxu0 0
    %2272 = vmatprep.subr.bf16.mxu0 0
    %2273 = vmatpush1.bf16.xpose.msra.mxu0 0
    %2274 = vmatprep.subr.bf16.mxu0 0
    %2275 = vmatpush1.bf16.xpose.msra.mxu0 0
    %2276 = vmatprep.subr.bf16.mxu0 0
    %2277 = vmatpush1.bf16.xpose.msra.mxu0 0
    %2278 = vmatprep.subr.bf16.mxu0 0
    %2279 = vmatpush1.bf16.xpose.msra.mxu0 0
    %2280 = vmatprep.subr.bf16.mxu0 0
    %2281 = vmatpush1.bf16.xpose.msra.mxu0 0
    %2282 = vmatprep.subr.bf16.mxu0 0
    %2283 = vmatpush1.bf16.xpose.msra.mxu0 %v447
    %2284 = vmatprep.subr.bf16.mxu0 0
    %2285 = vmatpush2.bf16.xpose.msra.mxu0 0
    %2286 = vmatprep.subr.bf16.mxu0 0
    %2287 = vmatpush2.bf16.xpose.msra.mxu0 0
    %2288 = vmatprep.subr.bf16.mxu0 0
    %2289 = vmatpush2.bf16.xpose.msra.mxu0 0
    %2290 = vmatprep.subr.bf16.mxu0 0
    %2291 = vmatpush2.bf16.xpose.msra.mxu0 0
    %2292 = vmatprep.subr.bf16.mxu0 0
    %2293 = vmatpush2.bf16.xpose.msra.mxu0 0
    %2294 = vmatprep.subr.bf16.mxu0 0
    %2295 = vmatpush2.bf16.xpose.msra.mxu0 0
    %2296 = vmatprep.subr.bf16.mxu0 0
    %2297 = vmatpush2.bf16.xpose.msra.mxu0 0
    %2298 = vmatprep.subr.bf16.mxu0 0
    %2299 = vmatpush2.bf16.xpose.msra.mxu0 0
    %2300 = vmatprep.mubr.bf16.mxu0 0
    %2301 = vmatmul.mubr.bf16.gmra.mxu0 %v2104
    %v2302 = vpop.f32.mrf.mxu0
    %v2303 = vadd.f32 %v463, %v2302
    %v2304 = vpop.f32.mrf.mxu0
    %v2305 = vpop.f32.mrf.mxu0
    %v2306 = vpop.f32.mrf.mxu0
    %2307 = vdwg.mxu0
    %2308 = vmatprep.subr.bf16.mxu0 0
    %2309 = vmatpush1.bf16.xpose.msra.mxu0 0
    %2310 = vmatprep.subr.bf16.mxu0 0
    %2311 = vmatpush1.bf16.xpose.msra.mxu0 0
    %2312 = vmatprep.subr.bf16.mxu0 0
    %2313 = vmatpush1.bf16.xpose.msra.mxu0 0
    %2314 = vmatprep.subr.bf16.mxu0 0
    %2315 = vmatpush1.bf16.xpose.msra.mxu0 0
    %2316 = vmatprep.subr.bf16.mxu0 0
    %2317 = vmatpush1.bf16.xpose.msra.mxu0 0
    %2318 = vmatprep.subr.bf16.mxu0 0
    %2319 = vmatpush1.bf16.xpose.msra.mxu0 0
    %2320 = vmatprep.subr.bf16.mxu0 0
    %2321 = vmatpush1.bf16.xpose.msra.mxu0 0
    %2322 = vmatprep.subr.bf16.mxu0 0
    %2323 = vmatpush1.bf16.xpose.msra.mxu0 %v448
    %2324 = vmatprep.subr.bf16.mxu0 0
    %2325 = vmatpush2.bf16.xpose.msra.mxu0 0
    %2326 = vmatprep.subr.bf16.mxu0 0
    %2327 = vmatpush2.bf16.xpose.msra.mxu0 0
    %2328 = vmatprep.subr.bf16.mxu0 0
    %2329 = vmatpush2.bf16.xpose.msra.mxu0 0
    %2330 = vmatprep.subr.bf16.mxu0 0
    %2331 = vmatpush2.bf16.xpose.msra.mxu0 0
    %2332 = vmatprep.subr.bf16.mxu0 0
    %2333 = vmatpush2.bf16.xpose.msra.mxu0 0
    %2334 = vmatprep.subr.bf16.mxu0 0
    %2335 = vmatpush2.bf16.xpose.msra.mxu0 0
    %2336 = vmatprep.subr.bf16.mxu0 0
    %2337 = vmatpush2.bf16.xpose.msra.mxu0 0
    %2338 = vmatprep.subr.bf16.mxu0 0
    %2339 = vmatpush2.bf16.xpose.msra.mxu0 0
    %2340 = vmatprep.mubr.bf16.mxu0 0
    %2341 = vmatmul.mubr.bf16.gmra.mxu0 %v2105
    %v2342 = vpop.f32.mrf.mxu0
    %v2343 = vadd.f32 %v464, %v2342
    %v2344 = vpop.f32.mrf.mxu0
    %v2345 = vpop.f32.mrf.mxu0
    %v2346 = vpop.f32.mrf.mxu0
    %2347 = vdwg.mxu0
    %2348 = vmatprep.subr.bf16.mxu0 0
    %2349 = vmatpush1.bf16.xpose.msra.mxu0 0
    %2350 = vmatprep.subr.bf16.mxu0 0
    %2351 = vmatpush1.bf16.xpose.msra.mxu0 0
    %2352 = vmatprep.subr.bf16.mxu0 0
    %2353 = vmatpush1.bf16.xpose.msra.mxu0 0
    %2354 = vmatprep.subr.bf16.mxu0 0
    %2355 = vmatpush1.bf16.xpose.msra.mxu0 0
    %2356 = vmatprep.subr.bf16.mxu0 0
    %2357 = vmatpush1.bf16.xpose.msra.mxu0 0
    %2358 = vmatprep.subr.bf16.mxu0 0
    %2359 = vmatpush1.bf16.xpose.msra.mxu0 0
    %2360 = vmatprep.subr.bf16.mxu0 0
    %2361 = vmatpush1.bf16.xpose.msra.mxu0 0
    %2362 = vmatprep.subr.bf16.mxu0 0
    %2363 = vmatpush1.bf16.xpose.msra.mxu0 %v449
    %2364 = vmatprep.subr.bf16.mxu0 0
    %2365 = vmatpush2.bf16.xpose.msra.mxu0 0
    %2366 = vmatprep.subr.bf16.mxu0 0
    %2367 = vmatpush2.bf16.xpose.msra.mxu0 0
    %2368 = vmatprep.subr.bf16.mxu0 0
    %2369 = vmatpush2.bf16.xpose.msra.mxu0 0
    %2370 = vmatprep.subr.bf16.mxu0 0
    %2371 = vmatpush2.bf16.xpose.msra.mxu0 0
    %2372 = vmatprep.subr.bf16.mxu0 0
    %2373 = vmatpush2.bf16.xpose.msra.mxu0 0
    %2374 = vmatprep.subr.bf16.mxu0 0
    %2375 = vmatpush2.bf16.xpose.msra.mxu0 0
    %2376 = vmatprep.subr.bf16.mxu0 0
    %2377 = vmatpush2.bf16.xpose.msra.mxu0 0
    %2378 = vmatprep.subr.bf16.mxu0 0
    %2379 = vmatpush2.bf16.xpose.msra.mxu0 0
    %2380 = vmatprep.mubr.bf16.mxu0 0
    %2381 = vmatmul.mubr.bf16.gmra.mxu0 %v2106
    %v2382 = vpop.f32.mrf.mxu0
    %v2383 = vadd.f32 %v465, %v2382
    %v2384 = vpop.f32.mrf.mxu0
    %v2385 = vpop.f32.mrf.mxu0
    %v2386 = vpop.f32.mrf.mxu0
    %2387 = vdwg.mxu0
    %2388 = vmatprep.subr.bf16.mxu0 0
    %2389 = vmatpush1.bf16.xpose.msra.mxu0 0
    %2390 = vmatprep.subr.bf16.mxu0 0
    %2391 = vmatpush1.bf16.xpose.msra.mxu0 0
    %2392 = vmatprep.subr.bf16.mxu0 0
    %2393 = vmatpush1.bf16.xpose.msra.mxu0 0
    %2394 = vmatprep.subr.bf16.mxu0 0
    %2395 = vmatpush1.bf16.xpose.msra.mxu0 0
    %2396 = vmatprep.subr.bf16.mxu0 0
    %2397 = vmatpush1.bf16.xpose.msra.mxu0 0
    %2398 = vmatprep.subr.bf16.mxu0 0
    %2399 = vmatpush1.bf16.xpose.msra.mxu0 0
    %2400 = vmatprep.subr.bf16.mxu0 0
    %2401 = vmatpush1.bf16.xpose.msra.mxu0 0
    %2402 = vmatprep.subr.bf16.mxu0 0
    %2403 = vmatpush1.bf16.xpose.msra.mxu0 %v450
    %2404 = vmatprep.subr.bf16.mxu0 0
    %2405 = vmatpush2.bf16.xpose.msra.mxu0 0
    %2406 = vmatprep.subr.bf16.mxu0 0
    %2407 = vmatpush2.bf16.xpose.msra.mxu0 0
    %2408 = vmatprep.subr.bf16.mxu0 0
    %2409 = vmatpush2.bf16.xpose.msra.mxu0 0
    %2410 = vmatprep.subr.bf16.mxu0 0
    %2411 = vmatpush2.bf16.xpose.msra.mxu0 0
    %2412 = vmatprep.subr.bf16.mxu0 0
    %2413 = vmatpush2.bf16.xpose.msra.mxu0 0
    %2414 = vmatprep.subr.bf16.mxu0 0
    %2415 = vmatpush2.bf16.xpose.msra.mxu0 0
    %2416 = vmatprep.subr.bf16.mxu0 0
    %2417 = vmatpush2.bf16.xpose.msra.mxu0 0
    %2418 = vmatprep.subr.bf16.mxu0 0
    %2419 = vmatpush2.bf16.xpose.msra.mxu0 0
    %2420 = vmatprep.mubr.bf16.mxu0 0
    %2421 = vmatmul.mubr.bf16.gmra.mxu0 %v2107
    %v2422 = vpop.f32.mrf.mxu0
    %v2423 = vadd.f32 %v466, %v2422
    %v2424 = vpop.f32.mrf.mxu0
    %v2425 = vpop.f32.mrf.mxu0
    %v2426 = vpop.f32.mrf.mxu0
    %2427 = vdwg.mxu0
    %v2428 = vsel %vm795, %v2143, -inf
    %2429 = vmax.xlane.f32.xlu0 %v2428
    %v2430 = vpop.xlane.xlu0 %2429
    %v2431 = vsel %vm795, %v2183, -inf
    %2432 = vmax.xlane.f32.xlu0 %v2431
    %v2433 = vpop.xlane.xlu0 %2432
    %v2434 = vsel %vm795, %v2223, -inf
    %2435 = vmax.xlane.f32.xlu0 %v2434
    %v2436 = vpop.xlane.xlu0 %2435
    %v2437 = vsel %vm795, %v2263, -inf
    %2438 = vmax.xlane.f32.xlu0 %v2437
    %v2439 = vpop.xlane.xlu0 %2438
    %v2440 = vsel %vm795, %v2303, -inf
    %2441 = vmax.xlane.f32.xlu0 %v2440
    %v2442 = vpop.xlane.xlu0 %2441
    %v2443 = vsel %vm795, %v2343, -inf
    %2444 = vmax.xlane.f32.xlu0 %v2443
    %v2445 = vpop.xlane.xlu0 %2444
    %v2446 = vsel %vm795, %v2383, -inf
    %2447 = vmax.xlane.f32.xlu0 %v2446
    %v2448 = vpop.xlane.xlu0 %2447
    %v2449 = vsel %vm795, %v2423, -inf
    %2450 = vmax.xlane.f32.xlu0 %v2449
    %v2451 = vpop.xlane.xlu0 %2450
    %v2452 = vrot.slane %v2430, 4
    %v2453 = vmax.f32 %v2430, %v2452
    %v2454 = vrot.slane %v2453, 2
    %v2455 = vmax.f32 %v2453, %v2454
    %v2456 = vrot.slane %v2455, 1
    %v2457 = vmax.f32 %v2455, %v2456
    %v2458 = vrot.slane %v2433, 4
    %v2459 = vmax.f32 %v2433, %v2458
    %v2460 = vrot.slane %v2459, 2
    %v2461 = vmax.f32 %v2459, %v2460
    %v2462 = vrot.slane %v2461, 1
    %v2463 = vmax.f32 %v2461, %v2462
    %v2464 = vrot.slane %v2436, 4
    %v2465 = vmax.f32 %v2436, %v2464
    %v2466 = vrot.slane %v2465, 2
    %v2467 = vmax.f32 %v2465, %v2466
    %v2468 = vrot.slane %v2467, 1
    %v2469 = vmax.f32 %v2467, %v2468
    %v2470 = vrot.slane %v2439, 4
    %v2471 = vmax.f32 %v2439, %v2470
    %v2472 = vrot.slane %v2471, 2
    %v2473 = vmax.f32 %v2471, %v2472
    %v2474 = vrot.slane %v2473, 1
    %v2475 = vmax.f32 %v2473, %v2474
    %v2476 = vrot.slane %v2442, 4
    %v2477 = vmax.f32 %v2442, %v2476
    %v2478 = vrot.slane %v2477, 2
    %v2479 = vmax.f32 %v2477, %v2478
    %v2480 = vrot.slane %v2479, 1
    %v2481 = vmax.f32 %v2479, %v2480
    %v2482 = vrot.slane %v2445, 4
    %v2483 = vmax.f32 %v2445, %v2482
    %v2484 = vrot.slane %v2483, 2
    %v2485 = vmax.f32 %v2483, %v2484
    %v2486 = vrot.slane %v2485, 1
    %v2487 = vmax.f32 %v2485, %v2486
    %v2488 = vrot.slane %v2448, 4
    %v2489 = vmax.f32 %v2448, %v2488
    %v2490 = vrot.slane %v2489, 2
    %v2491 = vmax.f32 %v2489, %v2490
    %v2492 = vrot.slane %v2491, 1
    %v2493 = vmax.f32 %v2491, %v2492
    %v2494 = vrot.slane %v2451, 4
    %v2495 = vmax.f32 %v2451, %v2494
    %v2496 = vrot.slane %v2495, 2
    %v2497 = vmax.f32 %v2495, %v2496
    %v2498 = vrot.slane %v2497, 1
    %v2499 = vmax.f32 %v2497, %v2498
    %vm2500 = vweird.f32 %v2457
    %vm2501 = vweird.f32 %v2463
    %vm2502 = vweird.f32 %v2469
    %vm2503 = vweird.f32 %v2475
    %vm2504 = vweird.f32 %v2481
    %vm2505 = vweird.f32 %v2487
    %vm2506 = vweird.f32 %v2493
    %vm2507 = vweird.f32 %v2499
    %vm2508 = vmxor %vm2500, 1
    %vm2509 = vmxor %vm2501, 1
    %vm2510 = vmxor %vm2502, 1
    %vm2511 = vmxor %vm2503, 1
    %vm2512 = vmxor %vm2504, 1
    %vm2513 = vmxor %vm2505, 1
    %vm2514 = vmxor %vm2506, 1
    %vm2515 = vmxor %vm2507, 1
    %v2516 = vsel %vm2508, %v2457, 0.0
    %v2517 = vsel %vm2509, %v2463, 0.0
    %v2518 = vsel %vm2510, %v2469, 0.0
    %v2519 = vsel %vm2511, %v2475, 0.0
    %v2520 = vsel %vm2512, %v2481, 0.0
    %v2521 = vsel %vm2513, %v2487, 0.0
    %v2522 = vsel %vm2514, %v2493, 0.0
    %v2523 = vsel %vm2515, %v2499, 0.0
    %v2524 = vsub.f32 %v2143, %v2516
    %v2525 = vsub.f32 %v2183, %v2517
    %v2526 = vsub.f32 %v2223, %v2518
    %v2527 = vsub.f32 %v2263, %v2519
    %v2528 = vsub.f32 %v2303, %v2520
    %v2529 = vsub.f32 %v2343, %v2521
    %v2530 = vsub.f32 %v2383, %v2522
    %v2531 = vsub.f32 %v2423, %v2523
    %v2532 = vmul.f32 %v2524, 1.442695
    %v2533 = vpow.pop %v2532
    %v2534 = vmul.f32 %v2525, 1.442695
    %v2535 = vpow.pop %v2534
    %v2536 = vmul.f32 %v2526, 1.442695
    %v2537 = vpow.pop %v2536
    %v2538 = vmul.f32 %v2527, 1.442695
    %v2539 = vpow.pop %v2538
    %v2540 = vmul.f32 %v2528, 1.442695
    %v2541 = vpow.pop %v2540
    %v2542 = vmul.f32 %v2529, 1.442695
    %v2543 = vpow.pop %v2542
    %v2544 = vmul.f32 %v2530, 1.442695
    %v2545 = vpow.pop %v2544
    %v2546 = vmul.f32 %v2531, 1.442695
    %v2547 = vpow.pop %v2546
    %v2548 = vsel %vm795, %v2533, 0.0
    %2549 = vadd.xlane.f32.xlu0 %v2548
    %v2550 = vpop.xlane.xlu0 %2549
    %v2551 = vsel %vm795, %v2535, 0.0
    %2552 = vadd.xlane.f32.xlu0 %v2551
    %v2553 = vpop.xlane.xlu0 %2552
    %v2554 = vsel %vm795, %v2537, 0.0
    %2555 = vadd.xlane.f32.xlu0 %v2554
    %v2556 = vpop.xlane.xlu0 %2555
    %v2557 = vsel %vm795, %v2539, 0.0
    %2558 = vadd.xlane.f32.xlu0 %v2557
    %v2559 = vpop.xlane.xlu0 %2558
    %v2560 = vsel %vm795, %v2541, 0.0
    %2561 = vadd.xlane.f32.xlu0 %v2560
    %v2562 = vpop.xlane.xlu0 %2561
    %v2563 = vsel %vm795, %v2543, 0.0
    %2564 = vadd.xlane.f32.xlu0 %v2563
    %v2565 = vpop.xlane.xlu0 %2564
    %v2566 = vsel %vm795, %v2545, 0.0
    %2567 = vadd.xlane.f32.xlu0 %v2566
    %v2568 = vpop.xlane.xlu0 %2567
    %v2569 = vsel %vm795, %v2547, 0.0
    %2570 = vadd.xlane.f32.xlu0 %v2569
    %v2571 = vpop.xlane.xlu0 %2570
    %v2572 = vrot.slane %v2550, 4
    %v2573 = vadd.f32 %v2550, %v2572
    %v2574 = vrot.slane %v2573, 2
    %v2575 = vadd.f32 %v2573, %v2574
    %v2576 = vrot.slane %v2575, 1
    %v2577 = vadd.f32 %v2575, %v2576
    %v2578 = vrot.slane %v2553, 4
    %v2579 = vadd.f32 %v2553, %v2578
    %v2580 = vrot.slane %v2579, 2
    %v2581 = vadd.f32 %v2579, %v2580
    %v2582 = vrot.slane %v2581, 1
    %v2583 = vadd.f32 %v2581, %v2582
    %v2584 = vrot.slane %v2556, 4
    %v2585 = vadd.f32 %v2556, %v2584
    %v2586 = vrot.slane %v2585, 2
    %v2587 = vadd.f32 %v2585, %v2586
    %v2588 = vrot.slane %v2587, 1
    %v2589 = vadd.f32 %v2587, %v2588
    %v2590 = vrot.slane %v2559, 4
    %v2591 = vadd.f32 %v2559, %v2590
    %v2592 = vrot.slane %v2591, 2
    %v2593 = vadd.f32 %v2591, %v2592
    %v2594 = vrot.slane %v2593, 1
    %v2595 = vadd.f32 %v2593, %v2594
    %v2596 = vrot.slane %v2562, 4
    %v2597 = vadd.f32 %v2562, %v2596
    %v2598 = vrot.slane %v2597, 2
    %v2599 = vadd.f32 %v2597, %v2598
    %v2600 = vrot.slane %v2599, 1
    %v2601 = vadd.f32 %v2599, %v2600
    %v2602 = vrot.slane %v2565, 4
    %v2603 = vadd.f32 %v2565, %v2602
    %v2604 = vrot.slane %v2603, 2
    %v2605 = vadd.f32 %v2603, %v2604
    %v2606 = vrot.slane %v2605, 1
    %v2607 = vadd.f32 %v2605, %v2606
    %v2608 = vrot.slane %v2568, 4
    %v2609 = vadd.f32 %v2568, %v2608
    %v2610 = vrot.slane %v2609, 2
    %v2611 = vadd.f32 %v2609, %v2610
    %v2612 = vrot.slane %v2611, 1
    %v2613 = vadd.f32 %v2611, %v2612
    %v2614 = vrot.slane %v2571, 4
    %v2615 = vadd.f32 %v2571, %v2614
    %v2616 = vrot.slane %v2615, 2
    %v2617 = vadd.f32 %v2615, %v2616
    %v2618 = vrot.slane %v2617, 1
    %v2619 = vadd.f32 %v2617, %v2618
    %v2620 = vlog2.pop %v2577
    %v2621 = vmul.f32 %v2620, 0.6931472
    %v2622 = vlog2.pop %v2583
    %v2623 = vmul.f32 %v2622, 0.6931472
    %v2624 = vlog2.pop %v2589
    %v2625 = vmul.f32 %v2624, 0.6931472
    %v2626 = vlog2.pop %v2595
    %v2627 = vmul.f32 %v2626, 0.6931472
    %v2628 = vlog2.pop %v2601
    %v2629 = vmul.f32 %v2628, 0.6931472
    %v2630 = vlog2.pop %v2607
    %v2631 = vmul.f32 %v2630, 0.6931472
    %v2632 = vlog2.pop %v2613
    %v2633 = vmul.f32 %v2632, 0.6931472
    %v2634 = vlog2.pop %v2619
    %v2635 = vmul.f32 %v2634, 0.6931472
    %v2636 = vadd.f32 %v2516, %v2621
    %v2637 = vadd.f32 %v2517, %v2623
    %v2638 = vadd.f32 %v2518, %v2625
    %v2639 = vadd.f32 %v2519, %v2627
    %v2640 = vadd.f32 %v2520, %v2629
    %v2641 = vadd.f32 %v2521, %v2631
    %v2642 = vadd.f32 %v2522, %v2633
    %v2643 = vadd.f32 %v2523, %v2635
    %vm2652 = vcmask 1041409
    %v2653 = vsel %vm2652, %v1005, %v1004
    %vm2654 = vcmask 1042434
    %v2655 = vsel %vm2654, %v1006, %v2653
    %vm2656 = vcmask 1043459
    %v2657 = vsel %vm2656, %v1007, %v2655
    %vm2658 = vcmask 1044484
    %v2659 = vsel %vm2658, %v1008, %v2657
    %vm2660 = vcmask 1045509
    %v2661 = vsel %vm2660, %v1009, %v2659
    %vm2662 = vcmask 1046534
    %v2663 = vsel %vm2662, %v1010, %v2661
    %vm2664 = vcmask 1047559
    %v2665 = vsel %vm2664, %v1011, %v2663
    %v2675 = vsel %vm2652, %v1549, %v1548
    %v2676 = vsel %vm2654, %v1550, %v2675
    %v2677 = vsel %vm2656, %v1551, %v2676
    %v2678 = vsel %vm2658, %v1552, %v2677
    %v2679 = vsel %vm2660, %v1553, %v2678
    %v2680 = vsel %vm2662, %v1554, %v2679
    %v2681 = vsel %vm2664, %v1555, %v2680
    %v2691 = vsel %vm2652, %v2093, %v2092
    %v2692 = vsel %vm2654, %v2094, %v2691
    %v2693 = vsel %vm2656, %v2095, %v2692
    %v2694 = vsel %vm2658, %v2096, %v2693
    %v2695 = vsel %vm2660, %v2097, %v2694
    %v2696 = vsel %vm2662, %v2098, %v2695
    %v2697 = vsel %vm2664, %v2099, %v2696
    %v2707 = vsel %vm2652, %v2637, %v2636
    %v2708 = vsel %vm2654, %v2638, %v2707
    %v2709 = vsel %vm2656, %v2639, %v2708
    %v2710 = vsel %vm2658, %v2640, %v2709
    %v2711 = vsel %vm2660, %v2641, %v2710
    %v2712 = vsel %vm2662, %v2642, %v2711
    %v2713 = vsel %vm2664, %v2643, %v2712
    %vm2715 = vcmask 7168
    %v2716 = vsel %vm2715, %v2665, %v2681
    %vm2717 = vcmask 15360
    %v2718 = vsel %vm2717, %v2716, %v2697
    %vm2719 = vcmask 23552
    %v2720 = vsel %vm2719, %v2718, %v2713
    %vm2721 = vcmask 31744
    %2722 = vst.msk [vmem:[%s4] sm:$0xff] %vm2721, %v2720
    // Predicated region
    $region34: #{tpu_custom_call.1} parent=1 // pred_check
      _
    $region35: #{tpu_custom_call.1} parent=1 // pred_check_branch
      %2724 = sbr.rel (0) target = $region37
    $region36: #{tpu_custom_call.1} parent=1 // pred_region
      _
    $region37: #{tpu_custom_call.1} parent=1 // pred_fallthru
      _
    // Predicated region
    $region38: #{tpu_custom_call.1} parent=1 // pred_check
      _
    $region39: #{tpu_custom_call.1} parent=1 // pred_check_branch
      %2726 = sbr.rel (0) target = $region41
    $region40: #{tpu_custom_call.1} parent=1 // pred_region
      _
    $region41: #{tpu_custom_call.1} parent=1 // pred_fallthru
      _
    %2727 = vsyncpa [#allocation3], 1
    %2728 = vsyncpa [#allocation5], 1
    %2729 = vsyncpa [#allocation8], 1

</llo_original>
